<compile_context>
chip_gen: v5e
topology: v5e:2x2
jax: 0.10.0
libtpu: 0.0.40
codegen_flags: <defaults>
</compile_context>

<pallas_src>
import math
import functools

import jax
import jax.numpy as jnp
import numpy as np
from jax import lax
from jax.experimental import pallas as pl
from jax.experimental.pallas import tpu as pltpu

# ----- model hyperparameters (from the PyTorch module) -----
d_k = d_v = 64
d_model = 64
n_heads = 4
d_ff = 64
n_layers = 2
LN_EPS = 1e-5
NEG_INF = -1e9            # in-block mask bias (matches reference masked_fill)
CROSS_NEG = -2e9          # cross-(head,batch) block bias (robust under max-sub)
Q_SCALE = 1.0 / math.sqrt(d_k)   # 0.125 — folded into W_Q (exact power of two)

_NT_DIMS = (((1,), (1,)), ((), ()))   # A @ B^T without an explicit transpose


def _layernorm(x):
    # LayerNorm(d_model), gamma=1, beta=0, eps=1e-5.  E[x] and E[x^2] are
    # independent reductions so they can overlap on the XLUs.
    m1 = jnp.mean(x, axis=-1, keepdims=True)
    m2 = jnp.mean(x * x, axis=-1, keepdims=True)
    var = m2 - m1 * m1
    return (x - m1) * lax.rsqrt(var + LN_EPS)


# ---------------------------------------------------------------------------
# Fused decoder kernel: grid=(n_layers,), one decoder layer per grid step
# ---------------------------------------------------------------------------
def _decoder_kernel(dec_ref, enc_ref, bself_ref, bcross_ref,
                    sa_wq_ref, sa_wk_ref, sa_wv_ref, sa_wo_ref,
                    ca_wq_ref, ca_wk_ref, ca_wv_ref, ca_wo_ref,
                    ff_w1_ref, ff_w2_ref,
                    out_ref, attn_ref,
                    x_scr,
                    *, BT, HBT, HBS):
    """One decoder layer per grid step.

      dec_ref:    (B*T, d_model)   embedded + positionally-encoded input
      enc_ref:    (B*S, d_model)   encoder outputs
      bself_ref:  (H*B*T, H*B*T)   block-diagonal additive self-attn bias
      bcross_ref: (H*B*T, H*B*S)   block-diagonal additive cross-attn bias
      *_w*_ref:   per-layer weight views, leading dim = 1 (layer selected
                  by the BlockSpec index_map); attention weights are per-head:
                  (1, n_heads, 64, 64)
      out_ref:    (B*T, d_model)
      attn_ref:   (1, H*B*T, H*B*T + H*B*S)  lane-dense attention probs
      x_scr:      (B*T, d_model)   activation carry across layers
    """
    li = pl.program_id(0)

    @pl.when(li == 0)
    def _():
        x_scr[...] = dec_ref[...]

    x = x_scr[...]                    # [B*T, d_model]
    enc = enc_ref[...]                # [B*S, d_model]

    def head_major(inp, w_ref):
        # [rows, d_model] -> [(head, rows), d_k].  Per-head weights are
        # selected on leading dims (no lane slicing); the concat is a cheap
        # sublane stack (rows are multiples of 8).
        return jnp.concatenate(
            [jnp.dot(inp, w_ref[0, h], preferred_element_type=jnp.float32)
             for h in range(n_heads)], axis=0)

    def attend(q_in, kv_in, bias, wq_ref, wk_ref, wv_ref, wo_ref):
        q_hm = head_major(q_in, wq_ref)      # [H*B*T, d_k] (scale pre-folded)
        k_hm = head_major(kv_in, wk_ref)     # [H*B*L, d_k]
        v_hm = head_major(kv_in, wv_ref)     # [H*B*L, d_v]
        # ONE score matmul + ONE softmax + ONE context matmul for all heads
        # and batch items; cross-(head,batch) entries are killed by the bias.
        s = lax.dot_general(q_hm, k_hm, _NT_DIMS,
                            preferred_element_type=jnp.float32) + bias
        s = s - jnp.max(s, axis=-1, keepdims=True)
        e = jnp.exp(s)
        p = e * pl.reciprocal(jnp.sum(e, axis=-1, keepdims=True), approx=False)
        ctx = jnp.dot(p, v_hm, preferred_element_type=jnp.float32)   # [H*B*T, d_v]
        # Per-head output projection summed in registers (equivalent to the
        # [B*T, H*d_v] @ W_O matmul but avoids a heads->lanes relayout).
        out = jnp.dot(ctx[0:BT, :], wo_ref[0, 0],
                      preferred_element_type=jnp.float32)
        for h in range(1, n_heads):
            out = out + jnp.dot(ctx[h * BT:(h + 1) * BT, :], wo_ref[0, h],
                                preferred_element_type=jnp.float32)
        return out, p

    # ---- masked self-attention ----
    sa_out, p_self = attend(x, x, bself_ref[...],
                            sa_wq_ref, sa_wk_ref, sa_wv_ref, sa_wo_ref)
    x = _layernorm(sa_out + x)        # dropout(p=0.2) = identity (eval mode)

    # ---- encoder-decoder cross attention ----
    ca_out, p_cross = attend(x, enc, bcross_ref[...],
                             ca_wq_ref, ca_wk_ref, ca_wv_ref, ca_wo_ref)
    x = _layernorm(ca_out + x)

    # ---- position-wise FFN ----
    hid = jnp.maximum(
        jnp.dot(x, ff_w1_ref[0], preferred_element_type=jnp.float32), 0.0)
    x = _layernorm(jnp.dot(hid, ff_w2_ref[0],
                           preferred_element_type=jnp.float32) + x)

    x_scr[...] = x

    # lane-dense attention-prob writeback for this layer (128 lanes total here)
    attn_ref[0, :, 0:HBT] = p_self
    attn_ref[0, :, HBT:HBT + HBS] = p_cross

    @pl.when(li == pl.num_programs(0) - 1)
    def _():
        out_ref[...] = x


def _const_spec(shape):
    nd = len(shape)
    return pl.BlockSpec(shape, lambda l, _nd=nd: (0,) * _nd)


def _layer_spec(per_layer_shape):
    nd = len(per_layer_shape)
    return pl.BlockSpec((1,) + tuple(per_layer_shape),
                        lambda l, _nd=nd: (l,) + (0,) * _nd)


def _fused_decoder_call(dec_flat, enc_flat, bias_self, bias_cross, weights,
                        B, T, S):
    BT = B * T
    HBT = n_heads * B * T
    HBS = n_heads * B * S
    att_w = HBT + HBS
    # TODO(synk): for general (B, T, S) pad att_w up to a multiple of 128 to
    # keep the attention writeback lane-dense (it is exactly 128 here).
    # TODO(synk): on v7x a leading parallel batch grid axis (grid=(B, n_layers))
    # would use the second TensorCore; omitted since it only helps v7x.

    kernel = functools.partial(_decoder_kernel, BT=BT, HBT=HBT, HBS=HBS)
    const_in = (dec_flat, enc_flat, bias_self, bias_cross)

    return pl.pallas_call(
        kernel,
        out_shape=(jax.ShapeDtypeStruct((BT, d_model), jnp.float32),
                   jax.ShapeDtypeStruct((n_layers, HBT, att_w), jnp.float32)),
        grid=(n_layers,),
        in_specs=[_const_spec(a.shape) for a in const_in]
                 + [_layer_spec(w.shape[1:]) for w in weights],
        out_specs=(pl.BlockSpec((BT, d_model), lambda l: (0, 0)),
                   pl.BlockSpec((1, HBT, att_w), lambda l: (l, 0, 0))),
        scratch_shapes=[pltpu.VMEM((BT, d_model), jnp.float32)],
        compiler_params=pltpu.CompilerParams(
            dimension_semantics=("arbitrary",)),
    )(*const_in, *weights)


# ---------------------------------------------------------------------------
# Glue: embedding, positional encoding, masks, bias/weight packing, params
# ---------------------------------------------------------------------------
def positional_encoding_table(max_len, d):
    pos = np.arange(max_len, dtype=np.float32)[:, None]
    div = np.exp(np.arange(0, d, 2, dtype=np.float32) *
                 (-math.log(10000.0) / d))
    pe = np.zeros((max_len, d), np.float32)
    pe[:, 0::2] = np.sin(pos * div)
    pe[:, 1::2] = np.cos(pos * div)
    return jnp.asarray(pe)


def get_attn_pad_mask(seq_q, seq_k):
    B, Lq = seq_q.shape
    Lk = seq_k.shape[1]
    pad = (seq_k == 0)[:, None, :]
    return jnp.broadcast_to(pad, (B, Lq, Lk))


def get_attn_subsequence_mask(seq):
    B, L = seq.shape
    sub = jnp.triu(jnp.ones((L, L), jnp.int32), k=1) > 0
    return jnp.broadcast_to(sub[None], (B, L, L))


def build_masks(dec_inputs, enc_inputs):
    self_mask = (get_attn_pad_mask(dec_inputs, dec_inputs) |
                 get_attn_subsequence_mask(dec_inputs))
    enc_mask = get_attn_pad_mask(dec_inputs, enc_inputs)
    return self_mask, enc_mask


def _pack_block_bias(mask, B, T, L):
    """[B, T, L] bool mask -> [H*B*T, H*B*L] additive bias, block-diagonal
    over (head, batch): in-block entries get 0 / -1e9 per the mask, cross
    blocks get -2e9 so they vanish even after max-subtraction."""
    in_block = jnp.where(mask, NEG_INF, 0.0).astype(jnp.float32)    # [B,T,L]
    same_h = jnp.eye(n_heads, dtype=bool)[:, None, None, :, None, None]
    same_b = jnp.eye(B, dtype=bool)[None, :, None, None, :, None]
    bias = jnp.where(same_h & same_b,
                     jnp.broadcast_to(in_block[None, :, :, None, None, :],
                                      (n_heads, B, T, n_heads, B, L)),
                     CROSS_NEG)
    return bias.reshape(n_heads * B * T, n_heads * B * L)


def _split_in(w):    # [d_model, H*d] -> [H, d_model, d]
    return w.reshape(d_model, n_heads, -1).transpose(1, 0, 2)


def _split_out(w):   # [H*d_v, d_model] -> [H, d_v, d_model]
    return w.reshape(n_heads, d_v, d_model)


def init_params(key, tgt_vocab_size, max_len):
    def nrm(k, shape, scale=0.05):
        return scale * jax.random.normal(k, shape, jnp.float32)

    keys = jax.random.split(key, 1 + n_layers)
    params = {
        "tgt_emb": nrm(keys[0], (tgt_vocab_size, d_model), 0.5),
        "pe": positional_encoding_table(max_len, d_model),
        "layers": [],
    }
    for li in range(n_layers):
        lk = jax.random.split(keys[1 + li], 10)
        params["layers"].append({
            "sa_wq": nrm(lk[0], (d_model, n_heads * d_k)),
            "sa_wk": nrm(lk[1], (d_model, n_heads * d_k)),
            "sa_wv": nrm(lk[2], (d_model, n_heads * d_v)),
            "sa_wo": nrm(lk[3], (n_heads * d_v, d_model)),
            "ca_wq": nrm(lk[4], (d_model, n_heads * d_k)),
            "ca_wk": nrm(lk[5], (d_model, n_heads * d_k)),
            "ca_wv": nrm(lk[6], (d_model, n_heads * d_v)),
            "ca_wo": nrm(lk[7], (n_heads * d_v, d_model)),
            "ff_w1": nrm(lk[8], (d_model, d_ff)),
            "ff_w2": nrm(lk[9], (d_ff, d_model)),
        })
    return params


def decoder_forward(params, dec_inputs, enc_inputs, enc_outputs):
    """Matches Decoder.forward: returns (dec_outputs, dec_self_attns, dec_enc_attns)."""
    B, T = dec_inputs.shape
    S = enc_inputs.shape[1]

    dec = params["tgt_emb"][dec_inputs] + params["pe"][:T][None, :, :]
    # TODO(synk): dropout in PositionalEncoding / MultiHeadAttention (p=0.2)
    # is treated as identity (eval-mode equivalence only).

    self_mask, enc_mask = build_masks(dec_inputs, enc_inputs)
    bias_self = _pack_block_bias(self_mask, B, T, T)     # [H*B*T, H*B*T]
    bias_cross = _pack_block_bias(enc_mask, B, T, S)     # [H*B*T, H*B*S]

    L = params["layers"]
    weights = (
        jnp.stack([_split_in(lp["sa_wq"]) * Q_SCALE for lp in L]),  # [L,H,64,64]
        jnp.stack([_split_in(lp["sa_wk"]) for lp in L]),
        jnp.stack([_split_in(lp["sa_wv"]) for lp in L]),
        jnp.stack([_split_out(lp["sa_wo"]) for lp in L]),
        jnp.stack([_split_in(lp["ca_wq"]) * Q_SCALE for lp in L]),
        jnp.stack([_split_in(lp["ca_wk"]) for lp in L]),
        jnp.stack([_split_in(lp["ca_wv"]) for lp in L]),
        jnp.stack([_split_out(lp["ca_wo"]) for lp in L]),
        jnp.stack([lp["ff_w1"] for lp in L]),                       # [L,64,64]
        jnp.stack([lp["ff_w2"] for lp in L]),
    )

    out_flat, attn_packed = _fused_decoder_call(
        dec.reshape(B * T, d_model).astype(jnp.float32),
        enc_outputs.reshape(B * S, d_model).astype(jnp.float32),
        bias_self, bias_cross, weights, B, T, S)

    dec_out = out_flat.reshape(B, T, d_model)

    # unpack the block-diagonal attention probabilities -> [B, n_heads, T, L]
    HBT = n_heads * B * T
    HBS = n_heads * B * S
    eye_h = jnp.eye(n_heads, dtype=jnp.float32)
    eye_b = jnp.eye(B, dtype=jnp.float32)
    self_attns, enc_attns = [], []
    for li in range(n_layers):
        ps = attn_packed[li, :, :HBT].reshape(n_heads, B, T, n_heads, B, T)
        pc = attn_packed[li, :, HBT:HBT + HBS].reshape(n_heads, B, T,
                                                       n_heads, B, S)
        self_attns.append(jnp.einsum('hbqick,hi,bc->bhqk', ps, eye_h, eye_b))
        enc_attns.append(jnp.einsum('hbqick,hi,bc->bhqk', pc, eye_h, eye_b))
    return dec_out, self_attns, enc_attns


# ---------------------------------------------------------------------------
# Pure-JAX reference (for correctness check)
# ---------------------------------------------------------------------------
def _ref_layernorm(x):
    mean = jnp.mean(x, axis=-1, keepdims=True)
    var = jnp.mean((x - mean) ** 2, axis=-1, keepdims=True)
    return (x - mean) * lax.rsqrt(var + LN_EPS)


def ref_mha(x_q, x_kv, mask, wq, wk, wv, wo):
    B, Lq, _ = x_q.shape
    Lk = x_kv.shape[1]
    Q = (x_q @ wq).reshape(B, Lq, n_heads, d_k).transpose(0, 2, 1, 3)
    K = (x_kv @ wk).reshape(B, Lk, n_heads, d_k).transpose(0, 2, 1, 3)
    V = (x_kv @ wv).reshape(B, Lk, n_heads, d_v).transpose(0, 2, 1, 3)
    scores = jnp.einsum("bhqd,bhkd->bhqk", Q, K) / math.sqrt(d_k)
    scores = jnp.where(mask[:, None], NEG_INF, scores)
    scores = scores - scores.max(-1, keepdims=True)
    e = jnp.exp(scores)
    attn = e / e.sum(-1, keepdims=True)
    ctx = jnp.einsum("bhqk,bhkd->bhqd", attn, V)
    ctx = ctx.transpose(0, 2, 1, 3).reshape(B, Lq, n_heads * d_v)
    return _ref_layernorm(ctx @ wo + x_q), attn


def ref_ffn(x, w1, w2):
    return _ref_layernorm(jnp.maximum(x @ w1, 0.0) @ w2 + x)


def ref_decoder(params, dec_inputs, enc_inputs, enc_outputs):
    T = dec_inputs.shape[1]
    x = params["tgt_emb"][dec_inputs] + params["pe"][:T][None, :, :]
    self_mask, enc_mask = build_masks(dec_inputs, enc_inputs)
    sa, ea = [], []
    for lp in params["layers"]:
        x, a1 = ref_mha(x, x, self_mask,
                        lp["sa_wq"], lp["sa_wk"], lp["sa_wv"], lp["sa_wo"])
        x, a2 = ref_mha(x, enc_outputs, enc_mask,
                        lp["ca_wq"], lp["ca_wk"], lp["ca_wv"], lp["ca_wo"])
        x = ref_ffn(x, lp["ff_w1"], lp["ff_w2"])
        sa.append(a1)
        ea.append(a2)
    return x, sa, ea


# ---------------------------------------------------------------------------
if __name__ == "__main__":
    B, tgt_len, src_len = 2, 8, 8
    tgt_vocab_size = 20      # synthetic (original derives it from tgt_mtx.npy)

    key = jax.random.PRNGKey(0)
    k_p, k_dec, k_enc, k_eo = jax.random.split(key, 4)

    params = init_params(k_p, tgt_vocab_size, max_len=64)

    dec_inputs = jax.random.randint(k_dec, (B, tgt_len), 1, tgt_vocab_size,
                                    jnp.int32)
    enc_inputs = jax.random.randint(k_enc, (B, src_len), 1, tgt_vocab_size,
                                    jnp.int32)
    # introduce some padding (id 0) away from position 0
    dec_inputs = dec_inputs.at[1, -1].set(0)
    enc_inputs = enc_inputs.at[1, -2:].set(0)
    enc_outputs = jax.random.normal(k_eo, (B, src_len, d_model), jnp.float32)

    out, self_attns, enc_attns = decoder_forward(
        params, dec_inputs, enc_inputs, enc_outputs)
    out = jax.block_until_ready(out)

    # correctness check against pure-JAX reference
    r_out, r_sa, r_ea = ref_decoder(params, dec_inputs, enc_inputs, enc_outputs)
    np.testing.assert_allclose(np.asarray(out), np.asarray(r_out),
                               rtol=1e-4, atol=1e-4)
    for a, ra in zip(self_attns + enc_attns, r_sa + r_ea):
        np.testing.assert_allclose(np.asarray(a), np.asarray(ra),
                                   rtol=1e-4, atol=1e-4)

    print("KERNEL_OK")
</pallas_src>

<mosaic_0001>
module attributes {stable_mosaic.version = 11 : i64} {
  func.func @_decoder_kernel(%arg0: i32, %arg1: memref<16x64xf32, #tpu.memory_space<vmem>>, %arg2: memref<16x64xf32, #tpu.memory_space<vmem>>, %arg3: memref<64x64xf32, #tpu.memory_space<vmem>>, %arg4: memref<64x64xf32, #tpu.memory_space<vmem>>, %arg5: memref<1x4x64x64xf32, #tpu.memory_space<vmem>>, %arg6: memref<1x4x64x64xf32, #tpu.memory_space<vmem>>, %arg7: memref<1x4x64x64xf32, #tpu.memory_space<vmem>>, %arg8: memref<1x4x64x64xf32, #tpu.memory_space<vmem>>, %arg9: memref<1x4x64x64xf32, #tpu.memory_space<vmem>>, %arg10: memref<1x4x64x64xf32, #tpu.memory_space<vmem>>, %arg11: memref<1x4x64x64xf32, #tpu.memory_space<vmem>>, %arg12: memref<1x4x64x64xf32, #tpu.memory_space<vmem>>, %arg13: memref<1x64x64xf32, #tpu.memory_space<vmem>>, %arg14: memref<1x64x64xf32, #tpu.memory_space<vmem>>, %arg15: memref<16x64xf32, #tpu.memory_space<vmem>>, %arg16: memref<1x64x128xf32, #tpu.memory_space<vmem>>, %arg17: memref<16x64xf32, #tpu.memory_space<vmem>>) attributes {dimension_semantics = [#tpu.dimension_semantics<arbitrary>], iteration_bounds = array<i64: 2>, scalar_prefetch = 0 : i64, scratch_operands = 1 : i64, tpu.core_type = #tpu.core_type<tc>, window_params = [{pipeline_mode = #tpu.pipeline_mode<synchronous>, transform_indices = @transform_0, window_bounds = array<i64: 16, 64>}, {pipeline_mode = #tpu.pipeline_mode<synchronous>, transform_indices = @transform_1, window_bounds = array<i64: 16, 64>}, {pipeline_mode = #tpu.pipeline_mode<synchronous>, transform_indices = @transform_2, window_bounds = array<i64: 64, 64>}, {pipeline_mode = #tpu.pipeline_mode<synchronous>, transform_indices = @transform_3, window_bounds = array<i64: 64, 64>}, {transform_indices = @transform_4, window_bounds = array<i64: 1, 4, 64, 64>}, {transform_indices = @transform_5, window_bounds = array<i64: 1, 4, 64, 64>}, {transform_indices = @transform_6, window_bounds = array<i64: 1, 4, 64, 64>}, {transform_indices = @transform_7, window_bounds = array<i64: 1, 4, 64, 64>}, {transform_indices = @transform_8, window_bounds = array<i64: 1, 4, 64, 64>}, {transform_indices = @transform_9, window_bounds = array<i64: 1, 4, 64, 64>}, {transform_indices = @transform_10, window_bounds = array<i64: 1, 4, 64, 64>}, {transform_indices = @transform_11, window_bounds = array<i64: 1, 4, 64, 64>}, {transform_indices = @transform_12, window_bounds = array<i64: 1, 64, 64>}, {transform_indices = @transform_13, window_bounds = array<i64: 1, 64, 64>}, {pipeline_mode = #tpu.pipeline_mode<synchronous>, transform_indices = @transform_14, window_bounds = array<i64: 16, 64>}, {transform_indices = @transform_15, window_bounds = array<i64: 1, 64, 128>}]} {
    %c0_i32 = arith.constant 0 : i32
    %0 = arith.cmpi eq, %arg0, %c0_i32 : i32
    %1 = arith.extui %0 : i1 to i32
    %c0_i32_0 = arith.constant 0 : i32
    %2 = arith.cmpi ne, %1, %c0_i32_0 : i32
    scf.if %2 {
      %c0_204 = arith.constant 0 : index
      %c0_205 = arith.constant 0 : index
      %224 = vector.load %arg1[%c0_204, %c0_205] : memref<16x64xf32, #tpu.memory_space<vmem>>, vector<16x64xf32>
      %c0_206 = arith.constant 0 : index
      %c0_207 = arith.constant 0 : index
      %225 = vector.load %arg17[%c0_206, %c0_207] : memref<16x64xf32, #tpu.memory_space<vmem>>, vector<16x64xf32>
      tpu.vector_store %arg17[%c0_206, %c0_207], %224 {strides = array<i32>} : memref<16x64xf32, #tpu.memory_space<vmem>>, vector<16x64xf32>,
    } else {
    }
    %c0 = arith.constant 0 : index
    %c0_1 = arith.constant 0 : index
    %3 = vector.load %arg17[%c0, %c0_1] : memref<16x64xf32, #tpu.memory_space<vmem>>, vector<16x64xf32>
    %c0_2 = arith.constant 0 : index
    %c0_3 = arith.constant 0 : index
    %4 = vector.load %arg2[%c0_2, %c0_3] : memref<16x64xf32, #tpu.memory_space<vmem>>, vector<16x64xf32>
    %c0_4 = arith.constant 0 : index
    %c0_5 = arith.constant 0 : index
    %5 = vector.load %arg3[%c0_4, %c0_5] : memref<64x64xf32, #tpu.memory_space<vmem>>, vector<64x64xf32>
    %c0_6 = arith.constant 0 : index
    %c0_7 = arith.constant 0 : index
    %c0_8 = arith.constant 0 : index
    %c0_9 = arith.constant 0 : index
    %6 = vector.load %arg5[%c0_6, %c0_7, %c0_8, %c0_9] : memref<1x4x64x64xf32, #tpu.memory_space<vmem>>, vector<1x1x64x64xf32>
    %7 = vector.shape_cast %6 : vector<1x1x64x64xf32> to vector<64x64xf32>
    %cst = arith.constant dense<0.000000e+00> : vector<16x64xf32>
    %8 = tpu.matmul %3, %7, %cst {dimension_numbers = #tpu.dot_dimension_numbers<[1], [0], [0], [1], [0, 0, 1, 1], [], []>} : vector<16x64xf32>, vector<64x64xf32>, vector<16x64xf32> -> vector<16x64xf32>
    %c0_10 = arith.constant 0 : index
    %c1 = arith.constant 1 : index
    %c0_11 = arith.constant 0 : index
    %c0_12 = arith.constant 0 : index
    %9 = vector.load %arg5[%c0_10, %c1, %c0_11, %c0_12] : memref<1x4x64x64xf32, #tpu.memory_space<vmem>>, vector<1x1x64x64xf32>
    %10 = vector.shape_cast %9 : vector<1x1x64x64xf32> to vector<64x64xf32>
    %cst_13 = arith.constant dense<0.000000e+00> : vector<16x64xf32>
    %11 = tpu.matmul %3, %10, %cst_13 {dimension_numbers = #tpu.dot_dimension_numbers<[1], [0], [0], [1], [0, 0, 1, 1], [], []>} : vector<16x64xf32>, vector<64x64xf32>, vector<16x64xf32> -> vector<16x64xf32>
    %c0_14 = arith.constant 0 : index
    %c2 = arith.constant 2 : index
    %c0_15 = arith.constant 0 : index
    %c0_16 = arith.constant 0 : index
    %12 = vector.load %arg5[%c0_14, %c2, %c0_15, %c0_16] : memref<1x4x64x64xf32, #tpu.memory_space<vmem>>, vector<1x1x64x64xf32>
    %13 = vector.shape_cast %12 : vector<1x1x64x64xf32> to vector<64x64xf32>
    %cst_17 = arith.constant dense<0.000000e+00> : vector<16x64xf32>
    %14 = tpu.matmul %3, %13, %cst_17 {dimension_numbers = #tpu.dot_dimension_numbers<[1], [0], [0], [1], [0, 0, 1, 1], [], []>} : vector<16x64xf32>, vector<64x64xf32>, vector<16x64xf32> -> vector<16x64xf32>
    %c0_18 = arith.constant 0 : index
    %c3 = arith.constant 3 : index
    %c0_19 = arith.constant 0 : index
    %c0_20 = arith.constant 0 : index
    %15 = vector.load %arg5[%c0_18, %c3, %c0_19, %c0_20] : memref<1x4x64x64xf32, #tpu.memory_space<vmem>>, vector<1x1x64x64xf32>
    %16 = vector.shape_cast %15 : vector<1x1x64x64xf32> to vector<64x64xf32>
    %cst_21 = arith.constant dense<0.000000e+00> : vector<16x64xf32>
    %17 = tpu.matmul %3, %16, %cst_21 {dimension_numbers = #tpu.dot_dimension_numbers<[1], [0], [0], [1], [0, 0, 1, 1], [], []>} : vector<16x64xf32>, vector<64x64xf32>, vector<16x64xf32> -> vector<16x64xf32>
    %18 = tpu.concatenate %8, %11, %14, %17 in 0 : vector<16x64xf32>, vector<16x64xf32>, vector<16x64xf32>, vector<16x64xf32> -> vector<64x64xf32>
    %c0_22 = arith.constant 0 : index
    %c0_23 = arith.constant 0 : index
    %c0_24 = arith.constant 0 : index
    %c0_25 = arith.constant 0 : index
    %19 = vector.load %arg6[%c0_22, %c0_23, %c0_24, %c0_25] : memref<1x4x64x64xf32, #tpu.memory_space<vmem>>, vector<1x1x64x64xf32>
    %20 = vector.shape_cast %19 : vector<1x1x64x64xf32> to vector<64x64xf32>
    %cst_26 = arith.constant dense<0.000000e+00> : vector<16x64xf32>
    %21 = tpu.matmul %3, %20, %cst_26 {dimension_numbers = #tpu.dot_dimension_numbers<[1], [0], [0], [1], [0, 0, 1, 1], [], []>} : vector<16x64xf32>, vector<64x64xf32>, vector<16x64xf32> -> vector<16x64xf32>
    %c0_27 = arith.constant 0 : index
    %c1_28 = arith.constant 1 : index
    %c0_29 = arith.constant 0 : index
    %c0_30 = arith.constant 0 : index
    %22 = vector.load %arg6[%c0_27, %c1_28, %c0_29, %c0_30] : memref<1x4x64x64xf32, #tpu.memory_space<vmem>>, vector<1x1x64x64xf32>
    %23 = vector.shape_cast %22 : vector<1x1x64x64xf32> to vector<64x64xf32>
    %cst_31 = arith.constant dense<0.000000e+00> : vector<16x64xf32>
    %24 = tpu.matmul %3, %23, %cst_31 {dimension_numbers = #tpu.dot_dimension_numbers<[1], [0], [0], [1], [0, 0, 1, 1], [], []>} : vector<16x64xf32>, vector<64x64xf32>, vector<16x64xf32> -> vector<16x64xf32>
    %c0_32 = arith.constant 0 : index
    %c2_33 = arith.constant 2 : index
    %c0_34 = arith.constant 0 : index
    %c0_35 = arith.constant 0 : index
    %25 = vector.load %arg6[%c0_32, %c2_33, %c0_34, %c0_35] : memref<1x4x64x64xf32, #tpu.memory_space<vmem>>, vector<1x1x64x64xf32>
    %26 = vector.shape_cast %25 : vector<1x1x64x64xf32> to vector<64x64xf32>
    %cst_36 = arith.constant dense<0.000000e+00> : vector<16x64xf32>
    %27 = tpu.matmul %3, %26, %cst_36 {dimension_numbers = #tpu.dot_dimension_numbers<[1], [0], [0], [1], [0, 0, 1, 1], [], []>} : vector<16x64xf32>, vector<64x64xf32>, vector<16x64xf32> -> vector<16x64xf32>
    %c0_37 = arith.constant 0 : index
    %c3_38 = arith.constant 3 : index
    %c0_39 = arith.constant 0 : index
    %c0_40 = arith.constant 0 : index
    %28 = vector.load %arg6[%c0_37, %c3_38, %c0_39, %c0_40] : memref<1x4x64x64xf32, #tpu.memory_space<vmem>>, vector<1x1x64x64xf32>
    %29 = vector.shape_cast %28 : vector<1x1x64x64xf32> to vector<64x64xf32>
    %cst_41 = arith.constant dense<0.000000e+00> : vector<16x64xf32>
    %30 = tpu.matmul %3, %29, %cst_41 {dimension_numbers = #tpu.dot_dimension_numbers<[1], [0], [0], [1], [0, 0, 1, 1], [], []>} : vector<16x64xf32>, vector<64x64xf32>, vector<16x64xf32> -> vector<16x64xf32>
    %31 = tpu.concatenate %21, %24, %27, %30 in 0 : vector<16x64xf32>, vector<16x64xf32>, vector<16x64xf32>, vector<16x64xf32> -> vector<64x64xf32>
    %c0_42 = arith.constant 0 : index
    %c0_43 = arith.constant 0 : index
    %c0_44 = arith.constant 0 : index
    %c0_45 = arith.constant 0 : index
    %32 = vector.load %arg7[%c0_42, %c0_43, %c0_44, %c0_45] : memref<1x4x64x64xf32, #tpu.memory_space<vmem>>, vector<1x1x64x64xf32>
    %33 = vector.shape_cast %32 : vector<1x1x64x64xf32> to vector<64x64xf32>
    %cst_46 = arith.constant dense<0.000000e+00> : vector<16x64xf32>
    %34 = tpu.matmul %3, %33, %cst_46 {dimension_numbers = #tpu.dot_dimension_numbers<[1], [0], [0], [1], [0, 0, 1, 1], [], []>} : vector<16x64xf32>, vector<64x64xf32>, vector<16x64xf32> -> vector<16x64xf32>
    %c0_47 = arith.constant 0 : index
    %c1_48 = arith.constant 1 : index
    %c0_49 = arith.constant 0 : index
    %c0_50 = arith.constant 0 : index
    %35 = vector.load %arg7[%c0_47, %c1_48, %c0_49, %c0_50] : memref<1x4x64x64xf32, #tpu.memory_space<vmem>>, vector<1x1x64x64xf32>
    %36 = vector.shape_cast %35 : vector<1x1x64x64xf32> to vector<64x64xf32>
    %cst_51 = arith.constant dense<0.000000e+00> : vector<16x64xf32>
    %37 = tpu.matmul %3, %36, %cst_51 {dimension_numbers = #tpu.dot_dimension_numbers<[1], [0], [0], [1], [0, 0, 1, 1], [], []>} : vector<16x64xf32>, vector<64x64xf32>, vector<16x64xf32> -> vector<16x64xf32>
    %c0_52 = arith.constant 0 : index
    %c2_53 = arith.constant 2 : index
    %c0_54 = arith.constant 0 : index
    %c0_55 = arith.constant 0 : index
    %38 = vector.load %arg7[%c0_52, %c2_53, %c0_54, %c0_55] : memref<1x4x64x64xf32, #tpu.memory_space<vmem>>, vector<1x1x64x64xf32>
    %39 = vector.shape_cast %38 : vector<1x1x64x64xf32> to vector<64x64xf32>
    %cst_56 = arith.constant dense<0.000000e+00> : vector<16x64xf32>
    %40 = tpu.matmul %3, %39, %cst_56 {dimension_numbers = #tpu.dot_dimension_numbers<[1], [0], [0], [1], [0, 0, 1, 1], [], []>} : vector<16x64xf32>, vector<64x64xf32>, vector<16x64xf32> -> vector<16x64xf32>
    %c0_57 = arith.constant 0 : index
    %c3_58 = arith.constant 3 : index
    %c0_59 = arith.constant 0 : index
    %c0_60 = arith.constant 0 : index
    %41 = vector.load %arg7[%c0_57, %c3_58, %c0_59, %c0_60] : memref<1x4x64x64xf32, #tpu.memory_space<vmem>>, vector<1x1x64x64xf32>
    %42 = vector.shape_cast %41 : vector<1x1x64x64xf32> to vector<64x64xf32>
    %cst_61 = arith.constant dense<0.000000e+00> : vector<16x64xf32>
    %43 = tpu.matmul %3, %42, %cst_61 {dimension_numbers = #tpu.dot_dimension_numbers<[1], [0], [0], [1], [0, 0, 1, 1], [], []>} : vector<16x64xf32>, vector<64x64xf32>, vector<16x64xf32> -> vector<16x64xf32>
    %44 = tpu.concatenate %34, %37, %40, %43 in 0 : vector<16x64xf32>, vector<16x64xf32>, vector<16x64xf32>, vector<16x64xf32> -> vector<64x64xf32>
    %cst_62 = arith.constant dense<0.000000e+00> : vector<64x64xf32>
    %45 = tpu.matmul %18, %31, %cst_62 {dimension_numbers = #tpu.dot_dimension_numbers<[1], [1], [0], [0], [0, 0, 1, 0], [], []>} : vector<64x64xf32>, vector<64x64xf32>, vector<64x64xf32> -> vector<64x64xf32>
    %46 = arith.addf %45, %5 : vector<64x64xf32>
    %cst_63 = arith.constant dense<0xFF800000> : vector<64xf32>
    %47 = vector.multi_reduction <maximumf>, %46, %cst_63 [1] : vector<64x64xf32> to vector<64xf32>
    %48 = vector.shape_cast %47 : vector<64xf32> to vector<64x1xf32>
    %49 = vector.broadcast %48 : vector<64x1xf32> to vector<64x64xf32>
    %50 = arith.subf %46, %49 : vector<64x64xf32>
    %51 = math.exp %50 : vector<64x64xf32>
    %cst_64 = arith.constant dense<0.000000e+00> : vector<64xf32>
    %52 = vector.multi_reduction <add>, %51, %cst_64 [1] : vector<64x64xf32> to vector<64xf32>
    %53 = vector.shape_cast %52 : vector<64xf32> to vector<64x1xf32>
    %54 = tpu.reciprocal %53 : vector<64x1xf32> -> vector<64x1xf32>
    %55 = vector.broadcast %54 : vector<64x1xf32> to vector<64x64xf32>
    %56 = arith.mulf %51, %55 : vector<64x64xf32>
    %cst_65 = arith.constant dense<0.000000e+00> : vector<64x64xf32>
    %57 = tpu.matmul %56, %44, %cst_65 {dimension_numbers = #tpu.dot_dimension_numbers<[1], [0], [0], [1], [0, 0, 1, 1], [], []>} : vector<64x64xf32>, vector<64x64xf32>, vector<64x64xf32> -> vector<64x64xf32>
    %58 = vector.extract_strided_slice %57 {offsets = [0, 0], sizes = [16, 64], strides = [1, 1]} : vector<64x64xf32> to vector<16x64xf32>
    %c0_66 = arith.constant 0 : index
    %c0_67 = arith.constant 0 : index
    %c0_68 = arith.constant 0 : index
    %c0_69 = arith.constant 0 : index
    %59 = vector.load %arg8[%c0_66, %c0_67, %c0_68, %c0_69] : memref<1x4x64x64xf32, #tpu.memory_space<vmem>>, vector<1x1x64x64xf32>
    %60 = vector.shape_cast %59 : vector<1x1x64x64xf32> to vector<64x64xf32>
    %cst_70 = arith.constant dense<0.000000e+00> : vector<16x64xf32>
    %61 = tpu.matmul %58, %60, %cst_70 {dimension_numbers = #tpu.dot_dimension_numbers<[1], [0], [0], [1], [0, 0, 1, 1], [], []>} : vector<16x64xf32>, vector<64x64xf32>, vector<16x64xf32> -> vector<16x64xf32>
    %62 = vector.extract_strided_slice %57 {offsets = [16, 0], sizes = [16, 64], strides = [1, 1]} : vector<64x64xf32> to vector<16x64xf32>
    %c0_71 = arith.constant 0 : index
    %c1_72 = arith.constant 1 : index
    %c0_73 = arith.constant 0 : index
    %c0_74 = arith.constant 0 : index
    %63 = vector.load %arg8[%c0_71, %c1_72, %c0_73, %c0_74] : memref<1x4x64x64xf32, #tpu.memory_space<vmem>>, vector<1x1x64x64xf32>
    %64 = vector.shape_cast %63 : vector<1x1x64x64xf32> to vector<64x64xf32>
    %cst_75 = arith.constant dense<0.000000e+00> : vector<16x64xf32>
    %65 = tpu.matmul %62, %64, %cst_75 {dimension_numbers = #tpu.dot_dimension_numbers<[1], [0], [0], [1], [0, 0, 1, 1], [], []>} : vector<16x64xf32>, vector<64x64xf32>, vector<16x64xf32> -> vector<16x64xf32>
    %66 = arith.addf %61, %65 : vector<16x64xf32>
    %67 = vector.extract_strided_slice %57 {offsets = [32, 0], sizes = [16, 64], strides = [1, 1]} : vector<64x64xf32> to vector<16x64xf32>
    %c0_76 = arith.constant 0 : index
    %c2_77 = arith.constant 2 : index
    %c0_78 = arith.constant 0 : index
    %c0_79 = arith.constant 0 : index
    %68 = vector.load %arg8[%c0_76, %c2_77, %c0_78, %c0_79] : memref<1x4x64x64xf32, #tpu.memory_space<vmem>>, vector<1x1x64x64xf32>
    %69 = vector.shape_cast %68 : vector<1x1x64x64xf32> to vector<64x64xf32>
    %cst_80 = arith.constant dense<0.000000e+00> : vector<16x64xf32>
    %70 = tpu.matmul %67, %69, %cst_80 {dimension_numbers = #tpu.dot_dimension_numbers<[1], [0], [0], [1], [0, 0, 1, 1], [], []>} : vector<16x64xf32>, vector<64x64xf32>, vector<16x64xf32> -> vector<16x64xf32>
    %71 = arith.addf %66, %70 : vector<16x64xf32>
    %72 = vector.extract_strided_slice %57 {offsets = [48, 0], sizes = [16, 64], strides = [1, 1]} : vector<64x64xf32> to vector<16x64xf32>
    %c0_81 = arith.constant 0 : index
    %c3_82 = arith.constant 3 : index
    %c0_83 = arith.constant 0 : index
    %c0_84 = arith.constant 0 : index
    %73 = vector.load %arg8[%c0_81, %c3_82, %c0_83, %c0_84] : memref<1x4x64x64xf32, #tpu.memory_space<vmem>>, vector<1x1x64x64xf32>
    %74 = vector.shape_cast %73 : vector<1x1x64x64xf32> to vector<64x64xf32>
    %cst_85 = arith.constant dense<0.000000e+00> : vector<16x64xf32>
    %75 = tpu.matmul %72, %74, %cst_85 {dimension_numbers = #tpu.dot_dimension_numbers<[1], [0], [0], [1], [0, 0, 1, 1], [], []>} : vector<16x64xf32>, vector<64x64xf32>, vector<16x64xf32> -> vector<16x64xf32>
    %76 = arith.addf %71, %75 : vector<16x64xf32>
    %77 = arith.addf %76, %3 : vector<16x64xf32>
    %cst_86 = arith.constant dense<0.000000e+00> : vector<16xf32>
    %78 = vector.multi_reduction <add>, %77, %cst_86 [1] : vector<16x64xf32> to vector<16xf32>
    %79 = vector.shape_cast %78 : vector<16xf32> to vector<16x1xf32>
    %cst_87 = arith.constant 6.400000e+01 : f32
    %80 = vector.broadcast %cst_87 : f32 to vector<16x1xf32>
    %81 = arith.divf %79, %80 : vector<16x1xf32>
    %82 = arith.mulf %77, %77 : vector<16x64xf32>
    %cst_88 = arith.constant dense<0.000000e+00> : vector<16xf32>
    %83 = vector.multi_reduction <add>, %82, %cst_88 [1] : vector<16x64xf32> to vector<16xf32>
    %84 = vector.shape_cast %83 : vector<16xf32> to vector<16x1xf32>
    %cst_89 = arith.constant 6.400000e+01 : f32
    %85 = vector.broadcast %cst_89 : f32 to vector<16x1xf32>
    %86 = arith.divf %84, %85 : vector<16x1xf32>
    %87 = arith.mulf %81, %81 : vector<16x1xf32>
    %88 = arith.subf %86, %87 : vector<16x1xf32>
    %89 = vector.broadcast %81 : vector<16x1xf32> to vector<16x64xf32>
    %90 = arith.subf %77, %89 : vector<16x64xf32>
    %cst_90 = arith.constant 9.99999974E-6 : f32
    %91 = vector.broadcast %cst_90 : f32 to vector<16x1xf32>
    %92 = arith.addf %88, %91 : vector<16x1xf32>
    %93 = math.rsqrt %92 : vector<16x1xf32>
    %94 = vector.broadcast %93 : vector<16x1xf32> to vector<16x64xf32>
    %95 = arith.mulf %90, %94 : vector<16x64xf32>
    %c0_91 = arith.constant 0 : index
    %c0_92 = arith.constant 0 : index
    %96 = vector.load %arg4[%c0_91, %c0_92] : memref<64x64xf32, #tpu.memory_space<vmem>>, vector<64x64xf32>
    %c0_93 = arith.constant 0 : index
    %c0_94 = arith.constant 0 : index
    %c0_95 = arith.constant 0 : index
    %c0_96 = arith.constant 0 : index
    %97 = vector.load %arg9[%c0_93, %c0_94, %c0_95, %c0_96] : memref<1x4x64x64xf32, #tpu.memory_space<vmem>>, vector<1x1x64x64xf32>
    %98 = vector.shape_cast %97 : vector<1x1x64x64xf32> to vector<64x64xf32>
    %cst_97 = arith.constant dense<0.000000e+00> : vector<16x64xf32>
    %99 = tpu.matmul %95, %98, %cst_97 {dimension_numbers = #tpu.dot_dimension_numbers<[1], [0], [0], [1], [0, 0, 1, 1], [], []>} : vector<16x64xf32>, vector<64x64xf32>, vector<16x64xf32> -> vector<16x64xf32>
    %c0_98 = arith.constant 0 : index
    %c1_99 = arith.constant 1 : index
    %c0_100 = arith.constant 0 : index
    %c0_101 = arith.constant 0 : index
    %100 = vector.load %arg9[%c0_98, %c1_99, %c0_100, %c0_101] : memref<1x4x64x64xf32, #tpu.memory_space<vmem>>, vector<1x1x64x64xf32>
    %101 = vector.shape_cast %100 : vector<1x1x64x64xf32> to vector<64x64xf32>
    %cst_102 = arith.constant dense<0.000000e+00> : vector<16x64xf32>
    %102 = tpu.matmul %95, %101, %cst_102 {dimension_numbers = #tpu.dot_dimension_numbers<[1], [0], [0], [1], [0, 0, 1, 1], [], []>} : vector<16x64xf32>, vector<64x64xf32>, vector<16x64xf32> -> vector<16x64xf32>
    %c0_103 = arith.constant 0 : index
    %c2_104 = arith.constant 2 : index
    %c0_105 = arith.constant 0 : index
    %c0_106 = arith.constant 0 : index
    %103 = vector.load %arg9[%c0_103, %c2_104, %c0_105, %c0_106] : memref<1x4x64x64xf32, #tpu.memory_space<vmem>>, vector<1x1x64x64xf32>
    %104 = vector.shape_cast %103 : vector<1x1x64x64xf32> to vector<64x64xf32>
    %cst_107 = arith.constant dense<0.000000e+00> : vector<16x64xf32>
    %105 = tpu.matmul %95, %104, %cst_107 {dimension_numbers = #tpu.dot_dimension_numbers<[1], [0], [0], [1], [0, 0, 1, 1], [], []>} : vector<16x64xf32>, vector<64x64xf32>, vector<16x64xf32> -> vector<16x64xf32>
    %c0_108 = arith.constant 0 : index
    %c3_109 = arith.constant 3 : index
    %c0_110 = arith.constant 0 : index
    %c0_111 = arith.constant 0 : index
    %106 = vector.load %arg9[%c0_108, %c3_109, %c0_110, %c0_111] : memref<1x4x64x64xf32, #tpu.memory_space<vmem>>, vector<1x1x64x64xf32>
    %107 = vector.shape_cast %106 : vector<1x1x64x64xf32> to vector<64x64xf32>
    %cst_112 = arith.constant dense<0.000000e+00> : vector<16x64xf32>
    %108 = tpu.matmul %95, %107, %cst_112 {dimension_numbers = #tpu.dot_dimension_numbers<[1], [0], [0], [1], [0, 0, 1, 1], [], []>} : vector<16x64xf32>, vector<64x64xf32>, vector<16x64xf32> -> vector<16x64xf32>
    %109 = tpu.concatenate %99, %102, %105, %108 in 0 : vector<16x64xf32>, vector<16x64xf32>, vector<16x64xf32>, vector<16x64xf32> -> vector<64x64xf32>
    %c0_113 = arith.constant 0 : index
    %c0_114 = arith.constant 0 : index
    %c0_115 = arith.constant 0 : index
    %c0_116 = arith.constant 0 : index
    %110 = vector.load %arg10[%c0_113, %c0_114, %c0_115, %c0_116] : memref<1x4x64x64xf32, #tpu.memory_space<vmem>>, vector<1x1x64x64xf32>
    %111 = vector.shape_cast %110 : vector<1x1x64x64xf32> to vector<64x64xf32>
    %cst_117 = arith.constant dense<0.000000e+00> : vector<16x64xf32>
    %112 = tpu.matmul %4, %111, %cst_117 {dimension_numbers = #tpu.dot_dimension_numbers<[1], [0], [0], [1], [0, 0, 1, 1], [], []>} : vector<16x64xf32>, vector<64x64xf32>, vector<16x64xf32> -> vector<16x64xf32>
    %c0_118 = arith.constant 0 : index
    %c1_119 = arith.constant 1 : index
    %c0_120 = arith.constant 0 : index
    %c0_121 = arith.constant 0 : index
    %113 = vector.load %arg10[%c0_118, %c1_119, %c0_120, %c0_121] : memref<1x4x64x64xf32, #tpu.memory_space<vmem>>, vector<1x1x64x64xf32>
    %114 = vector.shape_cast %113 : vector<1x1x64x64xf32> to vector<64x64xf32>
    %cst_122 = arith.constant dense<0.000000e+00> : vector<16x64xf32>
    %115 = tpu.matmul %4, %114, %cst_122 {dimension_numbers = #tpu.dot_dimension_numbers<[1], [0], [0], [1], [0, 0, 1, 1], [], []>} : vector<16x64xf32>, vector<64x64xf32>, vector<16x64xf32> -> vector<16x64xf32>
    %c0_123 = arith.constant 0 : index
    %c2_124 = arith.constant 2 : index
    %c0_125 = arith.constant 0 : index
    %c0_126 = arith.constant 0 : index
    %116 = vector.load %arg10[%c0_123, %c2_124, %c0_125, %c0_126] : memref<1x4x64x64xf32, #tpu.memory_space<vmem>>, vector<1x1x64x64xf32>
    %117 = vector.shape_cast %116 : vector<1x1x64x64xf32> to vector<64x64xf32>
    %cst_127 = arith.constant dense<0.000000e+00> : vector<16x64xf32>
    %118 = tpu.matmul %4, %117, %cst_127 {dimension_numbers = #tpu.dot_dimension_numbers<[1], [0], [0], [1], [0, 0, 1, 1], [], []>} : vector<16x64xf32>, vector<64x64xf32>, vector<16x64xf32> -> vector<16x64xf32>
    %c0_128 = arith.constant 0 : index
    %c3_129 = arith.constant 3 : index
    %c0_130 = arith.constant 0 : index
    %c0_131 = arith.constant 0 : index
    %119 = vector.load %arg10[%c0_128, %c3_129, %c0_130, %c0_131] : memref<1x4x64x64xf32, #tpu.memory_space<vmem>>, vector<1x1x64x64xf32>
    %120 = vector.shape_cast %119 : vector<1x1x64x64xf32> to vector<64x64xf32>
    %cst_132 = arith.constant dense<0.000000e+00> : vector<16x64xf32>
    %121 = tpu.matmul %4, %120, %cst_132 {dimension_numbers = #tpu.dot_dimension_numbers<[1], [0], [0], [1], [0, 0, 1, 1], [], []>} : vector<16x64xf32>, vector<64x64xf32>, vector<16x64xf32> -> vector<16x64xf32>
    %122 = tpu.concatenate %112, %115, %118, %121 in 0 : vector<16x64xf32>, vector<16x64xf32>, vector<16x64xf32>, vector<16x64xf32> -> vector<64x64xf32>
    %c0_133 = arith.constant 0 : index
    %c0_134 = arith.constant 0 : index
    %c0_135 = arith.constant 0 : index
    %c0_136 = arith.constant 0 : index
    %123 = vector.load %arg11[%c0_133, %c0_134, %c0_135, %c0_136] : memref<1x4x64x64xf32, #tpu.memory_space<vmem>>, vector<1x1x64x64xf32>
    %124 = vector.shape_cast %123 : vector<1x1x64x64xf32> to vector<64x64xf32>
    %cst_137 = arith.constant dense<0.000000e+00> : vector<16x64xf32>
    %125 = tpu.matmul %4, %124, %cst_137 {dimension_numbers = #tpu.dot_dimension_numbers<[1], [0], [0], [1], [0, 0, 1, 1], [], []>} : vector<16x64xf32>, vector<64x64xf32>, vector<16x64xf32> -> vector<16x64xf32>
    %c0_138 = arith.constant 0 : index
    %c1_139 = arith.constant 1 : index
    %c0_140 = arith.constant 0 : index
    %c0_141 = arith.constant 0 : index
    %126 = vector.load %arg11[%c0_138, %c1_139, %c0_140, %c0_141] : memref<1x4x64x64xf32, #tpu.memory_space<vmem>>, vector<1x1x64x64xf32>
    %127 = vector.shape_cast %126 : vector<1x1x64x64xf32> to vector<64x64xf32>
    %cst_142 = arith.constant dense<0.000000e+00> : vector<16x64xf32>
    %128 = tpu.matmul %4, %127, %cst_142 {dimension_numbers = #tpu.dot_dimension_numbers<[1], [0], [0], [1], [0, 0, 1, 1], [], []>} : vector<16x64xf32>, vector<64x64xf32>, vector<16x64xf32> -> vector<16x64xf32>
    %c0_143 = arith.constant 0 : index
    %c2_144 = arith.constant 2 : index
    %c0_145 = arith.constant 0 : index
    %c0_146 = arith.constant 0 : index
    %129 = vector.load %arg11[%c0_143, %c2_144, %c0_145, %c0_146] : memref<1x4x64x64xf32, #tpu.memory_space<vmem>>, vector<1x1x64x64xf32>
    %130 = vector.shape_cast %129 : vector<1x1x64x64xf32> to vector<64x64xf32>
    %cst_147 = arith.constant dense<0.000000e+00> : vector<16x64xf32>
    %131 = tpu.matmul %4, %130, %cst_147 {dimension_numbers = #tpu.dot_dimension_numbers<[1], [0], [0], [1], [0, 0, 1, 1], [], []>} : vector<16x64xf32>, vector<64x64xf32>, vector<16x64xf32> -> vector<16x64xf32>
    %c0_148 = arith.constant 0 : index
    %c3_149 = arith.constant 3 : index
    %c0_150 = arith.constant 0 : index
    %c0_151 = arith.constant 0 : index
    %132 = vector.load %arg11[%c0_148, %c3_149, %c0_150, %c0_151] : memref<1x4x64x64xf32, #tpu.memory_space<vmem>>, vector<1x1x64x64xf32>
    %133 = vector.shape_cast %132 : vector<1x1x64x64xf32> to vector<64x64xf32>
    %cst_152 = arith.constant dense<0.000000e+00> : vector<16x64xf32>
    %134 = tpu.matmul %4, %133, %cst_152 {dimension_numbers = #tpu.dot_dimension_numbers<[1], [0], [0], [1], [0, 0, 1, 1], [], []>} : vector<16x64xf32>, vector<64x64xf32>, vector<16x64xf32> -> vector<16x64xf32>
    %135 = tpu.concatenate %125, %128, %131, %134 in 0 : vector<16x64xf32>, vector<16x64xf32>, vector<16x64xf32>, vector<16x64xf32> -> vector<64x64xf32>
    %cst_153 = arith.constant dense<0.000000e+00> : vector<64x64xf32>
    %136 = tpu.matmul %109, %122, %cst_153 {dimension_numbers = #tpu.dot_dimension_numbers<[1], [1], [0], [0], [0, 0, 1, 0], [], []>} : vector<64x64xf32>, vector<64x64xf32>, vector<64x64xf32> -> vector<64x64xf32>
    %137 = arith.addf %136, %96 : vector<64x64xf32>
    %cst_154 = arith.constant dense<0xFF800000> : vector<64xf32>
    %138 = vector.multi_reduction <maximumf>, %137, %cst_154 [1] : vector<64x64xf32> to vector<64xf32>
    %139 = vector.shape_cast %138 : vector<64xf32> to vector<64x1xf32>
    %140 = vector.broadcast %139 : vector<64x1xf32> to vector<64x64xf32>
    %141 = arith.subf %137, %140 : vector<64x64xf32>
    %142 = math.exp %141 : vector<64x64xf32>
    %cst_155 = arith.constant dense<0.000000e+00> : vector<64xf32>
    %143 = vector.multi_reduction <add>, %142, %cst_155 [1] : vector<64x64xf32> to vector<64xf32>
    %144 = vector.shape_cast %143 : vector<64xf32> to vector<64x1xf32>
    %145 = tpu.reciprocal %144 : vector<64x1xf32> -> vector<64x1xf32>
    %146 = vector.broadcast %145 : vector<64x1xf32> to vector<64x64xf32>
    %147 = arith.mulf %142, %146 : vector<64x64xf32>
    %cst_156 = arith.constant dense<0.000000e+00> : vector<64x64xf32>
    %148 = tpu.matmul %147, %135, %cst_156 {dimension_numbers = #tpu.dot_dimension_numbers<[1], [0], [0], [1], [0, 0, 1, 1], [], []>} : vector<64x64xf32>, vector<64x64xf32>, vector<64x64xf32> -> vector<64x64xf32>
    %149 = vector.extract_strided_slice %148 {offsets = [0, 0], sizes = [16, 64], strides = [1, 1]} : vector<64x64xf32> to vector<16x64xf32>
    %c0_157 = arith.constant 0 : index
    %c0_158 = arith.constant 0 : index
    %c0_159 = arith.constant 0 : index
    %c0_160 = arith.constant 0 : index
    %150 = vector.load %arg12[%c0_157, %c0_158, %c0_159, %c0_160] : memref<1x4x64x64xf32, #tpu.memory_space<vmem>>, vector<1x1x64x64xf32>
    %151 = vector.shape_cast %150 : vector<1x1x64x64xf32> to vector<64x64xf32>
    %cst_161 = arith.constant dense<0.000000e+00> : vector<16x64xf32>
    %152 = tpu.matmul %149, %151, %cst_161 {dimension_numbers = #tpu.dot_dimension_numbers<[1], [0], [0], [1], [0, 0, 1, 1], [], []>} : vector<16x64xf32>, vector<64x64xf32>, vector<16x64xf32> -> vector<16x64xf32>
    %153 = vector.extract_strided_slice %148 {offsets = [16, 0], sizes = [16, 64], strides = [1, 1]} : vector<64x64xf32> to vector<16x64xf32>
    %c0_162 = arith.constant 0 : index
    %c1_163 = arith.constant 1 : index
    %c0_164 = arith.constant 0 : index
    %c0_165 = arith.constant 0 : index
    %154 = vector.load %arg12[%c0_162, %c1_163, %c0_164, %c0_165] : memref<1x4x64x64xf32, #tpu.memory_space<vmem>>, vector<1x1x64x64xf32>
    %155 = vector.shape_cast %154 : vector<1x1x64x64xf32> to vector<64x64xf32>
    %cst_166 = arith.constant dense<0.000000e+00> : vector<16x64xf32>
    %156 = tpu.matmul %153, %155, %cst_166 {dimension_numbers = #tpu.dot_dimension_numbers<[1], [0], [0], [1], [0, 0, 1, 1], [], []>} : vector<16x64xf32>, vector<64x64xf32>, vector<16x64xf32> -> vector<16x64xf32>
    %157 = arith.addf %152, %156 : vector<16x64xf32>
    %158 = vector.extract_strided_slice %148 {offsets = [32, 0], sizes = [16, 64], strides = [1, 1]} : vector<64x64xf32> to vector<16x64xf32>
    %c0_167 = arith.constant 0 : index
    %c2_168 = arith.constant 2 : index
    %c0_169 = arith.constant 0 : index
    %c0_170 = arith.constant 0 : index
    %159 = vector.load %arg12[%c0_167, %c2_168, %c0_169, %c0_170] : memref<1x4x64x64xf32, #tpu.memory_space<vmem>>, vector<1x1x64x64xf32>
    %160 = vector.shape_cast %159 : vector<1x1x64x64xf32> to vector<64x64xf32>
    %cst_171 = arith.constant dense<0.000000e+00> : vector<16x64xf32>
    %161 = tpu.matmul %158, %160, %cst_171 {dimension_numbers = #tpu.dot_dimension_numbers<[1], [0], [0], [1], [0, 0, 1, 1], [], []>} : vector<16x64xf32>, vector<64x64xf32>, vector<16x64xf32> -> vector<16x64xf32>
    %162 = arith.addf %157, %161 : vector<16x64xf32>
    %163 = vector.extract_strided_slice %148 {offsets = [48, 0], sizes = [16, 64], strides = [1, 1]} : vector<64x64xf32> to vector<16x64xf32>
    %c0_172 = arith.constant 0 : index
    %c3_173 = arith.constant 3 : index
    %c0_174 = arith.constant 0 : index
    %c0_175 = arith.constant 0 : index
    %164 = vector.load %arg12[%c0_172, %c3_173, %c0_174, %c0_175] : memref<1x4x64x64xf32, #tpu.memory_space<vmem>>, vector<1x1x64x64xf32>
    %165 = vector.shape_cast %164 : vector<1x1x64x64xf32> to vector<64x64xf32>
    %cst_176 = arith.constant dense<0.000000e+00> : vector<16x64xf32>
    %166 = tpu.matmul %163, %165, %cst_176 {dimension_numbers = #tpu.dot_dimension_numbers<[1], [0], [0], [1], [0, 0, 1, 1], [], []>} : vector<16x64xf32>, vector<64x64xf32>, vector<16x64xf32> -> vector<16x64xf32>
    %167 = arith.addf %162, %166 : vector<16x64xf32>
    %168 = arith.addf %167, %95 : vector<16x64xf32>
    %cst_177 = arith.constant dense<0.000000e+00> : vector<16xf32>
    %169 = vector.multi_reduction <add>, %168, %cst_177 [1] : vector<16x64xf32> to vector<16xf32>
    %170 = vector.shape_cast %169 : vector<16xf32> to vector<16x1xf32>
    %cst_178 = arith.constant 6.400000e+01 : f32
    %171 = vector.broadcast %cst_178 : f32 to vector<16x1xf32>
    %172 = arith.divf %170, %171 : vector<16x1xf32>
    %173 = arith.mulf %168, %168 : vector<16x64xf32>
    %cst_179 = arith.constant dense<0.000000e+00> : vector<16xf32>
    %174 = vector.multi_reduction <add>, %173, %cst_179 [1] : vector<16x64xf32> to vector<16xf32>
    %175 = vector.shape_cast %174 : vector<16xf32> to vector<16x1xf32>
    %cst_180 = arith.constant 6.400000e+01 : f32
    %176 = vector.broadcast %cst_180 : f32 to vector<16x1xf32>
    %177 = arith.divf %175, %176 : vector<16x1xf32>
    %178 = arith.mulf %172, %172 : vector<16x1xf32>
    %179 = arith.subf %177, %178 : vector<16x1xf32>
    %180 = vector.broadcast %172 : vector<16x1xf32> to vector<16x64xf32>
    %181 = arith.subf %168, %180 : vector<16x64xf32>
    %cst_181 = arith.constant 9.99999974E-6 : f32
    %182 = vector.broadcast %cst_181 : f32 to vector<16x1xf32>
    %183 = arith.addf %179, %182 : vector<16x1xf32>
    %184 = math.rsqrt %183 : vector<16x1xf32>
    %185 = vector.broadcast %184 : vector<16x1xf32> to vector<16x64xf32>
    %186 = arith.mulf %181, %185 : vector<16x64xf32>
    %c0_182 = arith.constant 0 : index
    %c0_183 = arith.constant 0 : index
    %c0_184 = arith.constant 0 : index
    %187 = vector.load %arg13[%c0_182, %c0_183, %c0_184] : memref<1x64x64xf32, #tpu.memory_space<vmem>>, vector<1x64x64xf32>
    %188 = vector.shape_cast %187 : vector<1x64x64xf32> to vector<64x64xf32>
    %cst_185 = arith.constant dense<0.000000e+00> : vector<16x64xf32>
    %189 = tpu.matmul %186, %188, %cst_185 {dimension_numbers = #tpu.dot_dimension_numbers<[1], [0], [0], [1], [0, 0, 1, 1], [], []>} : vector<16x64xf32>, vector<64x64xf32>, vector<16x64xf32> -> vector<16x64xf32>
    %cst_186 = arith.constant 0.000000e+00 : f32
    %190 = vector.broadcast %cst_186 : f32 to vector<16x64xf32>
    %191 = arith.maximumf %189, %190 : vector<16x64xf32>
    %c0_187 = arith.constant 0 : index
    %c0_188 = arith.constant 0 : index
    %c0_189 = arith.constant 0 : index
    %192 = vector.load %arg14[%c0_187, %c0_188, %c0_189] : memref<1x64x64xf32, #tpu.memory_space<vmem>>, vector<1x64x64xf32>
    %193 = vector.shape_cast %192 : vector<1x64x64xf32> to vector<64x64xf32>
    %cst_190 = arith.constant dense<0.000000e+00> : vector<16x64xf32>
    %194 = tpu.matmul %191, %193, %cst_190 {dimension_numbers = #tpu.dot_dimension_numbers<[1], [0], [0], [1], [0, 0, 1, 1], [], []>} : vector<16x64xf32>, vector<64x64xf32>, vector<16x64xf32> -> vector<16x64xf32>
    %195 = arith.addf %194, %186 : vector<16x64xf32>
    %cst_191 = arith.constant dense<0.000000e+00> : vector<16xf32>
    %196 = vector.multi_reduction <add>, %195, %cst_191 [1] : vector<16x64xf32> to vector<16xf32>
    %197 = vector.shape_cast %196 : vector<16xf32> to vector<16x1xf32>
    %cst_192 = arith.constant 6.400000e+01 : f32
    %198 = vector.broadcast %cst_192 : f32 to vector<16x1xf32>
    %199 = arith.divf %197, %198 : vector<16x1xf32>
    %200 = arith.mulf %195, %195 : vector<16x64xf32>
    %cst_193 = arith.constant dense<0.000000e+00> : vector<16xf32>
    %201 = vector.multi_reduction <add>, %200, %cst_193 [1] : vector<16x64xf32> to vector<16xf32>
    %202 = vector.shape_cast %201 : vector<16xf32> to vector<16x1xf32>
    %cst_194 = arith.constant 6.400000e+01 : f32
    %203 = vector.broadcast %cst_194 : f32 to vector<16x1xf32>
    %204 = arith.divf %202, %203 : vector<16x1xf32>
    %205 = arith.mulf %199, %199 : vector<16x1xf32>
    %206 = arith.subf %204, %205 : vector<16x1xf32>
    %207 = vector.broadcast %199 : vector<16x1xf32> to vector<16x64xf32>
    %208 = arith.subf %195, %207 : vector<16x64xf32>
    %cst_195 = arith.constant 9.99999974E-6 : f32
    %209 = vector.broadcast %cst_195 : f32 to vector<16x1xf32>
    %210 = arith.addf %206, %209 : vector<16x1xf32>
    %211 = math.rsqrt %210 : vector<16x1xf32>
    %212 = vector.broadcast %211 : vector<16x1xf32> to vector<16x64xf32>
    %213 = arith.mulf %208, %212 : vector<16x64xf32>
    %c0_196 = arith.constant 0 : index
    %c0_197 = arith.constant 0 : index
    %214 = vector.load %arg17[%c0_196, %c0_197] : memref<16x64xf32, #tpu.memory_space<vmem>>, vector<16x64xf32>
    tpu.vector_store %arg17[%c0_196, %c0_197], %213 {strides = array<i32>} : memref<16x64xf32, #tpu.memory_space<vmem>>, vector<16x64xf32>,
    %c0_198 = arith.constant 0 : index
    %c0_199 = arith.constant 0 : index
    %c0_200 = arith.constant 0 : index
    %215 = vector.load %arg16[%c0_198, %c0_199, %c0_200] : memref<1x64x128xf32, #tpu.memory_space<vmem>>, vector<1x64x64xf32>
    %216 = vector.shape_cast %215 : vector<1x64x64xf32> to vector<64x64xf32>
    %217 = vector.shape_cast %56 : vector<64x64xf32> to vector<1x64x64xf32>
    tpu.vector_store %arg16[%c0_198, %c0_199, %c0_200], %217 {strides = array<i32>} : memref<1x64x128xf32, #tpu.memory_space<vmem>>, vector<1x64x64xf32>,
    %c0_201 = arith.constant 0 : index
    %c0_202 = arith.constant 0 : index
    %c64 = arith.constant 64 : index
    %218 = vector.load %arg16[%c0_201, %c0_202, %c64] : memref<1x64x128xf32, #tpu.memory_space<vmem>>, vector<1x64x64xf32>
    %219 = vector.shape_cast %218 : vector<1x64x64xf32> to vector<64x64xf32>
    %220 = vector.shape_cast %147 : vector<64x64xf32> to vector<1x64x64xf32>
    tpu.vector_store %arg16[%c0_201, %c0_202, %c64], %220 {strides = array<i32>} : memref<1x64x128xf32, #tpu.memory_space<vmem>>, vector<1x64x64xf32>,
    %c1_i32 = arith.constant 1 : i32
    %221 = arith.cmpi eq, %arg0, %c1_i32 : i32
    %222 = arith.extui %221 : i1 to i32
    %c0_i32_203 = arith.constant 0 : i32
    %223 = arith.cmpi ne, %222, %c0_i32_203 : i32
    scf.if %223 {
      %c0_204 = arith.constant 0 : index
      %c0_205 = arith.constant 0 : index
      %224 = vector.load %arg15[%c0_204, %c0_205] : memref<16x64xf32, #tpu.memory_space<vmem>>, vector<16x64xf32>
      tpu.vector_store %arg15[%c0_204, %c0_205], %213 {strides = array<i32>} : memref<16x64xf32, #tpu.memory_space<vmem>>, vector<16x64xf32>,
    } else {
    }
    return
  }
  func.func @transform_0(%arg0: i32) -> (i32, i32) {
    %c0_i32 = arith.constant 0 : i32
    %c0_i32_0 = arith.constant 0 : i32
    %c0_i32_1 = arith.constant 0 : i32
    return %c0_i32, %c0_i32_0 : i32, i32
  }
  func.func @transform_1(%arg0: i32) -> (i32, i32) {
    %c0_i32 = arith.constant 0 : i32
    %c0_i32_0 = arith.constant 0 : i32
    %c0_i32_1 = arith.constant 0 : i32
    return %c0_i32, %c0_i32_0 : i32, i32
  }
  func.func @transform_2(%arg0: i32) -> (i32, i32) {
    %c0_i32 = arith.constant 0 : i32
    %c0_i32_0 = arith.constant 0 : i32
    %c0_i32_1 = arith.constant 0 : i32
    return %c0_i32, %c0_i32_0 : i32, i32
  }
  func.func @transform_3(%arg0: i32) -> (i32, i32) {
    %c0_i32 = arith.constant 0 : i32
    %c0_i32_0 = arith.constant 0 : i32
    %c0_i32_1 = arith.constant 0 : i32
    return %c0_i32, %c0_i32_0 : i32, i32
  }
  func.func @transform_4(%arg0: i32) -> (i32, i32, i32, i32) {
    %c0_i32 = arith.constant 0 : i32
    %c0_i32_0 = arith.constant 0 : i32
    %c0_i32_1 = arith.constant 0 : i32
    %c0_i32_2 = arith.constant 0 : i32
    return %arg0, %c0_i32, %c0_i32_0, %c0_i32_1 : i32, i32, i32, i32
  }
  func.func @transform_5(%arg0: i32) -> (i32, i32, i32, i32) {
    %c0_i32 = arith.constant 0 : i32
    %c0_i32_0 = arith.constant 0 : i32
    %c0_i32_1 = arith.constant 0 : i32
    %c0_i32_2 = arith.constant 0 : i32
    return %arg0, %c0_i32, %c0_i32_0, %c0_i32_1 : i32, i32, i32, i32
  }
  func.func @transform_6(%arg0: i32) -> (i32, i32, i32, i32) {
    %c0_i32 = arith.constant 0 : i32
    %c0_i32_0 = arith.constant 0 : i32
    %c0_i32_1 = arith.constant 0 : i32
    %c0_i32_2 = arith.constant 0 : i32
    return %arg0, %c0_i32, %c0_i32_0, %c0_i32_1 : i32, i32, i32, i32
  }
  func.func @transform_7(%arg0: i32) -> (i32, i32, i32, i32) {
    %c0_i32 = arith.constant 0 : i32
    %c0_i32_0 = arith.constant 0 : i32
    %c0_i32_1 = arith.constant 0 : i32
    %c0_i32_2 = arith.constant 0 : i32
    return %arg0, %c0_i32, %c0_i32_0, %c0_i32_1 : i32, i32, i32, i32
  }
  func.func @transform_8(%arg0: i32) -> (i32, i32, i32, i32) {
    %c0_i32 = arith.constant 0 : i32
    %c0_i32_0 = arith.constant 0 : i32
    %c0_i32_1 = arith.constant 0 : i32
    %c0_i32_2 = arith.constant 0 : i32
    return %arg0, %c0_i32, %c0_i32_0, %c0_i32_1 : i32, i32, i32, i32
  }
  func.func @transform_9(%arg0: i32) -> (i32, i32, i32, i32) {
    %c0_i32 = arith.constant 0 : i32
    %c0_i32_0 = arith.constant 0 : i32
    %c0_i32_1 = arith.constant 0 : i32
    %c0_i32_2 = arith.constant 0 : i32
    return %arg0, %c0_i32, %c0_i32_0, %c0_i32_1 : i32, i32, i32, i32
  }
  func.func @transform_10(%arg0: i32) -> (i32, i32, i32, i32) {
    %c0_i32 = arith.constant 0 : i32
    %c0_i32_0 = arith.constant 0 : i32
    %c0_i32_1 = arith.constant 0 : i32
    %c0_i32_2 = arith.constant 0 : i32
    return %arg0, %c0_i32, %c0_i32_0, %c0_i32_1 : i32, i32, i32, i32
  }
  func.func @transform_11(%arg0: i32) -> (i32, i32, i32, i32) {
    %c0_i32 = arith.constant 0 : i32
    %c0_i32_0 = arith.constant 0 : i32
    %c0_i32_1 = arith.constant 0 : i32
    %c0_i32_2 = arith.constant 0 : i32
    return %arg0, %c0_i32, %c0_i32_0, %c0_i32_1 : i32, i32, i32, i32
  }
  func.func @transform_12(%arg0: i32) -> (i32, i32, i32) {
    %c0_i32 = arith.constant 0 : i32
    %c0_i32_0 = arith.constant 0 : i32
    %c0_i32_1 = arith.constant 0 : i32
    return %arg0, %c0_i32, %c0_i32_0 : i32, i32, i32
  }
  func.func @transform_13(%arg0: i32) -> (i32, i32, i32) {
    %c0_i32 = arith.constant 0 : i32
    %c0_i32_0 = arith.constant 0 : i32
    %c0_i32_1 = arith.constant 0 : i32
    return %arg0, %c0_i32, %c0_i32_0 : i32, i32, i32
  }
  func.func @transform_14(%arg0: i32) -> (i32, i32) {
    %c0_i32 = arith.constant 0 : i32
    %c0_i32_0 = arith.constant 0 : i32
    %c0_i32_1 = arith.constant 0 : i32
    return %c0_i32, %c0_i32_0 : i32, i32
  }
  func.func @transform_15(%arg0: i32) -> (i32, i32, i32) {
    %c0_i32 = arith.constant 0 : i32
    %c0_i32_0 = arith.constant 0 : i32
    %c0_i32_1 = arith.constant 0 : i32
    return %arg0, %c0_i32, %c0_i32_0 : i32, i32, i32
  }
}

</mosaic_0001>

<llo_original>
// kernel: tpu_custom_call.1
$region0: #{tpu_custom_call.1}
  #allocation0 [shape = 'u32[]', space=smem, size = 0x4, offset = 0x4, fixed_abs, tag = 'smem constant byte address 0x4 - core index']
  #allocation1 [shape = 'u32[72,128]{1,0:T(1,128)}', space=vmem, size = 0x9000, scoped, tag = 'internal scratch']
  #allocation2 [shape = 'f32[16,64]{1,0:T(8,128)}', space=vmem, size = 0x2000, scoped, tag = 'scratch operand']
  %s0 = inlined_call_operand.hbm [shape: f32[16,64], index: 0, kind: input, shape index: {}]
  %s1 = inlined_call_operand.hbm [shape: f32[16,64], index: 1, kind: input, shape index: {}]
  %s2 = inlined_call_operand.hbm [shape: f32[64,64], index: 2, kind: input, shape index: {}]
  %s3 = inlined_call_operand.hbm [shape: f32[64,64], index: 3, kind: input, shape index: {}]
  %s4 = inlined_call_operand.hbm [shape: f32[2,4,64,64], index: 4, kind: input, shape index: {}]
  %s5 = inlined_call_operand.hbm [shape: f32[2,4,64,64], index: 5, kind: input, shape index: {}]
  %s6 = inlined_call_operand.hbm [shape: f32[2,4,64,64], index: 6, kind: input, shape index: {}]
  %s7 = inlined_call_operand.hbm [shape: f32[2,4,64,64], index: 7, kind: input, shape index: {}]
  %s8 = inlined_call_operand.hbm [shape: f32[2,4,64,64], index: 8, kind: input, shape index: {}]
  %s9 = inlined_call_operand.hbm [shape: f32[2,4,64,64], index: 9, kind: input, shape index: {}]
  %s10 = inlined_call_operand.hbm [shape: f32[2,4,64,64], index: 10, kind: input, shape index: {}]
  %s11 = inlined_call_operand.hbm [shape: f32[2,4,64,64], index: 11, kind: input, shape index: {}]
  %s12 = inlined_call_operand.hbm [shape: f32[2,64,64], index: 12, kind: input, shape index: {}]
  %s13 = inlined_call_operand.hbm [shape: f32[2,64,64], index: 13, kind: input, shape index: {}]
  %s14 = inlined_call_operand.hbm [shape: f32[16,64], index: 14, kind: output, shape index: {0}]
  %s15 = inlined_call_operand.hbm [shape: f32[2,64,128], index: 15, kind: output, shape index: {1}]
  %16 = xla_tuple %s14, %s15
  %s17 = sld [smem:[#allocation0]]
  $region161: #{tpu_custom_call.1} parent=0
    _
  %s19 = ssub.s32 1, %s17
  %s20 = scalar_select 0, %s19, %s17
  $region1: #{tpu_custom_call.1} parent=0
    #allocation3 [shape = 'u8[8192]{0}', space=vmem, size = 0x2000, scoped, tag = 'input window, operand 0, single buffered']
    #allocation4 [shape = 's32[2]{0}', space=sflag, size = 0x8, scoped, tag = 'scoped memory for tpu_custom_call.1']
    #allocation5 [shape = 's32[2]{0}', space=sflag, size = 0x8, scoped, tag = 'scoped memory for tpu_custom_call.1']
    #allocation6 [shape = 'u8[8192]{0}', space=vmem, size = 0x2000, scoped, tag = 'input window, operand 1, single buffered']
    #allocation7 [shape = 's32[1]{0}', space=sflag, size = 0x4, scoped, tag = 'scoped memory for tpu_custom_call.1']
    #allocation8 [shape = 'u8[32768]{0}', space=vmem, size = 0x8000, scoped, tag = 'input window, operand 2, single buffered']
    #allocation9 [shape = 'u8[32768]{0}', space=vmem, size = 0x8000, scoped, tag = 'input window, operand 3, single buffered']
    #allocation10 [shape = 's32[1]{0}', space=sflag, size = 0x4, scoped, tag = 'scoped memory for tpu_custom_call.1']
    #allocation11 [shape = 'u8[262144]{0}', space=vmem, size = 0x40000, scoped, tag = 'input window, operand 4']
    #allocation12 [shape = 'u8[262144]{0}', space=vmem, size = 0x40000, scoped, tag = 'input window, operand 5']
    #allocation13 [shape = 'u8[262144]{0}', space=vmem, size = 0x40000, scoped, tag = 'input window, operand 6']
    #allocation14 [shape = 'u8[262144]{0}', space=vmem, size = 0x40000, scoped, tag = 'input window, operand 7']
    #allocation15 [shape = 'u8[262144]{0}', space=vmem, size = 0x40000, scoped, tag = 'input window, operand 8']
    #allocation16 [shape = 'u8[262144]{0}', space=vmem, size = 0x40000, scoped, tag = 'input window, operand 9']
    #allocation17 [shape = 'u8[262144]{0}', space=vmem, size = 0x40000, scoped, tag = 'input window, operand 10']
    #allocation18 [shape = 'u8[262144]{0}', space=vmem, size = 0x40000, scoped, tag = 'input window, operand 11']
    #allocation19 [shape = 'u8[65536]{0}', space=vmem, size = 0x10000, scoped, tag = 'input window, operand 12']
    #allocation20 [shape = 'u8[65536]{0}', space=vmem, size = 0x10000, scoped, tag = 'input window, operand 13']
    #allocation21 [shape = 'u8[8192]{0}', space=vmem, size = 0x2000, scoped, tag = 'output window, operand 0, single buffered']
    #allocation22 [shape = 'u8[65536]{0}', space=vmem, size = 0x10000, scoped, tag = 'output window, operand 1']
    #allocation23 [shape = 's32[2]{0}', space=sflag, size = 0x8, scoped, tag = 'scoped memory for tpu_custom_call.1']
    %21 = vsyncpa [#allocation4], 0
    %22 = vsyncpa [#allocation7], 0
    %23 = vsyncpa [#allocation10], 0
    %24 = vsyncpa [#allocation5], 0
    %25 = vsyncpa [#allocation23], 0
    %s26 = scalar_lea.sflag [#allocation23], 1
    %27 = vsyncpa %s26, 0
    loop: start=0, step=1, limit=4
    $region2: #{tpu_custom_call.1} parent=1 // loop_pre_header
      _
    $region3: #{tpu_custom_call.1} parent=1 // loop_header
      %s29 = sphi 0, %s33
      %p30 = scmp.ge.s32.totalorder %s29, 4
      %s37 = sphi 0, %s37
      %s39 = sphi 0, %s37
      %s40 = sphi 0, %s39
      %s54 = sphi 0, %s40
      %s58 = sphi 0, %s58
      %s60 = sphi 0, %s58
      %s61 = sphi 0, %s60
      %s75 = sphi 0, %s61
      %s79 = sphi 0, %s79
      %s81 = sphi 0, %s79
      %s82 = sphi 0, %s81
      %s96 = sphi 0, %s82
      %s100 = sphi 0, %s100
      %s102 = sphi 0, %s100
      %s103 = sphi 0, %s102
      %s117 = sphi 0, %s103
      %s123 = sphi 0, %s125
      %s126 = sphi 0, %s123
      %s127 = sphi 0, %s126
      %s143 = sphi 0, %s127
      %s149 = sphi 0, %s151
      %s152 = sphi 0, %s149
      %s153 = sphi 0, %s152
      %s169 = sphi 0, %s153
      %s175 = sphi 0, %s177
      %s178 = sphi 0, %s175
      %s179 = sphi 0, %s178
      %s195 = sphi 0, %s179
      %s201 = sphi 0, %s203
      %s204 = sphi 0, %s201
      %s205 = sphi 0, %s204
      %s221 = sphi 0, %s205
      %s227 = sphi 0, %s229
      %s230 = sphi 0, %s227
      %s231 = sphi 0, %s230
      %s247 = sphi 0, %s231
      %s253 = sphi 0, %s255
      %s256 = sphi 0, %s253
      %s257 = sphi 0, %s256
      %s273 = sphi 0, %s257
      %s279 = sphi 0, %s281
      %s282 = sphi 0, %s279
      %s283 = sphi 0, %s282
      %s299 = sphi 0, %s283
      %s305 = sphi 0, %s307
      %s308 = sphi 0, %s305
      %s309 = sphi 0, %s308
      %s325 = sphi 0, %s309
      %s331 = sphi 0, %s333
      %s334 = sphi 0, %s331
      %s335 = sphi 0, %s334
      %s351 = sphi 0, %s335
      %s357 = sphi 0, %s359
      %s360 = sphi 0, %s357
      %s361 = sphi 0, %s360
      %s377 = sphi 0, %s361
      %s381 = sphi 0, %s381
      %s383 = sphi 0, %s381
      %s384 = sphi 0, %s383
      %s398 = sphi 0, %s384
      %s404 = sphi 0, %s406
      %s407 = sphi 0, %s404
      %s408 = sphi 0, %s407
      %s424 = sphi 0, %s408
    $region4: #{tpu_custom_call.1} parent=1 // loop_header_branch
      %32 = sbr.rel (%p30) target = $region8
    $region5: #{tpu_custom_call.1} parent=1 // loop_body
      %s34 = ssub.s32 %s29, 1
      %s35 = ssub.s32 %s29, 2
      %s36 = sadd.s32 %s29, 1
      %s38 = sadd.s32 %s37, 1
      %p41 = scmp.eq.s32.totalorder %s29, 1
      %p42 = scmp.ne.s32.totalorder %s37, %s39
      %p43 = scmp.eq.s32.totalorder %s29, 0
      %p44 = por %p42, %p43
      %p45 = scmp.ne.s32.totalorder %s37, %s39
      %p46 = scmp.eq.s32.totalorder %s34, 1
      %p47 = por %p45, %p46
      %p48 = scmp.ne.s32.totalorder %s39, %s40
      %p49 = scmp.eq.s32.totalorder %s34, 0
      %p50 = por %p48, %p49
      %p51 = scmp.ne.s32.totalorder %s39, %s40
      %p52 = scmp.eq.s32.totalorder %s35, 1
      %p53 = por %p51, %p52
      %p55 = scmp.ne.s32.totalorder %s40, %s54
      %p56 = scmp.eq.s32.totalorder %s35, 0
      %p57 = por %p55, %p56
      %s59 = sadd.s32 %s58, 1
      %p62 = scmp.eq.s32.totalorder %s29, 1
      %p63 = scmp.ne.s32.totalorder %s58, %s60
      %p64 = scmp.eq.s32.totalorder %s29, 0
      %p65 = por %p63, %p64
      %p66 = scmp.ne.s32.totalorder %s58, %s60
      %p67 = scmp.eq.s32.totalorder %s34, 1
      %p68 = por %p66, %p67
      %p69 = scmp.ne.s32.totalorder %s60, %s61
      %p70 = scmp.eq.s32.totalorder %s34, 0
      %p71 = por %p69, %p70
      %p72 = scmp.ne.s32.totalorder %s60, %s61
      %p73 = scmp.eq.s32.totalorder %s35, 1
      %p74 = por %p72, %p73
      %p76 = scmp.ne.s32.totalorder %s61, %s75
      %p77 = scmp.eq.s32.totalorder %s35, 0
      %p78 = por %p76, %p77
      %s80 = sadd.s32 %s79, 1
      %p83 = scmp.eq.s32.totalorder %s29, 1
      %p84 = scmp.ne.s32.totalorder %s79, %s81
      %p85 = scmp.eq.s32.totalorder %s29, 0
      %p86 = por %p84, %p85
      %p87 = scmp.ne.s32.totalorder %s79, %s81
      %p88 = scmp.eq.s32.totalorder %s34, 1
      %p89 = por %p87, %p88
      %p90 = scmp.ne.s32.totalorder %s81, %s82
      %p91 = scmp.eq.s32.totalorder %s34, 0
      %p92 = por %p90, %p91
      %p93 = scmp.ne.s32.totalorder %s81, %s82
      %p94 = scmp.eq.s32.totalorder %s35, 1
      %p95 = por %p93, %p94
      %p97 = scmp.ne.s32.totalorder %s82, %s96
      %p98 = scmp.eq.s32.totalorder %s35, 0
      %p99 = por %p97, %p98
      %s101 = sadd.s32 %s100, 1
      %p104 = scmp.eq.s32.totalorder %s29, 1
      %p105 = scmp.ne.s32.totalorder %s100, %s102
      %p106 = scmp.eq.s32.totalorder %s29, 0
      %p107 = por %p105, %p106
      %p108 = scmp.ne.s32.totalorder %s100, %s102
      %p109 = scmp.eq.s32.totalorder %s34, 1
      %p110 = por %p108, %p109
      %p111 = scmp.ne.s32.totalorder %s102, %s103
      %p112 = scmp.eq.s32.totalorder %s34, 0
      %p113 = por %p111, %p112
      %p114 = scmp.ne.s32.totalorder %s102, %s103
      %p115 = scmp.eq.s32.totalorder %s35, 1
      %p116 = por %p114, %p115
      %p118 = scmp.ne.s32.totalorder %s103, %s117
      %p119 = scmp.eq.s32.totalorder %s35, 0
      %p120 = por %p118, %p119
      %s121 = ssub.s32 %s29, %s36
      %p122 = scmp.eq.s32.totalorder %s121, 0
      %s124 = sadd.s32 %s123, 1
      %s125 = scalar_select %p122, %s123, %s124
      %p128 = pneg %p122
      %p129 = scmp.eq.s32.totalorder %s29, 1
      %p130 = por %p128, %p129
      %p131 = scmp.ne.s32.totalorder %s123, %s126
      %p132 = scmp.eq.s32.totalorder %s29, 0
      %p133 = por %p131, %p132
      %p134 = scmp.ne.s32.totalorder %s123, %s126
      %p135 = scmp.eq.s32.totalorder %s34, 1
      %p136 = por %p134, %p135
      %p137 = scmp.ne.s32.totalorder %s126, %s127
      %p138 = scmp.eq.s32.totalorder %s34, 0
      %p139 = por %p137, %p138
      %p140 = scmp.ne.s32.totalorder %s126, %s127
      %p141 = scmp.eq.s32.totalorder %s35, 1
      %p142 = por %p140, %p141
      %p144 = scmp.ne.s32.totalorder %s127, %s143
      %p145 = scmp.eq.s32.totalorder %s35, 0
      %p146 = por %p144, %p145
      %s147 = ssub.s32 %s29, %s36
      %p148 = scmp.eq.s32.totalorder %s147, 0
      %s150 = sadd.s32 %s149, 1
      %s151 = scalar_select %p148, %s149, %s150
      %p154 = pneg %p148
      %p155 = scmp.eq.s32.totalorder %s29, 1
      %p156 = por %p154, %p155
      %p157 = scmp.ne.s32.totalorder %s149, %s152
      %p158 = scmp.eq.s32.totalorder %s29, 0
      %p159 = por %p157, %p158
      %p160 = scmp.ne.s32.totalorder %s149, %s152
      %p161 = scmp.eq.s32.totalorder %s34, 1
      %p162 = por %p160, %p161
      %p163 = scmp.ne.s32.totalorder %s152, %s153
      %p164 = scmp.eq.s32.totalorder %s34, 0
      %p165 = por %p163, %p164
      %p166 = scmp.ne.s32.totalorder %s152, %s153
      %p167 = scmp.eq.s32.totalorder %s35, 1
      %p168 = por %p166, %p167
      %p170 = scmp.ne.s32.totalorder %s153, %s169
      %p171 = scmp.eq.s32.totalorder %s35, 0
      %p172 = por %p170, %p171
      %s173 = ssub.s32 %s29, %s36
      %p174 = scmp.eq.s32.totalorder %s173, 0
      %s176 = sadd.s32 %s175, 1
      %s177 = scalar_select %p174, %s175, %s176
      %p180 = pneg %p174
      %p181 = scmp.eq.s32.totalorder %s29, 1
      %p182 = por %p180, %p181
      %p183 = scmp.ne.s32.totalorder %s175, %s178
      %p184 = scmp.eq.s32.totalorder %s29, 0
      %p185 = por %p183, %p184
      %p186 = scmp.ne.s32.totalorder %s175, %s178
      %p187 = scmp.eq.s32.totalorder %s34, 1
      %p188 = por %p186, %p187
      %p189 = scmp.ne.s32.totalorder %s178, %s179
      %p190 = scmp.eq.s32.totalorder %s34, 0
      %p191 = por %p189, %p190
      %p192 = scmp.ne.s32.totalorder %s178, %s179
      %p193 = scmp.eq.s32.totalorder %s35, 1
      %p194 = por %p192, %p193
      %p196 = scmp.ne.s32.totalorder %s179, %s195
      %p197 = scmp.eq.s32.totalorder %s35, 0
      %p198 = por %p196, %p197
      %s199 = ssub.s32 %s29, %s36
      %p200 = scmp.eq.s32.totalorder %s199, 0
      %s202 = sadd.s32 %s201, 1
      %s203 = scalar_select %p200, %s201, %s202
      %p206 = pneg %p200
      %p207 = scmp.eq.s32.totalorder %s29, 1
      %p208 = por %p206, %p207
      %p209 = scmp.ne.s32.totalorder %s201, %s204
      %p210 = scmp.eq.s32.totalorder %s29, 0
      %p211 = por %p209, %p210
      %p212 = scmp.ne.s32.totalorder %s201, %s204
      %p213 = scmp.eq.s32.totalorder %s34, 1
      %p214 = por %p212, %p213
      %p215 = scmp.ne.s32.totalorder %s204, %s205
      %p216 = scmp.eq.s32.totalorder %s34, 0
      %p217 = por %p215, %p216
      %p218 = scmp.ne.s32.totalorder %s204, %s205
      %p219 = scmp.eq.s32.totalorder %s35, 1
      %p220 = por %p218, %p219
      %p222 = scmp.ne.s32.totalorder %s205, %s221
      %p223 = scmp.eq.s32.totalorder %s35, 0
      %p224 = por %p222, %p223
      %s225 = ssub.s32 %s29, %s36
      %p226 = scmp.eq.s32.totalorder %s225, 0
      %s228 = sadd.s32 %s227, 1
      %s229 = scalar_select %p226, %s227, %s228
      %p232 = pneg %p226
      %p233 = scmp.eq.s32.totalorder %s29, 1
      %p234 = por %p232, %p233
      %p235 = scmp.ne.s32.totalorder %s227, %s230
      %p236 = scmp.eq.s32.totalorder %s29, 0
      %p237 = por %p235, %p236
      %p238 = scmp.ne.s32.totalorder %s227, %s230
      %p239 = scmp.eq.s32.totalorder %s34, 1
      %p240 = por %p238, %p239
      %p241 = scmp.ne.s32.totalorder %s230, %s231
      %p242 = scmp.eq.s32.totalorder %s34, 0
      %p243 = por %p241, %p242
      %p244 = scmp.ne.s32.totalorder %s230, %s231
      %p245 = scmp.eq.s32.totalorder %s35, 1
      %p246 = por %p244, %p245
      %p248 = scmp.ne.s32.totalorder %s231, %s247
      %p249 = scmp.eq.s32.totalorder %s35, 0
      %p250 = por %p248, %p249
      %s251 = ssub.s32 %s29, %s36
      %p252 = scmp.eq.s32.totalorder %s251, 0
      %s254 = sadd.s32 %s253, 1
      %s255 = scalar_select %p252, %s253, %s254
      %p258 = pneg %p252
      %p259 = scmp.eq.s32.totalorder %s29, 1
      %p260 = por %p258, %p259
      %p261 = scmp.ne.s32.totalorder %s253, %s256
      %p262 = scmp.eq.s32.totalorder %s29, 0
      %p263 = por %p261, %p262
      %p264 = scmp.ne.s32.totalorder %s253, %s256
      %p265 = scmp.eq.s32.totalorder %s34, 1
      %p266 = por %p264, %p265
      %p267 = scmp.ne.s32.totalorder %s256, %s257
      %p268 = scmp.eq.s32.totalorder %s34, 0
      %p269 = por %p267, %p268
      %p270 = scmp.ne.s32.totalorder %s256, %s257
      %p271 = scmp.eq.s32.totalorder %s35, 1
      %p272 = por %p270, %p271
      %p274 = scmp.ne.s32.totalorder %s257, %s273
      %p275 = scmp.eq.s32.totalorder %s35, 0
      %p276 = por %p274, %p275
      %s277 = ssub.s32 %s29, %s36
      %p278 = scmp.eq.s32.totalorder %s277, 0
      %s280 = sadd.s32 %s279, 1
      %s281 = scalar_select %p278, %s279, %s280
      %p284 = pneg %p278
      %p285 = scmp.eq.s32.totalorder %s29, 1
      %p286 = por %p284, %p285
      %p287 = scmp.ne.s32.totalorder %s279, %s282
      %p288 = scmp.eq.s32.totalorder %s29, 0
      %p289 = por %p287, %p288
      %p290 = scmp.ne.s32.totalorder %s279, %s282
      %p291 = scmp.eq.s32.totalorder %s34, 1
      %p292 = por %p290, %p291
      %p293 = scmp.ne.s32.totalorder %s282, %s283
      %p294 = scmp.eq.s32.totalorder %s34, 0
      %p295 = por %p293, %p294
      %p296 = scmp.ne.s32.totalorder %s282, %s283
      %p297 = scmp.eq.s32.totalorder %s35, 1
      %p298 = por %p296, %p297
      %p300 = scmp.ne.s32.totalorder %s283, %s299
      %p301 = scmp.eq.s32.totalorder %s35, 0
      %p302 = por %p300, %p301
      %s303 = ssub.s32 %s29, %s36
      %p304 = scmp.eq.s32.totalorder %s303, 0
      %s306 = sadd.s32 %s305, 1
      %s307 = scalar_select %p304, %s305, %s306
      %p310 = pneg %p304
      %p311 = scmp.eq.s32.totalorder %s29, 1
      %p312 = por %p310, %p311
      %p313 = scmp.ne.s32.totalorder %s305, %s308
      %p314 = scmp.eq.s32.totalorder %s29, 0
      %p315 = por %p313, %p314
      %p316 = scmp.ne.s32.totalorder %s305, %s308
      %p317 = scmp.eq.s32.totalorder %s34, 1
      %p318 = por %p316, %p317
      %p319 = scmp.ne.s32.totalorder %s308, %s309
      %p320 = scmp.eq.s32.totalorder %s34, 0
      %p321 = por %p319, %p320
      %p322 = scmp.ne.s32.totalorder %s308, %s309
      %p323 = scmp.eq.s32.totalorder %s35, 1
      %p324 = por %p322, %p323
      %p326 = scmp.ne.s32.totalorder %s309, %s325
      %p327 = scmp.eq.s32.totalorder %s35, 0
      %p328 = por %p326, %p327
      %s329 = ssub.s32 %s29, %s36
      %p330 = scmp.eq.s32.totalorder %s329, 0
      %s332 = sadd.s32 %s331, 1
      %s333 = scalar_select %p330, %s331, %s332
      %p336 = pneg %p330
      %p337 = scmp.eq.s32.totalorder %s29, 1
      %p338 = por %p336, %p337
      %p339 = scmp.ne.s32.totalorder %s331, %s334
      %p340 = scmp.eq.s32.totalorder %s29, 0
      %p341 = por %p339, %p340
      %p342 = scmp.ne.s32.totalorder %s331, %s334
      %p343 = scmp.eq.s32.totalorder %s34, 1
      %p344 = por %p342, %p343
      %p345 = scmp.ne.s32.totalorder %s334, %s335
      %p346 = scmp.eq.s32.totalorder %s34, 0
      %p347 = por %p345, %p346
      %p348 = scmp.ne.s32.totalorder %s334, %s335
      %p349 = scmp.eq.s32.totalorder %s35, 1
      %p350 = por %p348, %p349
      %p352 = scmp.ne.s32.totalorder %s335, %s351
      %p353 = scmp.eq.s32.totalorder %s35, 0
      %p354 = por %p352, %p353
      %s355 = ssub.s32 %s29, %s36
      %p356 = scmp.eq.s32.totalorder %s355, 0
      %s358 = sadd.s32 %s357, 1
      %s359 = scalar_select %p356, %s357, %s358
      %p362 = pneg %p356
      %p363 = scmp.eq.s32.totalorder %s29, 1
      %p364 = por %p362, %p363
      %p365 = scmp.ne.s32.totalorder %s357, %s360
      %p366 = scmp.eq.s32.totalorder %s29, 0
      %p367 = por %p365, %p366
      %p368 = scmp.ne.s32.totalorder %s357, %s360
      %p369 = scmp.eq.s32.totalorder %s34, 1
      %p370 = por %p368, %p369
      %p371 = scmp.ne.s32.totalorder %s360, %s361
      %p372 = scmp.eq.s32.totalorder %s34, 0
      %p373 = por %p371, %p372
      %p374 = scmp.ne.s32.totalorder %s360, %s361
      %p375 = scmp.eq.s32.totalorder %s35, 1
      %p376 = por %p374, %p375
      %p378 = scmp.ne.s32.totalorder %s361, %s377
      %p379 = scmp.eq.s32.totalorder %s35, 0
      %p380 = por %p378, %p379
      %s382 = sadd.s32 %s381, 1
      %p385 = scmp.eq.s32.totalorder %s29, 1
      %p386 = scmp.ne.s32.totalorder %s381, %s383
      %p387 = scmp.eq.s32.totalorder %s29, 0
      %p388 = por %p386, %p387
      %p389 = scmp.ne.s32.totalorder %s381, %s383
      %p390 = scmp.eq.s32.totalorder %s34, 1
      %p391 = por %p389, %p390
      %p392 = scmp.ne.s32.totalorder %s383, %s384
      %p393 = scmp.eq.s32.totalorder %s34, 0
      %p394 = por %p392, %p393
      %p395 = scmp.ne.s32.totalorder %s383, %s384
      %p396 = scmp.eq.s32.totalorder %s35, 1
      %p397 = por %p395, %p396
      %p399 = scmp.ne.s32.totalorder %s384, %s398
      %p400 = scmp.eq.s32.totalorder %s35, 0
      %p401 = por %p399, %p400
      %s402 = ssub.s32 %s29, %s36
      %p403 = scmp.eq.s32.totalorder %s402, 0
      %s405 = sadd.s32 %s404, 1
      %s406 = scalar_select %p403, %s404, %s405
      %p409 = pneg %p403
      %p410 = scmp.eq.s32.totalorder %s29, 1
      %p411 = por %p409, %p410
      %p412 = scmp.ne.s32.totalorder %s404, %s407
      %p413 = scmp.eq.s32.totalorder %s29, 0
      %p414 = por %p412, %p413
      %p415 = scmp.ne.s32.totalorder %s404, %s407
      %p416 = scmp.eq.s32.totalorder %s34, 1
      %p417 = por %p415, %p416
      %p418 = scmp.ne.s32.totalorder %s407, %s408
      %p419 = scmp.eq.s32.totalorder %s34, 0
      %p420 = por %p418, %p419
      %p421 = scmp.ne.s32.totalorder %s407, %s408
      %p422 = scmp.eq.s32.totalorder %s35, 1
      %p423 = por %p421, %p422
      %p425 = scmp.ne.s32.totalorder %s408, %s424
      %p426 = scmp.eq.s32.totalorder %s35, 0
      %p427 = por %p425, %p426
      %p428 = scmp.le.s32.totalorder 1, %s29
      %p429 = scmp.lt.s32.totalorder %s29, 3
      %p430 = pnand %p428, %p429
      %p431 = pneg %p430
      // Predicated region
      $region9: #{tpu_custom_call.1} parent=5 // pred_check
        _
      $region10: #{tpu_custom_call.1} parent=5 // pred_check_branch
        %433 = sbr.rel (%p430) target = $region12
      $region11: #{tpu_custom_call.1} parent=5 // pred_region
        %s434 = ssub.s32 %s29, 1
        // Predicated region
        $region13: #{tpu_custom_call.1} parent=11 // pred_check
          %p435 = pneg %p50
        $region14: #{tpu_custom_call.1} parent=11 // pred_check_branch
          %437 = sbr.rel (%p435) target = $region16
        $region15: #{tpu_custom_call.1} parent=11 // pred_region
          %439 = vsyncadd [#allocation4], 0
          %s440 = sshll.u32 %s0, 4
          %s441 = int_to_ptr.hbm [resolvable:$true] %s440
          %s442 = sshll.u32 [#allocation3], 4
          %s443 = int_to_ptr.vmem [resolvable:$true] %s442
          %448 = dma.hbm_to_vmem [thread:$0]  %s441, 256, %s443, [#allocation4], 128, 128, 8
        $region16: #{tpu_custom_call.1} parent=11 // pred_fallthru
          _
        // Predicated region
        $region17: #{tpu_custom_call.1} parent=11 // pred_check
          %p449 = pneg %p71
        $region18: #{tpu_custom_call.1} parent=11 // pred_check_branch
          %451 = sbr.rel (%p449) target = $region20
        $region19: #{tpu_custom_call.1} parent=11 // pred_region
          %453 = vsyncadd [#allocation7], 0
          %s454 = sshll.u32 %s1, 4
          %s455 = int_to_ptr.hbm [resolvable:$true] %s454
          %s456 = sshll.u32 [#allocation6], 4
          %s457 = int_to_ptr.vmem [resolvable:$true] %s456
          %462 = dma.hbm_to_vmem [thread:$0]  %s455, 256, %s457, [#allocation7], 128, 128, 8
        $region20: #{tpu_custom_call.1} parent=11 // pred_fallthru
          _
        // Predicated region
        $region21: #{tpu_custom_call.1} parent=11 // pred_check
          %p463 = pneg %p92
        $region22: #{tpu_custom_call.1} parent=11 // pred_check_branch
          %465 = sbr.rel (%p463) target = $region24
        $region23: #{tpu_custom_call.1} parent=11 // pred_region
          %467 = vsyncadd [#allocation7], 0
          %s468 = sshll.u32 %s2, 4
          %s469 = int_to_ptr.hbm [resolvable:$true] %s468
          %s470 = sshll.u32 [#allocation8], 4
          %s471 = int_to_ptr.vmem [resolvable:$true] %s470
          %476 = dma.hbm_to_vmem [thread:$0]  %s469, 1024, %s471, [#allocation7], 128, 128, 8
        $region24: #{tpu_custom_call.1} parent=11 // pred_fallthru
          _
        // Predicated region
        $region25: #{tpu_custom_call.1} parent=11 // pred_check
          %p477 = pneg %p113
        $region26: #{tpu_custom_call.1} parent=11 // pred_check_branch
          %479 = sbr.rel (%p477) target = $region28
        $region27: #{tpu_custom_call.1} parent=11 // pred_region
          %481 = vsyncadd [#allocation10], 0
          %s482 = sshll.u32 %s3, 4
          %s483 = int_to_ptr.hbm [resolvable:$true] %s482
          %s484 = sshll.u32 [#allocation9], 4
          %s485 = int_to_ptr.vmem [resolvable:$true] %s484
          %490 = dma.hbm_to_vmem [thread:$0]  %s483, 1024, %s485, [#allocation10], 128, 128, 8
        $region28: #{tpu_custom_call.1} parent=11 // pred_fallthru
          _
      $region12: #{tpu_custom_call.1} parent=5 // pred_fallthru
        _
      %p491 = scmp.lt.s32.totalorder %s29, 2
      // Predicated region
      $region29: #{tpu_custom_call.1} parent=5 // pred_check
        %p492 = pneg %p491
      $region30: #{tpu_custom_call.1} parent=5 // pred_check_branch
        %494 = sbr.rel (%p492) target = $region32
      $region31: #{tpu_custom_call.1} parent=5 // pred_region
        // Predicated region
        $region33: #{tpu_custom_call.1} parent=31 // pred_check
          %p495 = pneg %p133
        $region34: #{tpu_custom_call.1} parent=31 // pred_check_branch
          %497 = sbr.rel (%p495) target = $region36
        $region35: #{tpu_custom_call.1} parent=31 // pred_region
          %s498 = sand.u32 %s29, 1
          %s499 = scalar_lea.sflag [#allocation4], %s498
          %s500 = sand.u32 %s123, 1
          %s501 = smul.addr %s500, 256
          %s502 = scalar_lea.vmem [#allocation11], %s501
          %504 = vsyncadd %s499, 0
          %s505 = smul.addr %s29, 32
          %s506 = smul.addr %s505, 8
          %s507 = scalar_lea.hbm %s4, %s506
          %s508 = sshll.u32 %s507, 4
          %s509 = int_to_ptr.hbm [resolvable:$true] %s508
          %s510 = sshll.u32 %s502, 4
          %s511 = int_to_ptr.vmem [resolvable:$true] %s510
          %516 = dma.hbm_to_vmem [thread:$0]  %s509, 4096, %s511, %s499, 128, 128, 8
        $region36: #{tpu_custom_call.1} parent=31 // pred_fallthru
          _
        // Predicated region
        $region37: #{tpu_custom_call.1} parent=31 // pred_check
          %p517 = pneg %p159
        $region38: #{tpu_custom_call.1} parent=31 // pred_check_branch
          %519 = sbr.rel (%p517) target = $region40
        $region39: #{tpu_custom_call.1} parent=31 // pred_region
          %s520 = sand.u32 %s29, 1
          %s521 = scalar_lea.sflag [#allocation4], %s520
          %s522 = sand.u32 %s149, 1
          %s523 = smul.addr %s522, 256
          %s524 = scalar_lea.vmem [#allocation12], %s523
          %526 = vsyncadd %s521, 0
          %s527 = smul.addr %s29, 32
          %s528 = smul.addr %s527, 8
          %s529 = scalar_lea.hbm %s5, %s528
          %s530 = sshll.u32 %s529, 4
          %s531 = int_to_ptr.hbm [resolvable:$true] %s530
          %s532 = sshll.u32 %s524, 4
          %s533 = int_to_ptr.vmem [resolvable:$true] %s532
          %538 = dma.hbm_to_vmem [thread:$0]  %s531, 4096, %s533, %s521, 128, 128, 8
        $region40: #{tpu_custom_call.1} parent=31 // pred_fallthru
          _
        // Predicated region
        $region41: #{tpu_custom_call.1} parent=31 // pred_check
          %p539 = pneg %p185
        $region42: #{tpu_custom_call.1} parent=31 // pred_check_branch
          %541 = sbr.rel (%p539) target = $region44
        $region43: #{tpu_custom_call.1} parent=31 // pred_region
          %s542 = sand.u32 %s29, 1
          %s543 = scalar_lea.sflag [#allocation4], %s542
          %s544 = sand.u32 %s175, 1
          %s545 = smul.addr %s544, 256
          %s546 = scalar_lea.vmem [#allocation13], %s545
          %548 = vsyncadd %s543, 0
          %s549 = smul.addr %s29, 32
          %s550 = smul.addr %s549, 8
          %s551 = scalar_lea.hbm %s6, %s550
          %s552 = sshll.u32 %s551, 4
          %s553 = int_to_ptr.hbm [resolvable:$true] %s552
          %s554 = sshll.u32 %s546, 4
          %s555 = int_to_ptr.vmem [resolvable:$true] %s554
          %560 = dma.hbm_to_vmem [thread:$0]  %s553, 4096, %s555, %s543, 128, 128, 8
        $region44: #{tpu_custom_call.1} parent=31 // pred_fallthru
          _
        // Predicated region
        $region45: #{tpu_custom_call.1} parent=31 // pred_check
          %p561 = pneg %p211
        $region46: #{tpu_custom_call.1} parent=31 // pred_check_branch
          %563 = sbr.rel (%p561) target = $region48
        $region47: #{tpu_custom_call.1} parent=31 // pred_region
          %s564 = sand.u32 %s29, 1
          %s565 = scalar_lea.sflag [#allocation4], %s564
          %s566 = sand.u32 %s201, 1
          %s567 = smul.addr %s566, 256
          %s568 = scalar_lea.vmem [#allocation14], %s567
          %570 = vsyncadd %s565, 0
          %s571 = smul.addr %s29, 32
          %s572 = smul.addr %s571, 8
          %s573 = scalar_lea.hbm %s7, %s572
          %s574 = sshll.u32 %s573, 4
          %s575 = int_to_ptr.hbm [resolvable:$true] %s574
          %s576 = sshll.u32 %s568, 4
          %s577 = int_to_ptr.vmem [resolvable:$true] %s576
          %582 = dma.hbm_to_vmem [thread:$0]  %s575, 4096, %s577, %s565, 128, 128, 8
        $region48: #{tpu_custom_call.1} parent=31 // pred_fallthru
          _
        // Predicated region
        $region49: #{tpu_custom_call.1} parent=31 // pred_check
          %p583 = pneg %p237
        $region50: #{tpu_custom_call.1} parent=31 // pred_check_branch
          %585 = sbr.rel (%p583) target = $region52
        $region51: #{tpu_custom_call.1} parent=31 // pred_region
          %s586 = sand.u32 %s29, 1
          %s587 = scalar_lea.sflag [#allocation4], %s586
          %s588 = sand.u32 %s227, 1
          %s589 = smul.addr %s588, 256
          %s590 = scalar_lea.vmem [#allocation15], %s589
          %592 = vsyncadd %s587, 0
          %s593 = smul.addr %s29, 32
          %s594 = smul.addr %s593, 8
          %s595 = scalar_lea.hbm %s8, %s594
          %s596 = sshll.u32 %s595, 4
          %s597 = int_to_ptr.hbm [resolvable:$true] %s596
          %s598 = sshll.u32 %s590, 4
          %s599 = int_to_ptr.vmem [resolvable:$true] %s598
          %604 = dma.hbm_to_vmem [thread:$0]  %s597, 4096, %s599, %s587, 128, 128, 8
        $region52: #{tpu_custom_call.1} parent=31 // pred_fallthru
          _
        // Predicated region
        $region53: #{tpu_custom_call.1} parent=31 // pred_check
          %p605 = pneg %p263
        $region54: #{tpu_custom_call.1} parent=31 // pred_check_branch
          %607 = sbr.rel (%p605) target = $region56
        $region55: #{tpu_custom_call.1} parent=31 // pred_region
          %s608 = sand.u32 %s29, 1
          %s609 = scalar_lea.sflag [#allocation4], %s608
          %s610 = sand.u32 %s253, 1
          %s611 = smul.addr %s610, 256
          %s612 = scalar_lea.vmem [#allocation16], %s611
          %614 = vsyncadd %s609, 0
          %s615 = smul.addr %s29, 32
          %s616 = smul.addr %s615, 8
          %s617 = scalar_lea.hbm %s9, %s616
          %s618 = sshll.u32 %s617, 4
          %s619 = int_to_ptr.hbm [resolvable:$true] %s618
          %s620 = sshll.u32 %s612, 4
          %s621 = int_to_ptr.vmem [resolvable:$true] %s620
          %626 = dma.hbm_to_vmem [thread:$0]  %s619, 4096, %s621, %s609, 128, 128, 8
        $region56: #{tpu_custom_call.1} parent=31 // pred_fallthru
          _
        // Predicated region
        $region57: #{tpu_custom_call.1} parent=31 // pred_check
          %p627 = pneg %p289
        $region58: #{tpu_custom_call.1} parent=31 // pred_check_branch
          %629 = sbr.rel (%p627) target = $region60
        $region59: #{tpu_custom_call.1} parent=31 // pred_region
          %s630 = sand.u32 %s29, 1
          %s631 = scalar_lea.sflag [#allocation4], %s630
          %s632 = sand.u32 %s279, 1
          %s633 = smul.addr %s632, 256
          %s634 = scalar_lea.vmem [#allocation17], %s633
          %636 = vsyncadd %s631, 0
          %s637 = smul.addr %s29, 32
          %s638 = smul.addr %s637, 8
          %s639 = scalar_lea.hbm %s10, %s638
          %s640 = sshll.u32 %s639, 4
          %s641 = int_to_ptr.hbm [resolvable:$true] %s640
          %s642 = sshll.u32 %s634, 4
          %s643 = int_to_ptr.vmem [resolvable:$true] %s642
          %648 = dma.hbm_to_vmem [thread:$0]  %s641, 4096, %s643, %s631, 128, 128, 8
        $region60: #{tpu_custom_call.1} parent=31 // pred_fallthru
          _
        // Predicated region
        $region61: #{tpu_custom_call.1} parent=31 // pred_check
          %p649 = pneg %p315
        $region62: #{tpu_custom_call.1} parent=31 // pred_check_branch
          %651 = sbr.rel (%p649) target = $region64
        $region63: #{tpu_custom_call.1} parent=31 // pred_region
          %s652 = sand.u32 %s29, 1
          %s653 = scalar_lea.sflag [#allocation4], %s652
          %s654 = sand.u32 %s305, 1
          %s655 = smul.addr %s654, 256
          %s656 = scalar_lea.vmem [#allocation18], %s655
          %658 = vsyncadd %s653, 0
          %s659 = smul.addr %s29, 32
          %s660 = smul.addr %s659, 8
          %s661 = scalar_lea.hbm %s11, %s660
          %s662 = sshll.u32 %s661, 4
          %s663 = int_to_ptr.hbm [resolvable:$true] %s662
          %s664 = sshll.u32 %s656, 4
          %s665 = int_to_ptr.vmem [resolvable:$true] %s664
          %670 = dma.hbm_to_vmem [thread:$0]  %s663, 4096, %s665, %s653, 128, 128, 8
        $region64: #{tpu_custom_call.1} parent=31 // pred_fallthru
          _
        // Predicated region
        $region65: #{tpu_custom_call.1} parent=31 // pred_check
          %p671 = pneg %p341
        $region66: #{tpu_custom_call.1} parent=31 // pred_check_branch
          %673 = sbr.rel (%p671) target = $region68
        $region67: #{tpu_custom_call.1} parent=31 // pred_region
          %s674 = sand.u32 %s29, 1
          %s675 = scalar_lea.sflag [#allocation4], %s674
          %s676 = sand.u32 %s331, 1
          %s677 = smul.addr %s676, 64
          %s678 = scalar_lea.vmem [#allocation19], %s677
          %680 = vsyncadd %s675, 0
          %s681 = smul.addr %s29, 8
          %s682 = smul.addr %s681, 8
          %s683 = scalar_lea.hbm %s12, %s682
          %s684 = sshll.u32 %s683, 4
          %s685 = int_to_ptr.hbm [resolvable:$true] %s684
          %s686 = sshll.u32 %s678, 4
          %s687 = int_to_ptr.vmem [resolvable:$true] %s686
          %692 = dma.hbm_to_vmem [thread:$0]  %s685, 1024, %s687, %s675, 128, 128, 8
        $region68: #{tpu_custom_call.1} parent=31 // pred_fallthru
          _
        // Predicated region
        $region69: #{tpu_custom_call.1} parent=31 // pred_check
          %p693 = pneg %p367
        $region70: #{tpu_custom_call.1} parent=31 // pred_check_branch
          %695 = sbr.rel (%p693) target = $region72
        $region71: #{tpu_custom_call.1} parent=31 // pred_region
          %s696 = sand.u32 %s29, 1
          %s697 = scalar_lea.sflag [#allocation4], %s696
          %s698 = sand.u32 %s357, 1
          %s699 = smul.addr %s698, 64
          %s700 = scalar_lea.vmem [#allocation20], %s699
          %702 = vsyncadd %s697, 0
          %s703 = smul.addr %s29, 8
          %s704 = smul.addr %s703, 8
          %s705 = scalar_lea.hbm %s13, %s704
          %s706 = sshll.u32 %s705, 4
          %s707 = int_to_ptr.hbm [resolvable:$true] %s706
          %s708 = sshll.u32 %s700, 4
          %s709 = int_to_ptr.vmem [resolvable:$true] %s708
          %714 = dma.hbm_to_vmem [thread:$0]  %s707, 1024, %s709, %s697, 128, 128, 8
        $region72: #{tpu_custom_call.1} parent=31 // pred_fallthru
          _
      $region32: #{tpu_custom_call.1} parent=5 // pred_fallthru
        _
      %p715 = scmp.le.s32.totalorder 1, %s29
      %p716 = scmp.lt.s32.totalorder %s29, 3
      %p717 = pnand %p715, %p716
      %p718 = pneg %p717
      // Predicated region
      $region73: #{tpu_custom_call.1} parent=5 // pred_check
        _
      $region74: #{tpu_custom_call.1} parent=5 // pred_check_branch
        %720 = sbr.rel (%p717) target = $region76
      $region75: #{tpu_custom_call.1} parent=5 // pred_region
        %s721 = ssub.s32 %s29, 1
        // Predicated region
        $region77: #{tpu_custom_call.1} parent=75 // pred_check
          %p722 = pneg %p50
        $region78: #{tpu_custom_call.1} parent=75 // pred_check_branch
          %724 = sbr.rel (%p722) target = $region80
        $region79: #{tpu_custom_call.1} parent=75 // pred_region
          %726 = dma.done [#allocation4], 256
        $region80: #{tpu_custom_call.1} parent=75 // pred_fallthru
          _
        // Predicated region
        $region81: #{tpu_custom_call.1} parent=75 // pred_check
          %p727 = pneg %p71
        $region82: #{tpu_custom_call.1} parent=75 // pred_check_branch
          %729 = sbr.rel (%p727) target = $region84
        $region83: #{tpu_custom_call.1} parent=75 // pred_region
          %731 = dma.done [#allocation7], 256
        $region84: #{tpu_custom_call.1} parent=75 // pred_fallthru
          _
        // Predicated region
        $region85: #{tpu_custom_call.1} parent=75 // pred_check
          %p732 = pneg %p92
        $region86: #{tpu_custom_call.1} parent=75 // pred_check_branch
          %734 = sbr.rel (%p732) target = $region88
        $region87: #{tpu_custom_call.1} parent=75 // pred_region
          %736 = dma.done [#allocation7], 1024
        $region88: #{tpu_custom_call.1} parent=75 // pred_fallthru
          _
        // Predicated region
        $region89: #{tpu_custom_call.1} parent=75 // pred_check
          %p737 = pneg %p113
        $region90: #{tpu_custom_call.1} parent=75 // pred_check_branch
          %739 = sbr.rel (%p737) target = $region92
        $region91: #{tpu_custom_call.1} parent=75 // pred_region
          %741 = dma.done [#allocation10], 1024
        $region92: #{tpu_custom_call.1} parent=75 // pred_fallthru
          _
        %s742 = sand.u32 %s34, 1
        %s743 = scalar_lea.sflag [#allocation4], %s742
        %s744 = sand.u32 %s126, 1
        %s745 = smul.addr %s744, 256
        %s746 = scalar_lea.vmem [#allocation11], %s745
        // Predicated region
        $region93: #{tpu_custom_call.1} parent=75 // pred_check
          %p747 = pneg %p139
        $region94: #{tpu_custom_call.1} parent=75 // pred_check_branch
          %749 = sbr.rel (%p747) target = $region96
        $region95: #{tpu_custom_call.1} parent=75 // pred_region
          %751 = dma.done %s743, 4096
        $region96: #{tpu_custom_call.1} parent=75 // pred_fallthru
          _
        %s752 = sand.u32 %s34, 1
        %s753 = scalar_lea.sflag [#allocation4], %s752
        %s754 = sand.u32 %s152, 1
        %s755 = smul.addr %s754, 256
        %s756 = scalar_lea.vmem [#allocation12], %s755
        // Predicated region
        $region97: #{tpu_custom_call.1} parent=75 // pred_check
          %p757 = pneg %p165
        $region98: #{tpu_custom_call.1} parent=75 // pred_check_branch
          %759 = sbr.rel (%p757) target = $region100
        $region99: #{tpu_custom_call.1} parent=75 // pred_region
          %761 = dma.done %s753, 4096
        $region100: #{tpu_custom_call.1} parent=75 // pred_fallthru
          _
        %s762 = sand.u32 %s34, 1
        %s763 = scalar_lea.sflag [#allocation4], %s762
        %s764 = sand.u32 %s178, 1
        %s765 = smul.addr %s764, 256
        %s766 = scalar_lea.vmem [#allocation13], %s765
        // Predicated region
        $region101: #{tpu_custom_call.1} parent=75 // pred_check
          %p767 = pneg %p191
        $region102: #{tpu_custom_call.1} parent=75 // pred_check_branch
          %769 = sbr.rel (%p767) target = $region104
        $region103: #{tpu_custom_call.1} parent=75 // pred_region
          %771 = dma.done %s763, 4096
        $region104: #{tpu_custom_call.1} parent=75 // pred_fallthru
          _
        %s772 = sand.u32 %s34, 1
        %s773 = scalar_lea.sflag [#allocation4], %s772
        %s774 = sand.u32 %s204, 1
        %s775 = smul.addr %s774, 256
        %s776 = scalar_lea.vmem [#allocation14], %s775
        // Predicated region
        $region105: #{tpu_custom_call.1} parent=75 // pred_check
          %p777 = pneg %p217
        $region106: #{tpu_custom_call.1} parent=75 // pred_check_branch
          %779 = sbr.rel (%p777) target = $region108
        $region107: #{tpu_custom_call.1} parent=75 // pred_region
          %781 = dma.done %s773, 4096
        $region108: #{tpu_custom_call.1} parent=75 // pred_fallthru
          _
        %s782 = sand.u32 %s34, 1
        %s783 = scalar_lea.sflag [#allocation4], %s782
        %s784 = sand.u32 %s230, 1
        %s785 = smul.addr %s784, 256
        %s786 = scalar_lea.vmem [#allocation15], %s785
        // Predicated region
        $region109: #{tpu_custom_call.1} parent=75 // pred_check
          %p787 = pneg %p243
        $region110: #{tpu_custom_call.1} parent=75 // pred_check_branch
          %789 = sbr.rel (%p787) target = $region112
        $region111: #{tpu_custom_call.1} parent=75 // pred_region
          %791 = dma.done %s783, 4096
        $region112: #{tpu_custom_call.1} parent=75 // pred_fallthru
          _
        %s792 = sand.u32 %s34, 1
        %s793 = scalar_lea.sflag [#allocation4], %s792
        %s794 = sand.u32 %s256, 1
        %s795 = smul.addr %s794, 256
        %s796 = scalar_lea.vmem [#allocation16], %s795
        // Predicated region
        $region113: #{tpu_custom_call.1} parent=75 // pred_check
          %p797 = pneg %p269
        $region114: #{tpu_custom_call.1} parent=75 // pred_check_branch
          %799 = sbr.rel (%p797) target = $region116
        $region115: #{tpu_custom_call.1} parent=75 // pred_region
          %801 = dma.done %s793, 4096
        $region116: #{tpu_custom_call.1} parent=75 // pred_fallthru
          _
        %s802 = sand.u32 %s34, 1
        %s803 = scalar_lea.sflag [#allocation4], %s802
        %s804 = sand.u32 %s282, 1
        %s805 = smul.addr %s804, 256
        %s806 = scalar_lea.vmem [#allocation17], %s805
        // Predicated region
        $region117: #{tpu_custom_call.1} parent=75 // pred_check
          %p807 = pneg %p295
        $region118: #{tpu_custom_call.1} parent=75 // pred_check_branch
          %809 = sbr.rel (%p807) target = $region120
        $region119: #{tpu_custom_call.1} parent=75 // pred_region
          %811 = dma.done %s803, 4096
        $region120: #{tpu_custom_call.1} parent=75 // pred_fallthru
          _
        %s812 = sand.u32 %s34, 1
        %s813 = scalar_lea.sflag [#allocation4], %s812
        %s814 = sand.u32 %s308, 1
        %s815 = smul.addr %s814, 256
        %s816 = scalar_lea.vmem [#allocation18], %s815
        // Predicated region
        $region121: #{tpu_custom_call.1} parent=75 // pred_check
          %p817 = pneg %p321
        $region122: #{tpu_custom_call.1} parent=75 // pred_check_branch
          %819 = sbr.rel (%p817) target = $region124
        $region123: #{tpu_custom_call.1} parent=75 // pred_region
          %821 = dma.done %s813, 4096
        $region124: #{tpu_custom_call.1} parent=75 // pred_fallthru
          _
        %s822 = sand.u32 %s34, 1
        %s823 = scalar_lea.sflag [#allocation4], %s822
        %s824 = sand.u32 %s334, 1
        %s825 = smul.addr %s824, 64
        %s826 = scalar_lea.vmem [#allocation19], %s825
        // Predicated region
        $region125: #{tpu_custom_call.1} parent=75 // pred_check
          %p827 = pneg %p347
        $region126: #{tpu_custom_call.1} parent=75 // pred_check_branch
          %829 = sbr.rel (%p827) target = $region128
        $region127: #{tpu_custom_call.1} parent=75 // pred_region
          %831 = dma.done %s823, 1024
        $region128: #{tpu_custom_call.1} parent=75 // pred_fallthru
          _
        %s832 = sand.u32 %s34, 1
        %s833 = scalar_lea.sflag [#allocation4], %s832
        %s834 = sand.u32 %s360, 1
        %s835 = smul.addr %s834, 64
        %s836 = scalar_lea.vmem [#allocation20], %s835
        // Predicated region
        $region129: #{tpu_custom_call.1} parent=75 // pred_check
          %p837 = pneg %p373
        $region130: #{tpu_custom_call.1} parent=75 // pred_check_branch
          %839 = sbr.rel (%p837) target = $region132
        $region131: #{tpu_custom_call.1} parent=75 // pred_region
          %841 = dma.done %s833, 1024
        $region132: #{tpu_custom_call.1} parent=75 // pred_fallthru
          _
        %p842 = pneg %p50
        %p843 = pneg %p47
        %p844 = pneg %p71
        %p845 = pneg %p68
        %p846 = pneg %p92
        %p847 = pneg %p89
        %p848 = pneg %p113
        %p849 = pneg %p110
        %s850 = sand.u32 %s34, 1
        %s851 = scalar_lea.sflag [#allocation4], %s850
        %s852 = sand.u32 %s126, 1
        %s853 = smul.addr %s852, 256
        %s854 = scalar_lea.vmem [#allocation11], %s853
        %p855 = pneg %p139
        %p856 = pneg %p136
        %s857 = sand.u32 %s34, 1
        %s858 = scalar_lea.sflag [#allocation4], %s857
        %s859 = sand.u32 %s152, 1
        %s860 = smul.addr %s859, 256
        %s861 = scalar_lea.vmem [#allocation12], %s860
        %p862 = pneg %p165
        %p863 = pneg %p162
        %s864 = sand.u32 %s34, 1
        %s865 = scalar_lea.sflag [#allocation4], %s864
        %s866 = sand.u32 %s178, 1
        %s867 = smul.addr %s866, 256
        %s868 = scalar_lea.vmem [#allocation13], %s867
        %p869 = pneg %p191
        %p870 = pneg %p188
        %s871 = sand.u32 %s34, 1
        %s872 = scalar_lea.sflag [#allocation4], %s871
        %s873 = sand.u32 %s204, 1
        %s874 = smul.addr %s873, 256
        %s875 = scalar_lea.vmem [#allocation14], %s874
        %p876 = pneg %p217
        %p877 = pneg %p214
        %s878 = sand.u32 %s34, 1
        %s879 = scalar_lea.sflag [#allocation4], %s878
        %s880 = sand.u32 %s230, 1
        %s881 = smul.addr %s880, 256
        %s882 = scalar_lea.vmem [#allocation15], %s881
        %p883 = pneg %p243
        %p884 = pneg %p240
        %s885 = sand.u32 %s34, 1
        %s886 = scalar_lea.sflag [#allocation4], %s885
        %s887 = sand.u32 %s256, 1
        %s888 = smul.addr %s887, 256
        %s889 = scalar_lea.vmem [#allocation16], %s888
        %p890 = pneg %p269
        %p891 = pneg %p266
        %s892 = sand.u32 %s34, 1
        %s893 = scalar_lea.sflag [#allocation4], %s892
        %s894 = sand.u32 %s282, 1
        %s895 = smul.addr %s894, 256
        %s896 = scalar_lea.vmem [#allocation17], %s895
        %p897 = pneg %p295
        %p898 = pneg %p292
        %s899 = sand.u32 %s34, 1
        %s900 = scalar_lea.sflag [#allocation4], %s899
        %s901 = sand.u32 %s308, 1
        %s902 = smul.addr %s901, 256
        %s903 = scalar_lea.vmem [#allocation18], %s902
        %p904 = pneg %p321
        %p905 = pneg %p318
        %s906 = sand.u32 %s34, 1
        %s907 = scalar_lea.sflag [#allocation4], %s906
        %s908 = sand.u32 %s334, 1
        %s909 = smul.addr %s908, 64
        %s910 = scalar_lea.vmem [#allocation19], %s909
        %p911 = pneg %p347
        %p912 = pneg %p344
        %s913 = sand.u32 %s34, 1
        %s914 = scalar_lea.sflag [#allocation4], %s913
        %s915 = sand.u32 %s360, 1
        %s916 = smul.addr %s915, 64
        %s917 = scalar_lea.vmem [#allocation20], %s916
        %p918 = pneg %p373
        %p919 = pneg %p370
        %p920 = pneg %p394
        %p921 = pneg %p391
        %p922 = pneg %p420
        %p923 = pneg %p417
        %s924 = sand.u32 %s407, 1
        %s925 = scalar_lea.sflag [#allocation23], %s924
        %s926 = sand.u32 %s407, 1
        %s927 = smul.addr %s926, 64
        %s928 = scalar_lea.vmem [#allocation22], %s927
        %p929 = scmp.eq.s32.totalorder %s34, 0
        // Predicated region
        $region133: #{tpu_custom_call.1} parent=75 // pred_check
          %p930 = pneg %p929
        $region134: #{tpu_custom_call.1} parent=75 // pred_check_branch
          %932 = sbr.rel (%p930) target = $region136
        $region135: #{tpu_custom_call.1} parent=75 // pred_region
          %v933 = vld [vmem:[#allocation3] sm:$0xff]
          %v934 = vld [vmem:[#allocation3 + $0x8] sm:$0xff]
          %vm935 = vcmask 523264
          %936 = vst.msk [vmem:[#allocation2] sm:$0xff] %vm935, %v933
          %937 = vst.msk [vmem:[#allocation2 + $0x8] sm:$0xff] %vm935, %v934
        $region136: #{tpu_custom_call.1} parent=75 // pred_fallthru
          _
        %v938 = vld [vmem:[#allocation2] sm:$0xff]
        %v939 = vld [vmem:[#allocation2 + $0x8] sm:$0xff]
        %v940 = vld [vmem:[#allocation6] sm:$0xff]
        %v941 = vld [vmem:[#allocation6 + $0x8] sm:$0xff]
        %v942 = vld [vmem:[#allocation8] sm:$0xff]
        %v943 = vld [vmem:[#allocation8 + $0x8] sm:$0xff]
        %v944 = vld [vmem:[#allocation8 + $0x10] sm:$0xff]
        %v945 = vld [vmem:[#allocation8 + $0x18] sm:$0xff]
        %v946 = vld [vmem:[#allocation8 + $0x20] sm:$0xff]
        %v947 = vld [vmem:[#allocation8 + $0x28] sm:$0xff]
        %v948 = vld [vmem:[#allocation8 + $0x30] sm:$0xff]
        %v949 = vld [vmem:[#allocation8 + $0x38] sm:$0xff]
        %v950 = vld [vmem:[%s746] sm:$0xff]
        %v951 = vld [vmem:[%s746 + $0x8] sm:$0xff]
        %v952 = vld [vmem:[%s746 + $0x10] sm:$0xff]
        %v953 = vld [vmem:[%s746 + $0x18] sm:$0xff]
        %v954 = vld [vmem:[%s746 + $0x20] sm:$0xff]
        %v955 = vld [vmem:[%s746 + $0x28] sm:$0xff]
        %v956 = vld [vmem:[%s746 + $0x30] sm:$0xff]
        %v957 = vld [vmem:[%s746 + $0x38] sm:$0xff]
        %vm958 = vcmask 523264
        %v960 = vsel %vm958, %v938, 0
        %v963 = vsel %vm958, %v939, 0
        %965 = vmatpush.msra.mxu0 0.0
        %966 = vmatpush.msra.mxu0 0.0
        %967 = vmatpush.msra.mxu0 0.0
        %968 = vmatpush.msra.mxu0 0.0
        %969 = vmatpush.msra.mxu0 0.0
        %970 = vmatpush.msra.mxu0 0.0
        %971 = vmatpush.msra.mxu0 0.0
        %972 = vmatpush.msra.mxu0 0.0
        %973 = vmatpush.msra.mxu0 %v957
        %974 = vmatpush.msra.mxu0 %v956
        %975 = vmatpush.msra.mxu0 %v955
        %976 = vmatpush.msra.mxu0 %v954
        %977 = vmatpush.msra.mxu0 %v953
        %978 = vmatpush.msra.mxu0 %v952
        %979 = vmatpush.msra.mxu0 %v951
        %980 = vmatpush.msra.mxu0 %v950
        %981 = vmatmul.f32.gmra.mxu0 %v960
        %v982 = vpop.f32.mrf.mxu0
        %v983 = vadd.f32 0.0, %v982
        %984 = vmatmul.f32.gmra.mxu0 %v963
        %v985 = vpop.f32.mrf.mxu0
        %v986 = vadd.f32 0.0, %v985
        %987 = vdwg.mxu0
        %s988 = scalar_lea.vmem %s746, 64 [#allocation11]
        %v989 = vld [vmem:[%s988] sm:$0xff]
        %v990 = vld [vmem:[%s988 + $0x8] sm:$0xff]
        %v991 = vld [vmem:[%s988 + $0x10] sm:$0xff]
        %v992 = vld [vmem:[%s988 + $0x18] sm:$0xff]
        %v993 = vld [vmem:[%s988 + $0x20] sm:$0xff]
        %v994 = vld [vmem:[%s988 + $0x28] sm:$0xff]
        %v995 = vld [vmem:[%s988 + $0x30] sm:$0xff]
        %v996 = vld [vmem:[%s988 + $0x38] sm:$0xff]
        %997 = vmatpush.msra.mxu0 0.0
        %998 = vmatpush.msra.mxu0 0.0
        %999 = vmatpush.msra.mxu0 0.0
        %1000 = vmatpush.msra.mxu0 0.0
        %1001 = vmatpush.msra.mxu0 0.0
        %1002 = vmatpush.msra.mxu0 0.0
        %1003 = vmatpush.msra.mxu0 0.0
        %1004 = vmatpush.msra.mxu0 0.0
        %1005 = vmatpush.msra.mxu0 %v996
        %1006 = vmatpush.msra.mxu0 %v995
        %1007 = vmatpush.msra.mxu0 %v994
        %1008 = vmatpush.msra.mxu0 %v993
        %1009 = vmatpush.msra.mxu0 %v992
        %1010 = vmatpush.msra.mxu0 %v991
        %1011 = vmatpush.msra.mxu0 %v990
        %1012 = vmatpush.msra.mxu0 %v989
        %1013 = vmatmul.f32.gmra.mxu0 %v960
        %v1014 = vpop.f32.mrf.mxu0
        %v1015 = vadd.f32 0.0, %v1014
        %1016 = vmatmul.f32.gmra.mxu0 %v963
        %v1017 = vpop.f32.mrf.mxu0
        %v1018 = vadd.f32 0.0, %v1017
        %1019 = vdwg.mxu0
        %s1020 = scalar_lea.vmem %s746, 128 [#allocation11]
        %v1021 = vld [vmem:[%s1020] sm:$0xff]
        %v1022 = vld [vmem:[%s1020 + $0x8] sm:$0xff]
        %v1023 = vld [vmem:[%s1020 + $0x10] sm:$0xff]
        %v1024 = vld [vmem:[%s1020 + $0x18] sm:$0xff]
        %v1025 = vld [vmem:[%s1020 + $0x20] sm:$0xff]
        %v1026 = vld [vmem:[%s1020 + $0x28] sm:$0xff]
        %v1027 = vld [vmem:[%s1020 + $0x30] sm:$0xff]
        %v1028 = vld [vmem:[%s1020 + $0x38] sm:$0xff]
        %1029 = vmatpush.msra.mxu0 0.0
        %1030 = vmatpush.msra.mxu0 0.0
        %1031 = vmatpush.msra.mxu0 0.0
        %1032 = vmatpush.msra.mxu0 0.0
        %1033 = vmatpush.msra.mxu0 0.0
        %1034 = vmatpush.msra.mxu0 0.0
        %1035 = vmatpush.msra.mxu0 0.0
        %1036 = vmatpush.msra.mxu0 0.0
        %1037 = vmatpush.msra.mxu0 %v1028
        %1038 = vmatpush.msra.mxu0 %v1027
        %1039 = vmatpush.msra.mxu0 %v1026
        %1040 = vmatpush.msra.mxu0 %v1025
        %1041 = vmatpush.msra.mxu0 %v1024
        %1042 = vmatpush.msra.mxu0 %v1023
        %1043 = vmatpush.msra.mxu0 %v1022
        %1044 = vmatpush.msra.mxu0 %v1021
        %1045 = vmatmul.f32.gmra.mxu0 %v960
        %v1046 = vpop.f32.mrf.mxu0
        %v1047 = vadd.f32 0.0, %v1046
        %1048 = vmatmul.f32.gmra.mxu0 %v963
        %v1049 = vpop.f32.mrf.mxu0
        %v1050 = vadd.f32 0.0, %v1049
        %1051 = vdwg.mxu0
        %s1052 = scalar_lea.vmem %s746, 192 [#allocation11]
        %v1053 = vld [vmem:[%s1052] sm:$0xff]
        %v1054 = vld [vmem:[%s1052 + $0x8] sm:$0xff]
        %v1055 = vld [vmem:[%s1052 + $0x10] sm:$0xff]
        %v1056 = vld [vmem:[%s1052 + $0x18] sm:$0xff]
        %v1057 = vld [vmem:[%s1052 + $0x20] sm:$0xff]
        %v1058 = vld [vmem:[%s1052 + $0x28] sm:$0xff]
        %v1059 = vld [vmem:[%s1052 + $0x30] sm:$0xff]
        %v1060 = vld [vmem:[%s1052 + $0x38] sm:$0xff]
        %1061 = vmatpush.msra.mxu0 0.0
        %1062 = vmatpush.msra.mxu0 0.0
        %1063 = vmatpush.msra.mxu0 0.0
        %1064 = vmatpush.msra.mxu0 0.0
        %1065 = vmatpush.msra.mxu0 0.0
        %1066 = vmatpush.msra.mxu0 0.0
        %1067 = vmatpush.msra.mxu0 0.0
        %1068 = vmatpush.msra.mxu0 0.0
        %1069 = vmatpush.msra.mxu0 %v1060
        %1070 = vmatpush.msra.mxu0 %v1059
        %1071 = vmatpush.msra.mxu0 %v1058
        %1072 = vmatpush.msra.mxu0 %v1057
        %1073 = vmatpush.msra.mxu0 %v1056
        %1074 = vmatpush.msra.mxu0 %v1055
        %1075 = vmatpush.msra.mxu0 %v1054
        %1076 = vmatpush.msra.mxu0 %v1053
        %1077 = vmatmul.f32.gmra.mxu0 %v960
        %v1078 = vpop.f32.mrf.mxu0
        %v1079 = vadd.f32 0.0, %v1078
        %1080 = vmatmul.f32.gmra.mxu0 %v963
        %v1081 = vpop.f32.mrf.mxu0
        %v1082 = vadd.f32 0.0, %v1081
        %1083 = vdwg.mxu0
        %v1084 = vld [vmem:[%s756] sm:$0xff]
        %v1085 = vld [vmem:[%s756 + $0x8] sm:$0xff]
        %v1086 = vld [vmem:[%s756 + $0x10] sm:$0xff]
        %v1087 = vld [vmem:[%s756 + $0x18] sm:$0xff]
        %v1088 = vld [vmem:[%s756 + $0x20] sm:$0xff]
        %v1089 = vld [vmem:[%s756 + $0x28] sm:$0xff]
        %v1090 = vld [vmem:[%s756 + $0x30] sm:$0xff]
        %v1091 = vld [vmem:[%s756 + $0x38] sm:$0xff]
        %1092 = vmatpush.msra.mxu0 0.0
        %1093 = vmatpush.msra.mxu0 0.0
        %1094 = vmatpush.msra.mxu0 0.0
        %1095 = vmatpush.msra.mxu0 0.0
        %1096 = vmatpush.msra.mxu0 0.0
        %1097 = vmatpush.msra.mxu0 0.0
        %1098 = vmatpush.msra.mxu0 0.0
        %1099 = vmatpush.msra.mxu0 0.0
        %1100 = vmatpush.msra.mxu0 %v1091
        %1101 = vmatpush.msra.mxu0 %v1090
        %1102 = vmatpush.msra.mxu0 %v1089
        %1103 = vmatpush.msra.mxu0 %v1088
        %1104 = vmatpush.msra.mxu0 %v1087
        %1105 = vmatpush.msra.mxu0 %v1086
        %1106 = vmatpush.msra.mxu0 %v1085
        %1107 = vmatpush.msra.mxu0 %v1084
        %1108 = vmatmul.f32.gmra.mxu0 %v960
        %v1109 = vpop.f32.mrf.mxu0
        %v1110 = vadd.f32 0.0, %v1109
        %1111 = vmatmul.f32.gmra.mxu0 %v963
        %v1112 = vpop.f32.mrf.mxu0
        %v1113 = vadd.f32 0.0, %v1112
        %1114 = vdwg.mxu0
        %s1115 = scalar_lea.vmem %s756, 64 [#allocation12]
        %v1116 = vld [vmem:[%s1115] sm:$0xff]
        %v1117 = vld [vmem:[%s1115 + $0x8] sm:$0xff]
        %v1118 = vld [vmem:[%s1115 + $0x10] sm:$0xff]
        %v1119 = vld [vmem:[%s1115 + $0x18] sm:$0xff]
        %v1120 = vld [vmem:[%s1115 + $0x20] sm:$0xff]
        %v1121 = vld [vmem:[%s1115 + $0x28] sm:$0xff]
        %v1122 = vld [vmem:[%s1115 + $0x30] sm:$0xff]
        %v1123 = vld [vmem:[%s1115 + $0x38] sm:$0xff]
        %1124 = vmatpush.msra.mxu0 0.0
        %1125 = vmatpush.msra.mxu0 0.0
        %1126 = vmatpush.msra.mxu0 0.0
        %1127 = vmatpush.msra.mxu0 0.0
        %1128 = vmatpush.msra.mxu0 0.0
        %1129 = vmatpush.msra.mxu0 0.0
        %1130 = vmatpush.msra.mxu0 0.0
        %1131 = vmatpush.msra.mxu0 0.0
        %1132 = vmatpush.msra.mxu0 %v1123
        %1133 = vmatpush.msra.mxu0 %v1122
        %1134 = vmatpush.msra.mxu0 %v1121
        %1135 = vmatpush.msra.mxu0 %v1120
        %1136 = vmatpush.msra.mxu0 %v1119
        %1137 = vmatpush.msra.mxu0 %v1118
        %1138 = vmatpush.msra.mxu0 %v1117
        %1139 = vmatpush.msra.mxu0 %v1116
        %1140 = vmatmul.f32.gmra.mxu0 %v960
        %v1141 = vpop.f32.mrf.mxu0
        %v1142 = vadd.f32 0.0, %v1141
        %1143 = vmatmul.f32.gmra.mxu0 %v963
        %v1144 = vpop.f32.mrf.mxu0
        %v1145 = vadd.f32 0.0, %v1144
        %1146 = vdwg.mxu0
        %s1147 = scalar_lea.vmem %s756, 128 [#allocation12]
        %v1148 = vld [vmem:[%s1147] sm:$0xff]
        %v1149 = vld [vmem:[%s1147 + $0x8] sm:$0xff]
        %v1150 = vld [vmem:[%s1147 + $0x10] sm:$0xff]
        %v1151 = vld [vmem:[%s1147 + $0x18] sm:$0xff]
        %v1152 = vld [vmem:[%s1147 + $0x20] sm:$0xff]
        %v1153 = vld [vmem:[%s1147 + $0x28] sm:$0xff]
        %v1154 = vld [vmem:[%s1147 + $0x30] sm:$0xff]
        %v1155 = vld [vmem:[%s1147 + $0x38] sm:$0xff]
        %1156 = vmatpush.msra.mxu0 0.0
        %1157 = vmatpush.msra.mxu0 0.0
        %1158 = vmatpush.msra.mxu0 0.0
        %1159 = vmatpush.msra.mxu0 0.0
        %1160 = vmatpush.msra.mxu0 0.0
        %1161 = vmatpush.msra.mxu0 0.0
        %1162 = vmatpush.msra.mxu0 0.0
        %1163 = vmatpush.msra.mxu0 0.0
        %1164 = vmatpush.msra.mxu0 %v1155
        %1165 = vmatpush.msra.mxu0 %v1154
        %1166 = vmatpush.msra.mxu0 %v1153
        %1167 = vmatpush.msra.mxu0 %v1152
        %1168 = vmatpush.msra.mxu0 %v1151
        %1169 = vmatpush.msra.mxu0 %v1150
        %1170 = vmatpush.msra.mxu0 %v1149
        %1171 = vmatpush.msra.mxu0 %v1148
        %1172 = vmatmul.f32.gmra.mxu0 %v960
        %v1173 = vpop.f32.mrf.mxu0
        %v1174 = vadd.f32 0.0, %v1173
        %1175 = vmatmul.f32.gmra.mxu0 %v963
        %v1176 = vpop.f32.mrf.mxu0
        %v1177 = vadd.f32 0.0, %v1176
        %1178 = vdwg.mxu0
        %s1179 = scalar_lea.vmem %s756, 192 [#allocation12]
        %v1180 = vld [vmem:[%s1179] sm:$0xff]
        %v1181 = vld [vmem:[%s1179 + $0x8] sm:$0xff]
        %v1182 = vld [vmem:[%s1179 + $0x10] sm:$0xff]
        %v1183 = vld [vmem:[%s1179 + $0x18] sm:$0xff]
        %v1184 = vld [vmem:[%s1179 + $0x20] sm:$0xff]
        %v1185 = vld [vmem:[%s1179 + $0x28] sm:$0xff]
        %v1186 = vld [vmem:[%s1179 + $0x30] sm:$0xff]
        %v1187 = vld [vmem:[%s1179 + $0x38] sm:$0xff]
        %1188 = vmatpush.msra.mxu0 0.0
        %1189 = vmatpush.msra.mxu0 0.0
        %1190 = vmatpush.msra.mxu0 0.0
        %1191 = vmatpush.msra.mxu0 0.0
        %1192 = vmatpush.msra.mxu0 0.0
        %1193 = vmatpush.msra.mxu0 0.0
        %1194 = vmatpush.msra.mxu0 0.0
        %1195 = vmatpush.msra.mxu0 0.0
        %1196 = vmatpush.msra.mxu0 %v1187
        %1197 = vmatpush.msra.mxu0 %v1186
        %1198 = vmatpush.msra.mxu0 %v1185
        %1199 = vmatpush.msra.mxu0 %v1184
        %1200 = vmatpush.msra.mxu0 %v1183
        %1201 = vmatpush.msra.mxu0 %v1182
        %1202 = vmatpush.msra.mxu0 %v1181
        %1203 = vmatpush.msra.mxu0 %v1180
        %1204 = vmatmul.f32.gmra.mxu0 %v960
        %v1205 = vpop.f32.mrf.mxu0
        %v1206 = vadd.f32 0.0, %v1205
        %1207 = vmatmul.f32.gmra.mxu0 %v963
        %v1208 = vpop.f32.mrf.mxu0
        %v1209 = vadd.f32 0.0, %v1208
        %1210 = vdwg.mxu0
        %v1211 = vld [vmem:[%s766] sm:$0xff]
        %v1212 = vld [vmem:[%s766 + $0x8] sm:$0xff]
        %v1213 = vld [vmem:[%s766 + $0x10] sm:$0xff]
        %v1214 = vld [vmem:[%s766 + $0x18] sm:$0xff]
        %v1215 = vld [vmem:[%s766 + $0x20] sm:$0xff]
        %v1216 = vld [vmem:[%s766 + $0x28] sm:$0xff]
        %v1217 = vld [vmem:[%s766 + $0x30] sm:$0xff]
        %v1218 = vld [vmem:[%s766 + $0x38] sm:$0xff]
        %1219 = vmatpush.msra.mxu0 0.0
        %1220 = vmatpush.msra.mxu0 0.0
        %1221 = vmatpush.msra.mxu0 0.0
        %1222 = vmatpush.msra.mxu0 0.0
        %1223 = vmatpush.msra.mxu0 0.0
        %1224 = vmatpush.msra.mxu0 0.0
        %1225 = vmatpush.msra.mxu0 0.0
        %1226 = vmatpush.msra.mxu0 0.0
        %1227 = vmatpush.msra.mxu0 %v1218
        %1228 = vmatpush.msra.mxu0 %v1217
        %1229 = vmatpush.msra.mxu0 %v1216
        %1230 = vmatpush.msra.mxu0 %v1215
        %1231 = vmatpush.msra.mxu0 %v1214
        %1232 = vmatpush.msra.mxu0 %v1213
        %1233 = vmatpush.msra.mxu0 %v1212
        %1234 = vmatpush.msra.mxu0 %v1211
        %1235 = vmatmul.f32.gmra.mxu0 %v960
        %v1236 = vpop.f32.mrf.mxu0
        %v1237 = vadd.f32 0.0, %v1236
        %1238 = vmatmul.f32.gmra.mxu0 %v963
        %v1239 = vpop.f32.mrf.mxu0
        %v1240 = vadd.f32 0.0, %v1239
        %1241 = vdwg.mxu0
        %s1242 = scalar_lea.vmem %s766, 64 [#allocation13]
        %v1243 = vld [vmem:[%s1242] sm:$0xff]
        %v1244 = vld [vmem:[%s1242 + $0x8] sm:$0xff]
        %v1245 = vld [vmem:[%s1242 + $0x10] sm:$0xff]
        %v1246 = vld [vmem:[%s1242 + $0x18] sm:$0xff]
        %v1247 = vld [vmem:[%s1242 + $0x20] sm:$0xff]
        %v1248 = vld [vmem:[%s1242 + $0x28] sm:$0xff]
        %v1249 = vld [vmem:[%s1242 + $0x30] sm:$0xff]
        %v1250 = vld [vmem:[%s1242 + $0x38] sm:$0xff]
        %1251 = vmatpush.msra.mxu0 0.0
        %1252 = vmatpush.msra.mxu0 0.0
        %1253 = vmatpush.msra.mxu0 0.0
        %1254 = vmatpush.msra.mxu0 0.0
        %1255 = vmatpush.msra.mxu0 0.0
        %1256 = vmatpush.msra.mxu0 0.0
        %1257 = vmatpush.msra.mxu0 0.0
        %1258 = vmatpush.msra.mxu0 0.0
        %1259 = vmatpush.msra.mxu0 %v1250
        %1260 = vmatpush.msra.mxu0 %v1249
        %1261 = vmatpush.msra.mxu0 %v1248
        %1262 = vmatpush.msra.mxu0 %v1247
        %1263 = vmatpush.msra.mxu0 %v1246
        %1264 = vmatpush.msra.mxu0 %v1245
        %1265 = vmatpush.msra.mxu0 %v1244
        %1266 = vmatpush.msra.mxu0 %v1243
        %1267 = vmatmul.f32.gmra.mxu0 %v960
        %v1268 = vpop.f32.mrf.mxu0
        %v1269 = vadd.f32 0.0, %v1268
        %1270 = vmatmul.f32.gmra.mxu0 %v963
        %v1271 = vpop.f32.mrf.mxu0
        %v1272 = vadd.f32 0.0, %v1271
        %1273 = vdwg.mxu0
        %s1274 = scalar_lea.vmem %s766, 128 [#allocation13]
        %v1275 = vld [vmem:[%s1274] sm:$0xff]
        %v1276 = vld [vmem:[%s1274 + $0x8] sm:$0xff]
        %v1277 = vld [vmem:[%s1274 + $0x10] sm:$0xff]
        %v1278 = vld [vmem:[%s1274 + $0x18] sm:$0xff]
        %v1279 = vld [vmem:[%s1274 + $0x20] sm:$0xff]
        %v1280 = vld [vmem:[%s1274 + $0x28] sm:$0xff]
        %v1281 = vld [vmem:[%s1274 + $0x30] sm:$0xff]
        %v1282 = vld [vmem:[%s1274 + $0x38] sm:$0xff]
        %1283 = vmatpush.msra.mxu0 0.0
        %1284 = vmatpush.msra.mxu0 0.0
        %1285 = vmatpush.msra.mxu0 0.0
        %1286 = vmatpush.msra.mxu0 0.0
        %1287 = vmatpush.msra.mxu0 0.0
        %1288 = vmatpush.msra.mxu0 0.0
        %1289 = vmatpush.msra.mxu0 0.0
        %1290 = vmatpush.msra.mxu0 0.0
        %1291 = vmatpush.msra.mxu0 %v1282
        %1292 = vmatpush.msra.mxu0 %v1281
        %1293 = vmatpush.msra.mxu0 %v1280
        %1294 = vmatpush.msra.mxu0 %v1279
        %1295 = vmatpush.msra.mxu0 %v1278
        %1296 = vmatpush.msra.mxu0 %v1277
        %1297 = vmatpush.msra.mxu0 %v1276
        %1298 = vmatpush.msra.mxu0 %v1275
        %1299 = vmatmul.f32.gmra.mxu0 %v960
        %v1300 = vpop.f32.mrf.mxu0
        %v1301 = vadd.f32 0.0, %v1300
        %1302 = vmatmul.f32.gmra.mxu0 %v963
        %v1303 = vpop.f32.mrf.mxu0
        %v1304 = vadd.f32 0.0, %v1303
        %1305 = vdwg.mxu0
        %s1306 = scalar_lea.vmem %s766, 192 [#allocation13]
        %v1307 = vld [vmem:[%s1306] sm:$0xff]
        %v1308 = vld [vmem:[%s1306 + $0x8] sm:$0xff]
        %v1309 = vld [vmem:[%s1306 + $0x10] sm:$0xff]
        %v1310 = vld [vmem:[%s1306 + $0x18] sm:$0xff]
        %v1311 = vld [vmem:[%s1306 + $0x20] sm:$0xff]
        %v1312 = vld [vmem:[%s1306 + $0x28] sm:$0xff]
        %v1313 = vld [vmem:[%s1306 + $0x30] sm:$0xff]
        %v1314 = vld [vmem:[%s1306 + $0x38] sm:$0xff]
        %1315 = vmatpush.msra.mxu0 0.0
        %1316 = vmatpush.msra.mxu0 0.0
        %1317 = vmatpush.msra.mxu0 0.0
        %1318 = vmatpush.msra.mxu0 0.0
        %1319 = vmatpush.msra.mxu0 0.0
        %1320 = vmatpush.msra.mxu0 0.0
        %1321 = vmatpush.msra.mxu0 0.0
        %1322 = vmatpush.msra.mxu0 0.0
        %1323 = vmatpush.msra.mxu0 %v1314
        %1324 = vmatpush.msra.mxu0 %v1313
        %1325 = vmatpush.msra.mxu0 %v1312
        %1326 = vmatpush.msra.mxu0 %v1311
        %1327 = vmatpush.msra.mxu0 %v1310
        %1328 = vmatpush.msra.mxu0 %v1309
        %1329 = vmatpush.msra.mxu0 %v1308
        %1330 = vmatpush.msra.mxu0 %v1307
        %1331 = vmatmul.f32.gmra.mxu0 %v960
        %v1332 = vpop.f32.mrf.mxu0
        %v1333 = vadd.f32 0.0, %v1332
        %1334 = vmatmul.f32.gmra.mxu0 %v963
        %v1335 = vpop.f32.mrf.mxu0
        %v1336 = vadd.f32 0.0, %v1335
        %1337 = vdwg.mxu0
        %v1339 = vsel %vm958, %v983, 0
        %v1342 = vsel %vm958, %v986, 0
        %v1345 = vsel %vm958, %v1015, 0
        %v1348 = vsel %vm958, %v1018, 0
        %v1351 = vsel %vm958, %v1047, 0
        %v1354 = vsel %vm958, %v1050, 0
        %v1357 = vsel %vm958, %v1079, 0
        %v1360 = vsel %vm958, %v1082, 0
        %v1363 = vsel %vm958, %v1110, 0
        %v1366 = vsel %vm958, %v1113, 0
        %v1369 = vsel %vm958, %v1142, 0
        %v1372 = vsel %vm958, %v1145, 0
        %v1375 = vsel %vm958, %v1174, 0
        %v1378 = vsel %vm958, %v1177, 0
        %v1381 = vsel %vm958, %v1206, 0
        %v1384 = vsel %vm958, %v1209, 0
        %1386 = vmatpush.xpose.msra.mxu0 0.0
        %1387 = vmatpush.xpose.msra.mxu0 0.0
        %1388 = vmatpush.xpose.msra.mxu0 0.0
        %1389 = vmatpush.xpose.msra.mxu0 0.0
        %1390 = vmatpush.xpose.msra.mxu0 0.0
        %1391 = vmatpush.xpose.msra.mxu0 0.0
        %1392 = vmatpush.xpose.msra.mxu0 0.0
        %1393 = vmatpush.xpose.msra.mxu0 0.0
        %1394 = vmatpush.xpose.msra.mxu0 %v1384
        %1395 = vmatpush.xpose.msra.mxu0 %v1381
        %1396 = vmatpush.xpose.msra.mxu0 %v1378
        %1397 = vmatpush.xpose.msra.mxu0 %v1375
        %1398 = vmatpush.xpose.msra.mxu0 %v1372
        %1399 = vmatpush.xpose.msra.mxu0 %v1369
        %1400 = vmatpush.xpose.msra.mxu0 %v1366
        %1401 = vmatpush.xpose.msra.mxu0 %v1363
        %1402 = vmatmul.f32.gmra.mxu0 %v1339
        %v1403 = vpop.f32.mrf.mxu0
        %v1404 = vadd.f32 %v942, %v1403
        %1405 = vmatmul.f32.gmra.mxu0 %v1342
        %v1406 = vpop.f32.mrf.mxu0
        %v1407 = vadd.f32 %v943, %v1406
        %1408 = vmatmul.f32.gmra.mxu0 %v1345
        %v1409 = vpop.f32.mrf.mxu0
        %v1410 = vadd.f32 %v944, %v1409
        %1411 = vmatmul.f32.gmra.mxu0 %v1348
        %v1412 = vpop.f32.mrf.mxu0
        %v1413 = vadd.f32 %v945, %v1412
        %1414 = vmatmul.f32.gmra.mxu0 %v1351
        %v1415 = vpop.f32.mrf.mxu0
        %v1416 = vadd.f32 %v946, %v1415
        %1417 = vmatmul.f32.gmra.mxu0 %v1354
        %v1418 = vpop.f32.mrf.mxu0
        %v1419 = vadd.f32 %v947, %v1418
        %1420 = vmatmul.f32.gmra.mxu0 %v1357
        %v1421 = vpop.f32.mrf.mxu0
        %v1422 = vadd.f32 %v948, %v1421
        %1423 = vmatmul.f32.gmra.mxu0 %v1360
        %v1424 = vpop.f32.mrf.mxu0
        %v1425 = vadd.f32 %v949, %v1424
        %1426 = vdwg.mxu0
        %v1427 = vsel %vm958, %v1404, -inf
        %1428 = vmax.xlane.f32.xlu0 %v1427
        %v1429 = vpop.xlane.xlu0 %1428
        %v1430 = vsel %vm958, %v1407, -inf
        %1431 = vmax.xlane.f32.xlu0 %v1430
        %v1432 = vpop.xlane.xlu0 %1431
        %v1433 = vsel %vm958, %v1410, -inf
        %1434 = vmax.xlane.f32.xlu0 %v1433
        %v1435 = vpop.xlane.xlu0 %1434
        %v1436 = vsel %vm958, %v1413, -inf
        %1437 = vmax.xlane.f32.xlu0 %v1436
        %v1438 = vpop.xlane.xlu0 %1437
        %v1439 = vsel %vm958, %v1416, -inf
        %1440 = vmax.xlane.f32.xlu0 %v1439
        %v1441 = vpop.xlane.xlu0 %1440
        %v1442 = vsel %vm958, %v1419, -inf
        %1443 = vmax.xlane.f32.xlu0 %v1442
        %v1444 = vpop.xlane.xlu0 %1443
        %v1445 = vsel %vm958, %v1422, -inf
        %1446 = vmax.xlane.f32.xlu0 %v1445
        %v1447 = vpop.xlane.xlu0 %1446
        %v1448 = vsel %vm958, %v1425, -inf
        %1449 = vmax.xlane.f32.xlu0 %v1448
        %v1450 = vpop.xlane.xlu0 %1449
        %v1451 = vsub.f32 %v1404, %v1429
        %v1452 = vsub.f32 %v1407, %v1432
        %v1453 = vsub.f32 %v1410, %v1435
        %v1454 = vsub.f32 %v1413, %v1438
        %v1455 = vsub.f32 %v1416, %v1441
        %v1456 = vsub.f32 %v1419, %v1444
        %v1457 = vsub.f32 %v1422, %v1447
        %v1458 = vsub.f32 %v1425, %v1450
        %v1459 = vmul.f32 %v1451, 1.442695
        %v1460 = vpow.pop %v1459
        %v1461 = vmul.f32 %v1452, 1.442695
        %v1462 = vpow.pop %v1461
        %v1463 = vmul.f32 %v1453, 1.442695
        %v1464 = vpow.pop %v1463
        %v1465 = vmul.f32 %v1454, 1.442695
        %v1466 = vpow.pop %v1465
        %v1467 = vmul.f32 %v1455, 1.442695
        %v1468 = vpow.pop %v1467
        %v1469 = vmul.f32 %v1456, 1.442695
        %v1470 = vpow.pop %v1469
        %v1471 = vmul.f32 %v1457, 1.442695
        %v1472 = vpow.pop %v1471
        %v1473 = vmul.f32 %v1458, 1.442695
        %v1474 = vpow.pop %v1473
        %v1475 = vsel %vm958, %v1460, 0.0
        %1476 = vadd.xlane.f32.xlu0 %v1475
        %v1477 = vpop.xlane.xlu0 %1476
        %v1478 = vsel %vm958, %v1462, 0.0
        %1479 = vadd.xlane.f32.xlu0 %v1478
        %v1480 = vpop.xlane.xlu0 %1479
        %v1481 = vsel %vm958, %v1464, 0.0
        %1482 = vadd.xlane.f32.xlu0 %v1481
        %v1483 = vpop.xlane.xlu0 %1482
        %v1484 = vsel %vm958, %v1466, 0.0
        %1485 = vadd.xlane.f32.xlu0 %v1484
        %v1486 = vpop.xlane.xlu0 %1485
        %v1487 = vsel %vm958, %v1468, 0.0
        %1488 = vadd.xlane.f32.xlu0 %v1487
        %v1489 = vpop.xlane.xlu0 %1488
        %v1490 = vsel %vm958, %v1470, 0.0
        %1491 = vadd.xlane.f32.xlu0 %v1490
        %v1492 = vpop.xlane.xlu0 %1491
        %v1493 = vsel %vm958, %v1472, 0.0
        %1494 = vadd.xlane.f32.xlu0 %v1493
        %v1495 = vpop.xlane.xlu0 %1494
        %v1496 = vsel %vm958, %v1474, 0.0
        %1497 = vadd.xlane.f32.xlu0 %v1496
        %v1498 = vpop.xlane.xlu0 %1497
        %v1499 = vrcp.pop %v1477
        %v1500 = vmul.f32 %v1477, %v1499
        %v1501 = vsub.f32 1.0, %v1500
        %v1502 = vmul.f32 %v1499, %v1501
        %v1503 = vadd.f32 %v1499, %v1502
        %vm1504 = vweird.f32 %v1477
        %vm1505 = vweird.f32 %v1499
        %vm1506 = vmor %vm1504, %vm1505
        %v1507 = vsel %vm1506, %v1499, %v1503
        %v1508 = vand.u32 2147483647, %v1477
        %vm1509 = vcmp.eq.f32.partialorder %v1508, 8.507059e+37
        %v1510 = vand.u32 %v1477, 2147483648
        %v1511 = vor.u32 1.1754944e-38, %v1510
        %v1512 = vsel %vm1509, %v1511, %v1507
        %v1513 = vrcp.pop %v1480
        %v1514 = vmul.f32 %v1480, %v1513
        %v1515 = vsub.f32 1.0, %v1514
        %v1516 = vmul.f32 %v1513, %v1515
        %v1517 = vadd.f32 %v1513, %v1516
        %vm1518 = vweird.f32 %v1480
        %vm1519 = vweird.f32 %v1513
        %vm1520 = vmor %vm1518, %vm1519
        %v1521 = vsel %vm1520, %v1513, %v1517
        %v1522 = vand.u32 2147483647, %v1480
        %vm1523 = vcmp.eq.f32.partialorder %v1522, 8.507059e+37
        %v1524 = vand.u32 %v1480, 2147483648
        %v1525 = vor.u32 1.1754944e-38, %v1524
        %v1526 = vsel %vm1523, %v1525, %v1521
        %v1527 = vrcp.pop %v1483
        %v1528 = vmul.f32 %v1483, %v1527
        %v1529 = vsub.f32 1.0, %v1528
        %v1530 = vmul.f32 %v1527, %v1529
        %v1531 = vadd.f32 %v1527, %v1530
        %vm1532 = vweird.f32 %v1483
        %vm1533 = vweird.f32 %v1527
        %vm1534 = vmor %vm1532, %vm1533
        %v1535 = vsel %vm1534, %v1527, %v1531
        %v1536 = vand.u32 2147483647, %v1483
        %vm1537 = vcmp.eq.f32.partialorder %v1536, 8.507059e+37
        %v1538 = vand.u32 %v1483, 2147483648
        %v1539 = vor.u32 1.1754944e-38, %v1538
        %v1540 = vsel %vm1537, %v1539, %v1535
        %v1541 = vrcp.pop %v1486
        %v1542 = vmul.f32 %v1486, %v1541
        %v1543 = vsub.f32 1.0, %v1542
        %v1544 = vmul.f32 %v1541, %v1543
        %v1545 = vadd.f32 %v1541, %v1544
        %vm1546 = vweird.f32 %v1486
        %vm1547 = vweird.f32 %v1541
        %vm1548 = vmor %vm1546, %vm1547
        %v1549 = vsel %vm1548, %v1541, %v1545
        %v1550 = vand.u32 2147483647, %v1486
        %vm1551 = vcmp.eq.f32.partialorder %v1550, 8.507059e+37
        %v1552 = vand.u32 %v1486, 2147483648
        %v1553 = vor.u32 1.1754944e-38, %v1552
        %v1554 = vsel %vm1551, %v1553, %v1549
        %v1555 = vrcp.pop %v1489
        %v1556 = vmul.f32 %v1489, %v1555
        %v1557 = vsub.f32 1.0, %v1556
        %v1558 = vmul.f32 %v1555, %v1557
        %v1559 = vadd.f32 %v1555, %v1558
        %vm1560 = vweird.f32 %v1489
        %vm1561 = vweird.f32 %v1555
        %vm1562 = vmor %vm1560, %vm1561
        %v1563 = vsel %vm1562, %v1555, %v1559
        %v1564 = vand.u32 2147483647, %v1489
        %vm1565 = vcmp.eq.f32.partialorder %v1564, 8.507059e+37
        %v1566 = vand.u32 %v1489, 2147483648
        %v1567 = vor.u32 1.1754944e-38, %v1566
        %v1568 = vsel %vm1565, %v1567, %v1563
        %v1569 = vrcp.pop %v1492
        %v1570 = vmul.f32 %v1492, %v1569
        %v1571 = vsub.f32 1.0, %v1570
        %v1572 = vmul.f32 %v1569, %v1571
        %v1573 = vadd.f32 %v1569, %v1572
        %vm1574 = vweird.f32 %v1492
        %vm1575 = vweird.f32 %v1569
        %vm1576 = vmor %vm1574, %vm1575
        %v1577 = vsel %vm1576, %v1569, %v1573
        %v1578 = vand.u32 2147483647, %v1492
        %vm1579 = vcmp.eq.f32.partialorder %v1578, 8.507059e+37
        %v1580 = vand.u32 %v1492, 2147483648
        %v1581 = vor.u32 1.1754944e-38, %v1580
        %v1582 = vsel %vm1579, %v1581, %v1577
        %v1583 = vrcp.pop %v1495
        %v1584 = vmul.f32 %v1495, %v1583
        %v1585 = vsub.f32 1.0, %v1584
        %v1586 = vmul.f32 %v1583, %v1585
        %v1587 = vadd.f32 %v1583, %v1586
        %vm1588 = vweird.f32 %v1495
        %vm1589 = vweird.f32 %v1583
        %vm1590 = vmor %vm1588, %vm1589
        %v1591 = vsel %vm1590, %v1583, %v1587
        %v1592 = vand.u32 2147483647, %v1495
        %vm1593 = vcmp.eq.f32.partialorder %v1592, 8.507059e+37
        %v1594 = vand.u32 %v1495, 2147483648
        %v1595 = vor.u32 1.1754944e-38, %v1594
        %v1596 = vsel %vm1593, %v1595, %v1591
        %v1597 = vrcp.pop %v1498
        %v1598 = vmul.f32 %v1498, %v1597
        %v1599 = vsub.f32 1.0, %v1598
        %v1600 = vmul.f32 %v1597, %v1599
        %v1601 = vadd.f32 %v1597, %v1600
        %vm1602 = vweird.f32 %v1498
        %vm1603 = vweird.f32 %v1597
        %vm1604 = vmor %vm1602, %vm1603
        %v1605 = vsel %vm1604, %v1597, %v1601
        %v1606 = vand.u32 2147483647, %v1498
        %vm1607 = vcmp.eq.f32.partialorder %v1606, 8.507059e+37
        %v1608 = vand.u32 %v1498, 2147483648
        %v1609 = vor.u32 1.1754944e-38, %v1608
        %v1610 = vsel %vm1607, %v1609, %v1605
        %v1611 = vmul.f32 %v1460, %v1512
        %v1612 = vmul.f32 %v1462, %v1526
        %v1613 = vmul.f32 %v1464, %v1540
        %v1614 = vmul.f32 %v1466, %v1554
        %v1615 = vmul.f32 %v1468, %v1568
        %v1616 = vmul.f32 %v1470, %v1582
        %v1617 = vmul.f32 %v1472, %v1596
        %v1618 = vmul.f32 %v1474, %v1610
        %v1620 = vsel %vm958, %v1611, 0
        %v1623 = vsel %vm958, %v1612, 0
        %v1626 = vsel %vm958, %v1613, 0
        %v1629 = vsel %vm958, %v1614, 0
        %v1632 = vsel %vm958, %v1615, 0
        %v1635 = vsel %vm958, %v1616, 0
        %v1638 = vsel %vm958, %v1617, 0
        %v1641 = vsel %vm958, %v1618, 0
        %1643 = vmatpush.msra.mxu0 0.0
        %1644 = vmatpush.msra.mxu0 0.0
        %1645 = vmatpush.msra.mxu0 0.0
        %1646 = vmatpush.msra.mxu0 0.0
        %1647 = vmatpush.msra.mxu0 0.0
        %1648 = vmatpush.msra.mxu0 0.0
        %1649 = vmatpush.msra.mxu0 0.0
        %1650 = vmatpush.msra.mxu0 0.0
        %1651 = vmatpush.msra.mxu0 %v1336
        %1652 = vmatpush.msra.mxu0 %v1333
        %1653 = vmatpush.msra.mxu0 %v1304
        %1654 = vmatpush.msra.mxu0 %v1301
        %1655 = vmatpush.msra.mxu0 %v1272
        %1656 = vmatpush.msra.mxu0 %v1269
        %1657 = vmatpush.msra.mxu0 %v1240
        %1658 = vmatpush.msra.mxu0 %v1237
        %1659 = vmatmul.f32.gmra.mxu0 %v1620
        %v1660 = vpop.f32.mrf.mxu0
        %v1661 = vadd.f32 0.0, %v1660
        %1662 = vmatmul.f32.gmra.mxu0 %v1623
        %v1663 = vpop.f32.mrf.mxu0
        %v1664 = vadd.f32 0.0, %v1663
        %1665 = vmatmul.f32.gmra.mxu0 %v1626
        %v1666 = vpop.f32.mrf.mxu0
        %v1667 = vadd.f32 0.0, %v1666
        %1668 = vmatmul.f32.gmra.mxu0 %v1629
        %v1669 = vpop.f32.mrf.mxu0
        %v1670 = vadd.f32 0.0, %v1669
        %1671 = vmatmul.f32.gmra.mxu0 %v1632
        %v1672 = vpop.f32.mrf.mxu0
        %v1673 = vadd.f32 0.0, %v1672
        %1674 = vmatmul.f32.gmra.mxu0 %v1635
        %v1675 = vpop.f32.mrf.mxu0
        %v1676 = vadd.f32 0.0, %v1675
        %1677 = vmatmul.f32.gmra.mxu0 %v1638
        %v1678 = vpop.f32.mrf.mxu0
        %v1679 = vadd.f32 0.0, %v1678
        %1680 = vmatmul.f32.gmra.mxu0 %v1641
        %v1681 = vpop.f32.mrf.mxu0
        %v1682 = vadd.f32 0.0, %v1681
        %1683 = vdwg.mxu0
        %v1684 = vld [vmem:[%s776] sm:$0xff]
        %v1685 = vld [vmem:[%s776 + $0x8] sm:$0xff]
        %v1686 = vld [vmem:[%s776 + $0x10] sm:$0xff]
        %v1687 = vld [vmem:[%s776 + $0x18] sm:$0xff]
        %v1688 = vld [vmem:[%s776 + $0x20] sm:$0xff]
        %v1689 = vld [vmem:[%s776 + $0x28] sm:$0xff]
        %v1690 = vld [vmem:[%s776 + $0x30] sm:$0xff]
        %v1691 = vld [vmem:[%s776 + $0x38] sm:$0xff]
        %s1692 = scalar_lea.vmem %s776, 64 [#allocation14]
        %v1693 = vld [vmem:[%s1692] sm:$0xff]
        %v1694 = vld [vmem:[%s1692 + $0x8] sm:$0xff]
        %v1695 = vld [vmem:[%s1692 + $0x10] sm:$0xff]
        %v1696 = vld [vmem:[%s1692 + $0x18] sm:$0xff]
        %v1697 = vld [vmem:[%s1692 + $0x20] sm:$0xff]
        %v1698 = vld [vmem:[%s1692 + $0x28] sm:$0xff]
        %v1699 = vld [vmem:[%s1692 + $0x30] sm:$0xff]
        %v1700 = vld [vmem:[%s1692 + $0x38] sm:$0xff]
        %v1702 = vsel %vm958, %v1667, 0
        %v1705 = vsel %vm958, %v1670, 0
        %1707 = vmatpush.msra.mxu0 0.0
        %1708 = vmatpush.msra.mxu0 0.0
        %1709 = vmatpush.msra.mxu0 0.0
        %1710 = vmatpush.msra.mxu0 0.0
        %1711 = vmatpush.msra.mxu0 0.0
        %1712 = vmatpush.msra.mxu0 0.0
        %1713 = vmatpush.msra.mxu0 0.0
        %1714 = vmatpush.msra.mxu0 0.0
        %1715 = vmatpush.msra.mxu0 %v1700
        %1716 = vmatpush.msra.mxu0 %v1699
        %1717 = vmatpush.msra.mxu0 %v1698
        %1718 = vmatpush.msra.mxu0 %v1697
        %1719 = vmatpush.msra.mxu0 %v1696
        %1720 = vmatpush.msra.mxu0 %v1695
        %1721 = vmatpush.msra.mxu0 %v1694
        %1722 = vmatpush.msra.mxu0 %v1693
        %1723 = vmatmul.f32.gmra.mxu0 %v1702
        %v1724 = vpop.f32.mrf.mxu0
        %v1725 = vadd.f32 0.0, %v1724
        %1726 = vmatmul.f32.gmra.mxu0 %v1705
        %v1727 = vpop.f32.mrf.mxu0
        %v1728 = vadd.f32 0.0, %v1727
        %1729 = vdwg.mxu0
        %v1731 = vsel %vm958, %v1661, 0
        %v1734 = vsel %vm958, %v1664, 0
        %1736 = vmatpush.msra.mxu0 0.0
        %1737 = vmatpush.msra.mxu0 0.0
        %1738 = vmatpush.msra.mxu0 0.0
        %1739 = vmatpush.msra.mxu0 0.0
        %1740 = vmatpush.msra.mxu0 0.0
        %1741 = vmatpush.msra.mxu0 0.0
        %1742 = vmatpush.msra.mxu0 0.0
        %1743 = vmatpush.msra.mxu0 0.0
        %1744 = vmatpush.msra.mxu0 %v1691
        %1745 = vmatpush.msra.mxu0 %v1690
        %1746 = vmatpush.msra.mxu0 %v1689
        %1747 = vmatpush.msra.mxu0 %v1688
        %1748 = vmatpush.msra.mxu0 %v1687
        %1749 = vmatpush.msra.mxu0 %v1686
        %1750 = vmatpush.msra.mxu0 %v1685
        %1751 = vmatpush.msra.mxu0 %v1684
        %1752 = vmatmul.f32.gmra.mxu0 %v1731
        %v1753 = vpop.f32.mrf.mxu0
        %v1754 = vadd.f32 %v1725, %v1753
        %1755 = vmatmul.f32.gmra.mxu0 %v1734
        %v1756 = vpop.f32.mrf.mxu0
        %v1757 = vadd.f32 %v1728, %v1756
        %1758 = vdwg.mxu0
        %s1759 = scalar_lea.vmem %s776, 128 [#allocation14]
        %v1760 = vld [vmem:[%s1759] sm:$0xff]
        %v1761 = vld [vmem:[%s1759 + $0x8] sm:$0xff]
        %v1762 = vld [vmem:[%s1759 + $0x10] sm:$0xff]
        %v1763 = vld [vmem:[%s1759 + $0x18] sm:$0xff]
        %v1764 = vld [vmem:[%s1759 + $0x20] sm:$0xff]
        %v1765 = vld [vmem:[%s1759 + $0x28] sm:$0xff]
        %v1766 = vld [vmem:[%s1759 + $0x30] sm:$0xff]
        %v1767 = vld [vmem:[%s1759 + $0x38] sm:$0xff]
        %v1769 = vsel %vm958, %v1673, 0
        %v1772 = vsel %vm958, %v1676, 0
        %1774 = vmatpush.msra.mxu0 0.0
        %1775 = vmatpush.msra.mxu0 0.0
        %1776 = vmatpush.msra.mxu0 0.0
        %1777 = vmatpush.msra.mxu0 0.0
        %1778 = vmatpush.msra.mxu0 0.0
        %1779 = vmatpush.msra.mxu0 0.0
        %1780 = vmatpush.msra.mxu0 0.0
        %1781 = vmatpush.msra.mxu0 0.0
        %1782 = vmatpush.msra.mxu0 %v1767
        %1783 = vmatpush.msra.mxu0 %v1766
        %1784 = vmatpush.msra.mxu0 %v1765
        %1785 = vmatpush.msra.mxu0 %v1764
        %1786 = vmatpush.msra.mxu0 %v1763
        %1787 = vmatpush.msra.mxu0 %v1762
        %1788 = vmatpush.msra.mxu0 %v1761
        %1789 = vmatpush.msra.mxu0 %v1760
        %1790 = vmatmul.f32.gmra.mxu0 %v1769
        %v1791 = vpop.f32.mrf.mxu0
        %v1792 = vadd.f32 0.0, %v1791
        %1793 = vmatmul.f32.gmra.mxu0 %v1772
        %v1794 = vpop.f32.mrf.mxu0
        %v1795 = vadd.f32 0.0, %v1794
        %1796 = vdwg.mxu0
        %v1797 = vadd.f32 %v1754, %v1792
        %v1798 = vadd.f32 %v1757, %v1795
        %s1799 = scalar_lea.vmem %s776, 192 [#allocation14]
        %v1800 = vld [vmem:[%s1799] sm:$0xff]
        %v1801 = vld [vmem:[%s1799 + $0x8] sm:$0xff]
        %v1802 = vld [vmem:[%s1799 + $0x10] sm:$0xff]
        %v1803 = vld [vmem:[%s1799 + $0x18] sm:$0xff]
        %v1804 = vld [vmem:[%s1799 + $0x20] sm:$0xff]
        %v1805 = vld [vmem:[%s1799 + $0x28] sm:$0xff]
        %v1806 = vld [vmem:[%s1799 + $0x30] sm:$0xff]
        %v1807 = vld [vmem:[%s1799 + $0x38] sm:$0xff]
        %v1809 = vsel %vm958, %v1679, 0
        %v1812 = vsel %vm958, %v1682, 0
        %1814 = vmatpush.msra.mxu0 0.0
        %1815 = vmatpush.msra.mxu0 0.0
        %1816 = vmatpush.msra.mxu0 0.0
        %1817 = vmatpush.msra.mxu0 0.0
        %1818 = vmatpush.msra.mxu0 0.0
        %1819 = vmatpush.msra.mxu0 0.0
        %1820 = vmatpush.msra.mxu0 0.0
        %1821 = vmatpush.msra.mxu0 0.0
        %1822 = vmatpush.msra.mxu0 %v1807
        %1823 = vmatpush.msra.mxu0 %v1806
        %1824 = vmatpush.msra.mxu0 %v1805
        %1825 = vmatpush.msra.mxu0 %v1804
        %1826 = vmatpush.msra.mxu0 %v1803
        %1827 = vmatpush.msra.mxu0 %v1802
        %1828 = vmatpush.msra.mxu0 %v1801
        %1829 = vmatpush.msra.mxu0 %v1800
        %1830 = vmatmul.f32.gmra.mxu0 %v1809
        %v1831 = vpop.f32.mrf.mxu0
        %v1832 = vadd.f32 0.0, %v1831
        %1833 = vmatmul.f32.gmra.mxu0 %v1812
        %v1834 = vpop.f32.mrf.mxu0
        %v1835 = vadd.f32 0.0, %v1834
        %1836 = vdwg.mxu0
        %v1837 = vadd.f32 %v1797, %v1832
        %v1838 = vadd.f32 %v1798, %v1835
        %v1839 = vadd.f32 %v1837, %v938
        %v1840 = vadd.f32 %v1838, %v939
        %v1841 = vsel %vm958, %v1839, 0.0
        %1842 = vadd.xlane.f32.xlu0 %v1841
        %v1843 = vpop.xlane.xlu0 %1842
        %v1844 = vsel %vm958, %v1840, 0.0
        %1845 = vadd.xlane.f32.xlu0 %v1844
        %v1846 = vpop.xlane.xlu0 %1845
        %v1847 = vrcp.pop 64.0
        %v1848 = vmul.f32 64.0, %v1847
        %v1849 = vsub.f32 1.0, %v1848
        %v1850 = vmul.f32 %v1847, %v1849
        %v1851 = vadd.f32 %v1847, %v1850
        %vm1852 = vweird.f32 %v1847
        %v1853 = vsel %vm1852, %v1847, %v1851
        %v1854 = vmul.f32 %v1843, %v1853
        %v1855 = vmul.f32 %v1846, %v1853
        %v1856 = vmul.f32 %v1839, %v1839
        %v1857 = vmul.f32 %v1840, %v1840
        %v1858 = vsel %vm958, %v1856, 0.0
        %1859 = vadd.xlane.f32.xlu0 %v1858
        %v1860 = vpop.xlane.xlu0 %1859
        %v1861 = vsel %vm958, %v1857, 0.0
        %1862 = vadd.xlane.f32.xlu0 %v1861
        %v1863 = vpop.xlane.xlu0 %1862
        %v1864 = vmul.f32 %v1860, %v1853
        %v1865 = vmul.f32 %v1863, %v1853
        %v1866 = vmul.f32 %v1854, %v1854
        %v1867 = vmul.f32 %v1855, %v1855
        %v1868 = vsub.f32 %v1864, %v1866
        %v1869 = vsub.f32 %v1865, %v1867
        %v1870 = vsub.f32 %v1839, %v1854
        %v1871 = vsub.f32 %v1840, %v1855
        %v1872 = vadd.f32 %v1868, 1e-05
        %v1873 = vadd.f32 %v1869, 1e-05
        %v1874 = vrsqrt.pop %v1872
        %v1875 = vmul.f32 %v1874, %v1872
        %v1876 = vmul.f32 %v1875, %v1874
        %v1877 = vmul.f32 0.5, %v1876
        %v1878 = vsub.f32 1.5, %v1877
        %v1879 = vmul.f32 %v1874, %v1878
        %vm1880 = vweird.f32 %v1872
        %vm1881 = vweird.f32 %v1874
        %vm1882 = vmor %vm1880, %vm1881
        %v1883 = vsel %vm1882, %v1874, %v1879
        %v1884 = vrsqrt.pop %v1873
        %v1885 = vmul.f32 %v1884, %v1873
        %v1886 = vmul.f32 %v1885, %v1884
        %v1887 = vmul.f32 0.5, %v1886
        %v1888 = vsub.f32 1.5, %v1887
        %v1889 = vmul.f32 %v1884, %v1888
        %vm1890 = vweird.f32 %v1873
        %vm1891 = vweird.f32 %v1884
        %vm1892 = vmor %vm1890, %vm1891
        %v1893 = vsel %vm1892, %v1884, %v1889
        %v1894 = vmul.f32 %v1870, %v1883
        %v1895 = vmul.f32 %v1871, %v1893
        %v1896 = vld [vmem:[#allocation9] sm:$0xff]
        %v1897 = vld [vmem:[#allocation9 + $0x8] sm:$0xff]
        %v1898 = vld [vmem:[#allocation9 + $0x10] sm:$0xff]
        %v1899 = vld [vmem:[#allocation9 + $0x18] sm:$0xff]
        %v1900 = vld [vmem:[#allocation9 + $0x20] sm:$0xff]
        %v1901 = vld [vmem:[#allocation9 + $0x28] sm:$0xff]
        %v1902 = vld [vmem:[#allocation9 + $0x30] sm:$0xff]
        %v1903 = vld [vmem:[#allocation9 + $0x38] sm:$0xff]
        %v1904 = vld [vmem:[%s786] sm:$0xff]
        %v1905 = vld [vmem:[%s786 + $0x8] sm:$0xff]
        %v1906 = vld [vmem:[%s786 + $0x10] sm:$0xff]
        %v1907 = vld [vmem:[%s786 + $0x18] sm:$0xff]
        %v1908 = vld [vmem:[%s786 + $0x20] sm:$0xff]
        %v1909 = vld [vmem:[%s786 + $0x28] sm:$0xff]
        %v1910 = vld [vmem:[%s786 + $0x30] sm:$0xff]
        %v1911 = vld [vmem:[%s786 + $0x38] sm:$0xff]
        %v1913 = vsel %vm958, %v1894, 0
        %v1916 = vsel %vm958, %v1895, 0
        %1918 = vmatpush.msra.mxu0 0.0
        %1919 = vmatpush.msra.mxu0 0.0
        %1920 = vmatpush.msra.mxu0 0.0
        %1921 = vmatpush.msra.mxu0 0.0
        %1922 = vmatpush.msra.mxu0 0.0
        %1923 = vmatpush.msra.mxu0 0.0
        %1924 = vmatpush.msra.mxu0 0.0
        %1925 = vmatpush.msra.mxu0 0.0
        %1926 = vmatpush.msra.mxu0 %v1911
        %1927 = vmatpush.msra.mxu0 %v1910
        %1928 = vmatpush.msra.mxu0 %v1909
        %1929 = vmatpush.msra.mxu0 %v1908
        %1930 = vmatpush.msra.mxu0 %v1907
        %1931 = vmatpush.msra.mxu0 %v1906
        %1932 = vmatpush.msra.mxu0 %v1905
        %1933 = vmatpush.msra.mxu0 %v1904
        %1934 = vmatmul.f32.gmra.mxu0 %v1913
        %v1935 = vpop.f32.mrf.mxu0
        %v1936 = vadd.f32 0.0, %v1935
        %1937 = vmatmul.f32.gmra.mxu0 %v1916
        %v1938 = vpop.f32.mrf.mxu0
        %v1939 = vadd.f32 0.0, %v1938
        %1940 = vdwg.mxu0
        %s1941 = scalar_lea.vmem %s786, 64 [#allocation15]
        %v1942 = vld [vmem:[%s1941] sm:$0xff]
        %v1943 = vld [vmem:[%s1941 + $0x8] sm:$0xff]
        %v1944 = vld [vmem:[%s1941 + $0x10] sm:$0xff]
        %v1945 = vld [vmem:[%s1941 + $0x18] sm:$0xff]
        %v1946 = vld [vmem:[%s1941 + $0x20] sm:$0xff]
        %v1947 = vld [vmem:[%s1941 + $0x28] sm:$0xff]
        %v1948 = vld [vmem:[%s1941 + $0x30] sm:$0xff]
        %v1949 = vld [vmem:[%s1941 + $0x38] sm:$0xff]
        %1950 = vmatpush.msra.mxu0 0.0
        %1951 = vmatpush.msra.mxu0 0.0
        %1952 = vmatpush.msra.mxu0 0.0
        %1953 = vmatpush.msra.mxu0 0.0
        %1954 = vmatpush.msra.mxu0 0.0
        %1955 = vmatpush.msra.mxu0 0.0
        %1956 = vmatpush.msra.mxu0 0.0
        %1957 = vmatpush.msra.mxu0 0.0
        %1958 = vmatpush.msra.mxu0 %v1949
        %1959 = vmatpush.msra.mxu0 %v1948
        %1960 = vmatpush.msra.mxu0 %v1947
        %1961 = vmatpush.msra.mxu0 %v1946
        %1962 = vmatpush.msra.mxu0 %v1945
        %1963 = vmatpush.msra.mxu0 %v1944
        %1964 = vmatpush.msra.mxu0 %v1943
        %1965 = vmatpush.msra.mxu0 %v1942
        %1966 = vmatmul.f32.gmra.mxu0 %v1913
        %v1967 = vpop.f32.mrf.mxu0
        %v1968 = vadd.f32 0.0, %v1967
        %1969 = vmatmul.f32.gmra.mxu0 %v1916
        %v1970 = vpop.f32.mrf.mxu0
        %v1971 = vadd.f32 0.0, %v1970
        %1972 = vdwg.mxu0
        %s1973 = scalar_lea.vmem %s786, 128 [#allocation15]
        %v1974 = vld [vmem:[%s1973] sm:$0xff]
        %v1975 = vld [vmem:[%s1973 + $0x8] sm:$0xff]
        %v1976 = vld [vmem:[%s1973 + $0x10] sm:$0xff]
        %v1977 = vld [vmem:[%s1973 + $0x18] sm:$0xff]
        %v1978 = vld [vmem:[%s1973 + $0x20] sm:$0xff]
        %v1979 = vld [vmem:[%s1973 + $0x28] sm:$0xff]
        %v1980 = vld [vmem:[%s1973 + $0x30] sm:$0xff]
        %v1981 = vld [vmem:[%s1973 + $0x38] sm:$0xff]
        %1982 = vmatpush.msra.mxu0 0.0
        %1983 = vmatpush.msra.mxu0 0.0
        %1984 = vmatpush.msra.mxu0 0.0
        %1985 = vmatpush.msra.mxu0 0.0
        %1986 = vmatpush.msra.mxu0 0.0
        %1987 = vmatpush.msra.mxu0 0.0
        %1988 = vmatpush.msra.mxu0 0.0
        %1989 = vmatpush.msra.mxu0 0.0
        %1990 = vmatpush.msra.mxu0 %v1981
        %1991 = vmatpush.msra.mxu0 %v1980
        %1992 = vmatpush.msra.mxu0 %v1979
        %1993 = vmatpush.msra.mxu0 %v1978
        %1994 = vmatpush.msra.mxu0 %v1977
        %1995 = vmatpush.msra.mxu0 %v1976
        %1996 = vmatpush.msra.mxu0 %v1975
        %1997 = vmatpush.msra.mxu0 %v1974
        %1998 = vmatmul.f32.gmra.mxu0 %v1913
        %v1999 = vpop.f32.mrf.mxu0
        %v2000 = vadd.f32 0.0, %v1999
        %2001 = vmatmul.f32.gmra.mxu0 %v1916
        %v2002 = vpop.f32.mrf.mxu0
        %v2003 = vadd.f32 0.0, %v2002
        %2004 = vdwg.mxu0
        %s2005 = scalar_lea.vmem %s786, 192 [#allocation15]
        %v2006 = vld [vmem:[%s2005] sm:$0xff]
        %v2007 = vld [vmem:[%s2005 + $0x8] sm:$0xff]
        %v2008 = vld [vmem:[%s2005 + $0x10] sm:$0xff]
        %v2009 = vld [vmem:[%s2005 + $0x18] sm:$0xff]
        %v2010 = vld [vmem:[%s2005 + $0x20] sm:$0xff]
        %v2011 = vld [vmem:[%s2005 + $0x28] sm:$0xff]
        %v2012 = vld [vmem:[%s2005 + $0x30] sm:$0xff]
        %v2013 = vld [vmem:[%s2005 + $0x38] sm:$0xff]
        %2014 = vmatpush.msra.mxu0 0.0
        %2015 = vmatpush.msra.mxu0 0.0
        %2016 = vmatpush.msra.mxu0 0.0
        %2017 = vmatpush.msra.mxu0 0.0
        %2018 = vmatpush.msra.mxu0 0.0
        %2019 = vmatpush.msra.mxu0 0.0
        %2020 = vmatpush.msra.mxu0 0.0
        %2021 = vmatpush.msra.mxu0 0.0
        %2022 = vmatpush.msra.mxu0 %v2013
        %2023 = vmatpush.msra.mxu0 %v2012
        %2024 = vmatpush.msra.mxu0 %v2011
        %2025 = vmatpush.msra.mxu0 %v2010
        %2026 = vmatpush.msra.mxu0 %v2009
        %2027 = vmatpush.msra.mxu0 %v2008
        %2028 = vmatpush.msra.mxu0 %v2007
        %2029 = vmatpush.msra.mxu0 %v2006
        %2030 = vmatmul.f32.gmra.mxu0 %v1913
        %v2031 = vpop.f32.mrf.mxu0
        %v2032 = vadd.f32 0.0, %v2031
        %2033 = vmatmul.f32.gmra.mxu0 %v1916
        %v2034 = vpop.f32.mrf.mxu0
        %v2035 = vadd.f32 0.0, %v2034
        %2036 = vdwg.mxu0
        %v2037 = vld [vmem:[%s796] sm:$0xff]
        %v2038 = vld [vmem:[%s796 + $0x8] sm:$0xff]
        %v2039 = vld [vmem:[%s796 + $0x10] sm:$0xff]
        %v2040 = vld [vmem:[%s796 + $0x18] sm:$0xff]
        %v2041 = vld [vmem:[%s796 + $0x20] sm:$0xff]
        %v2042 = vld [vmem:[%s796 + $0x28] sm:$0xff]
        %v2043 = vld [vmem:[%s796 + $0x30] sm:$0xff]
        %v2044 = vld [vmem:[%s796 + $0x38] sm:$0xff]
        %v2046 = vsel %vm958, %v940, 0
        %v2049 = vsel %vm958, %v941, 0
        %2051 = vmatpush.msra.mxu0 0.0
        %2052 = vmatpush.msra.mxu0 0.0
        %2053 = vmatpush.msra.mxu0 0.0
        %2054 = vmatpush.msra.mxu0 0.0
        %2055 = vmatpush.msra.mxu0 0.0
        %2056 = vmatpush.msra.mxu0 0.0
        %2057 = vmatpush.msra.mxu0 0.0
        %2058 = vmatpush.msra.mxu0 0.0
        %2059 = vmatpush.msra.mxu0 %v2044
        %2060 = vmatpush.msra.mxu0 %v2043
        %2061 = vmatpush.msra.mxu0 %v2042
        %2062 = vmatpush.msra.mxu0 %v2041
        %2063 = vmatpush.msra.mxu0 %v2040
        %2064 = vmatpush.msra.mxu0 %v2039
        %2065 = vmatpush.msra.mxu0 %v2038
        %2066 = vmatpush.msra.mxu0 %v2037
        %2067 = vmatmul.f32.gmra.mxu0 %v2046
        %v2068 = vpop.f32.mrf.mxu0
        %v2069 = vadd.f32 0.0, %v2068
        %2070 = vmatmul.f32.gmra.mxu0 %v2049
        %v2071 = vpop.f32.mrf.mxu0
        %v2072 = vadd.f32 0.0, %v2071
        %2073 = vdwg.mxu0
        %s2074 = scalar_lea.vmem %s796, 64 [#allocation16]
        %v2075 = vld [vmem:[%s2074] sm:$0xff]
        %v2076 = vld [vmem:[%s2074 + $0x8] sm:$0xff]
        %v2077 = vld [vmem:[%s2074 + $0x10] sm:$0xff]
        %v2078 = vld [vmem:[%s2074 + $0x18] sm:$0xff]
        %v2079 = vld [vmem:[%s2074 + $0x20] sm:$0xff]
        %v2080 = vld [vmem:[%s2074 + $0x28] sm:$0xff]
        %v2081 = vld [vmem:[%s2074 + $0x30] sm:$0xff]
        %v2082 = vld [vmem:[%s2074 + $0x38] sm:$0xff]
        %2083 = vmatpush.msra.mxu0 0.0
        %2084 = vmatpush.msra.mxu0 0.0
        %2085 = vmatpush.msra.mxu0 0.0
        %2086 = vmatpush.msra.mxu0 0.0
        %2087 = vmatpush.msra.mxu0 0.0
        %2088 = vmatpush.msra.mxu0 0.0
        %2089 = vmatpush.msra.mxu0 0.0
        %2090 = vmatpush.msra.mxu0 0.0
        %2091 = vmatpush.msra.mxu0 %v2082
        %2092 = vmatpush.msra.mxu0 %v2081
        %2093 = vmatpush.msra.mxu0 %v2080
        %2094 = vmatpush.msra.mxu0 %v2079
        %2095 = vmatpush.msra.mxu0 %v2078
        %2096 = vmatpush.msra.mxu0 %v2077
        %2097 = vmatpush.msra.mxu0 %v2076
        %2098 = vmatpush.msra.mxu0 %v2075
        %2099 = vmatmul.f32.gmra.mxu0 %v2046
        %v2100 = vpop.f32.mrf.mxu0
        %v2101 = vadd.f32 0.0, %v2100
        %2102 = vmatmul.f32.gmra.mxu0 %v2049
        %v2103 = vpop.f32.mrf.mxu0
        %v2104 = vadd.f32 0.0, %v2103
        %2105 = vdwg.mxu0
        %s2106 = scalar_lea.vmem %s796, 128 [#allocation16]
        %v2107 = vld [vmem:[%s2106] sm:$0xff]
        %v2108 = vld [vmem:[%s2106 + $0x8] sm:$0xff]
        %v2109 = vld [vmem:[%s2106 + $0x10] sm:$0xff]
        %v2110 = vld [vmem:[%s2106 + $0x18] sm:$0xff]
        %v2111 = vld [vmem:[%s2106 + $0x20] sm:$0xff]
        %v2112 = vld [vmem:[%s2106 + $0x28] sm:$0xff]
        %v2113 = vld [vmem:[%s2106 + $0x30] sm:$0xff]
        %v2114 = vld [vmem:[%s2106 + $0x38] sm:$0xff]
        %2115 = vmatpush.msra.mxu0 0.0
        %2116 = vmatpush.msra.mxu0 0.0
        %2117 = vmatpush.msra.mxu0 0.0
        %2118 = vmatpush.msra.mxu0 0.0
        %2119 = vmatpush.msra.mxu0 0.0
        %2120 = vmatpush.msra.mxu0 0.0
        %2121 = vmatpush.msra.mxu0 0.0
        %2122 = vmatpush.msra.mxu0 0.0
        %2123 = vmatpush.msra.mxu0 %v2114
        %2124 = vmatpush.msra.mxu0 %v2113
        %2125 = vmatpush.msra.mxu0 %v2112
        %2126 = vmatpush.msra.mxu0 %v2111
        %2127 = vmatpush.msra.mxu0 %v2110
        %2128 = vmatpush.msra.mxu0 %v2109
        %2129 = vmatpush.msra.mxu0 %v2108
        %2130 = vmatpush.msra.mxu0 %v2107
        %2131 = vmatmul.f32.gmra.mxu0 %v2046
        %v2132 = vpop.f32.mrf.mxu0
        %v2133 = vadd.f32 0.0, %v2132
        %2134 = vmatmul.f32.gmra.mxu0 %v2049
        %v2135 = vpop.f32.mrf.mxu0
        %v2136 = vadd.f32 0.0, %v2135
        %2137 = vdwg.mxu0
        %s2138 = scalar_lea.vmem %s796, 192 [#allocation16]
        %v2139 = vld [vmem:[%s2138] sm:$0xff]
        %v2140 = vld [vmem:[%s2138 + $0x8] sm:$0xff]
        %v2141 = vld [vmem:[%s2138 + $0x10] sm:$0xff]
        %v2142 = vld [vmem:[%s2138 + $0x18] sm:$0xff]
        %v2143 = vld [vmem:[%s2138 + $0x20] sm:$0xff]
        %v2144 = vld [vmem:[%s2138 + $0x28] sm:$0xff]
        %v2145 = vld [vmem:[%s2138 + $0x30] sm:$0xff]
        %v2146 = vld [vmem:[%s2138 + $0x38] sm:$0xff]
        %2147 = vmatpush.msra.mxu0 0.0
        %2148 = vmatpush.msra.mxu0 0.0
        %2149 = vmatpush.msra.mxu0 0.0
        %2150 = vmatpush.msra.mxu0 0.0
        %2151 = vmatpush.msra.mxu0 0.0
        %2152 = vmatpush.msra.mxu0 0.0
        %2153 = vmatpush.msra.mxu0 0.0
        %2154 = vmatpush.msra.mxu0 0.0
        %2155 = vmatpush.msra.mxu0 %v2146
        %2156 = vmatpush.msra.mxu0 %v2145
        %2157 = vmatpush.msra.mxu0 %v2144
        %2158 = vmatpush.msra.mxu0 %v2143
        %2159 = vmatpush.msra.mxu0 %v2142
        %2160 = vmatpush.msra.mxu0 %v2141
        %2161 = vmatpush.msra.mxu0 %v2140
        %2162 = vmatpush.msra.mxu0 %v2139
        %2163 = vmatmul.f32.gmra.mxu0 %v2046
        %v2164 = vpop.f32.mrf.mxu0
        %v2165 = vadd.f32 0.0, %v2164
        %2166 = vmatmul.f32.gmra.mxu0 %v2049
        %v2167 = vpop.f32.mrf.mxu0
        %v2168 = vadd.f32 0.0, %v2167
        %2169 = vdwg.mxu0
        %v2170 = vld [vmem:[%s806] sm:$0xff]
        %v2171 = vld [vmem:[%s806 + $0x8] sm:$0xff]
        %v2172 = vld [vmem:[%s806 + $0x10] sm:$0xff]
        %v2173 = vld [vmem:[%s806 + $0x18] sm:$0xff]
        %v2174 = vld [vmem:[%s806 + $0x20] sm:$0xff]
        %v2175 = vld [vmem:[%s806 + $0x28] sm:$0xff]
        %v2176 = vld [vmem:[%s806 + $0x30] sm:$0xff]
        %v2177 = vld [vmem:[%s806 + $0x38] sm:$0xff]
        %2178 = vmatpush.msra.mxu0 0.0
        %2179 = vmatpush.msra.mxu0 0.0
        %2180 = vmatpush.msra.mxu0 0.0
        %2181 = vmatpush.msra.mxu0 0.0
        %2182 = vmatpush.msra.mxu0 0.0
        %2183 = vmatpush.msra.mxu0 0.0
        %2184 = vmatpush.msra.mxu0 0.0
        %2185 = vmatpush.msra.mxu0 0.0
        %2186 = vmatpush.msra.mxu0 %v2177
        %2187 = vmatpush.msra.mxu0 %v2176
        %2188 = vmatpush.msra.mxu0 %v2175
        %2189 = vmatpush.msra.mxu0 %v2174
        %2190 = vmatpush.msra.mxu0 %v2173
        %2191 = vmatpush.msra.mxu0 %v2172
        %2192 = vmatpush.msra.mxu0 %v2171
        %2193 = vmatpush.msra.mxu0 %v2170
        %2194 = vmatmul.f32.gmra.mxu0 %v2046
        %v2195 = vpop.f32.mrf.mxu0
        %v2196 = vadd.f32 0.0, %v2195
        %2197 = vmatmul.f32.gmra.mxu0 %v2049
        %v2198 = vpop.f32.mrf.mxu0
        %v2199 = vadd.f32 0.0, %v2198
        %2200 = vdwg.mxu0
        %s2201 = scalar_lea.vmem %s806, 64 [#allocation17]
        %v2202 = vld [vmem:[%s2201] sm:$0xff]
        %v2203 = vld [vmem:[%s2201 + $0x8] sm:$0xff]
        %v2204 = vld [vmem:[%s2201 + $0x10] sm:$0xff]
        %v2205 = vld [vmem:[%s2201 + $0x18] sm:$0xff]
        %v2206 = vld [vmem:[%s2201 + $0x20] sm:$0xff]
        %v2207 = vld [vmem:[%s2201 + $0x28] sm:$0xff]
        %v2208 = vld [vmem:[%s2201 + $0x30] sm:$0xff]
        %v2209 = vld [vmem:[%s2201 + $0x38] sm:$0xff]
        %2210 = vmatpush.msra.mxu0 0.0
        %2211 = vmatpush.msra.mxu0 0.0
        %2212 = vmatpush.msra.mxu0 0.0
        %2213 = vmatpush.msra.mxu0 0.0
        %2214 = vmatpush.msra.mxu0 0.0
        %2215 = vmatpush.msra.mxu0 0.0
        %2216 = vmatpush.msra.mxu0 0.0
        %2217 = vmatpush.msra.mxu0 0.0
        %2218 = vmatpush.msra.mxu0 %v2209
        %2219 = vmatpush.msra.mxu0 %v2208
        %2220 = vmatpush.msra.mxu0 %v2207
        %2221 = vmatpush.msra.mxu0 %v2206
        %2222 = vmatpush.msra.mxu0 %v2205
        %2223 = vmatpush.msra.mxu0 %v2204
        %2224 = vmatpush.msra.mxu0 %v2203
        %2225 = vmatpush.msra.mxu0 %v2202
        %2226 = vmatmul.f32.gmra.mxu0 %v2046
        %v2227 = vpop.f32.mrf.mxu0
        %v2228 = vadd.f32 0.0, %v2227
        %2229 = vmatmul.f32.gmra.mxu0 %v2049
        %v2230 = vpop.f32.mrf.mxu0
        %v2231 = vadd.f32 0.0, %v2230
        %2232 = vdwg.mxu0
        %s2233 = scalar_lea.vmem %s806, 128 [#allocation17]
        %v2234 = vld [vmem:[%s2233] sm:$0xff]
        %v2235 = vld [vmem:[%s2233 + $0x8] sm:$0xff]
        %v2236 = vld [vmem:[%s2233 + $0x10] sm:$0xff]
        %v2237 = vld [vmem:[%s2233 + $0x18] sm:$0xff]
        %v2238 = vld [vmem:[%s2233 + $0x20] sm:$0xff]
        %v2239 = vld [vmem:[%s2233 + $0x28] sm:$0xff]
        %v2240 = vld [vmem:[%s2233 + $0x30] sm:$0xff]
        %v2241 = vld [vmem:[%s2233 + $0x38] sm:$0xff]
        %2242 = vmatpush.msra.mxu0 0.0
        %2243 = vmatpush.msra.mxu0 0.0
        %2244 = vmatpush.msra.mxu0 0.0
        %2245 = vmatpush.msra.mxu0 0.0
        %2246 = vmatpush.msra.mxu0 0.0
        %2247 = vmatpush.msra.mxu0 0.0
        %2248 = vmatpush.msra.mxu0 0.0
        %2249 = vmatpush.msra.mxu0 0.0
        %2250 = vmatpush.msra.mxu0 %v2241
        %2251 = vmatpush.msra.mxu0 %v2240
        %2252 = vmatpush.msra.mxu0 %v2239
        %2253 = vmatpush.msra.mxu0 %v2238
        %2254 = vmatpush.msra.mxu0 %v2237
        %2255 = vmatpush.msra.mxu0 %v2236
        %2256 = vmatpush.msra.mxu0 %v2235
        %2257 = vmatpush.msra.mxu0 %v2234
        %2258 = vmatmul.f32.gmra.mxu0 %v2046
        %v2259 = vpop.f32.mrf.mxu0
        %v2260 = vadd.f32 0.0, %v2259
        %2261 = vmatmul.f32.gmra.mxu0 %v2049
        %v2262 = vpop.f32.mrf.mxu0
        %v2263 = vadd.f32 0.0, %v2262
        %2264 = vdwg.mxu0
        %s2265 = scalar_lea.vmem %s806, 192 [#allocation17]
        %v2266 = vld [vmem:[%s2265] sm:$0xff]
        %v2267 = vld [vmem:[%s2265 + $0x8] sm:$0xff]
        %v2268 = vld [vmem:[%s2265 + $0x10] sm:$0xff]
        %v2269 = vld [vmem:[%s2265 + $0x18] sm:$0xff]
        %v2270 = vld [vmem:[%s2265 + $0x20] sm:$0xff]
        %v2271 = vld [vmem:[%s2265 + $0x28] sm:$0xff]
        %v2272 = vld [vmem:[%s2265 + $0x30] sm:$0xff]
        %v2273 = vld [vmem:[%s2265 + $0x38] sm:$0xff]
        %2274 = vmatpush.msra.mxu0 0.0
        %2275 = vmatpush.msra.mxu0 0.0
        %2276 = vmatpush.msra.mxu0 0.0
        %2277 = vmatpush.msra.mxu0 0.0
        %2278 = vmatpush.msra.mxu0 0.0
        %2279 = vmatpush.msra.mxu0 0.0
        %2280 = vmatpush.msra.mxu0 0.0
        %2281 = vmatpush.msra.mxu0 0.0
        %2282 = vmatpush.msra.mxu0 %v2273
        %2283 = vmatpush.msra.mxu0 %v2272
        %2284 = vmatpush.msra.mxu0 %v2271
        %2285 = vmatpush.msra.mxu0 %v2270
        %2286 = vmatpush.msra.mxu0 %v2269
        %2287 = vmatpush.msra.mxu0 %v2268
        %2288 = vmatpush.msra.mxu0 %v2267
        %2289 = vmatpush.msra.mxu0 %v2266
        %2290 = vmatmul.f32.gmra.mxu0 %v2046
        %v2291 = vpop.f32.mrf.mxu0
        %v2292 = vadd.f32 0.0, %v2291
        %2293 = vmatmul.f32.gmra.mxu0 %v2049
        %v2294 = vpop.f32.mrf.mxu0
        %v2295 = vadd.f32 0.0, %v2294
        %2296 = vdwg.mxu0
        %v2298 = vsel %vm958, %v1936, 0
        %v2301 = vsel %vm958, %v1939, 0
        %v2304 = vsel %vm958, %v1968, 0
        %v2307 = vsel %vm958, %v1971, 0
        %v2310 = vsel %vm958, %v2000, 0
        %v2313 = vsel %vm958, %v2003, 0
        %v2316 = vsel %vm958, %v2032, 0
        %v2319 = vsel %vm958, %v2035, 0
        %v2322 = vsel %vm958, %v2069, 0
        %v2325 = vsel %vm958, %v2072, 0
        %v2328 = vsel %vm958, %v2101, 0
        %v2331 = vsel %vm958, %v2104, 0
        %v2334 = vsel %vm958, %v2133, 0
        %v2337 = vsel %vm958, %v2136, 0
        %v2340 = vsel %vm958, %v2165, 0
        %v2343 = vsel %vm958, %v2168, 0
        %2345 = vmatpush.xpose.msra.mxu0 0.0
        %2346 = vmatpush.xpose.msra.mxu0 0.0
        %2347 = vmatpush.xpose.msra.mxu0 0.0
        %2348 = vmatpush.xpose.msra.mxu0 0.0
        %2349 = vmatpush.xpose.msra.mxu0 0.0
        %2350 = vmatpush.xpose.msra.mxu0 0.0
        %2351 = vmatpush.xpose.msra.mxu0 0.0
        %2352 = vmatpush.xpose.msra.mxu0 0.0
        %2353 = vmatpush.xpose.msra.mxu0 %v2343
        %2354 = vmatpush.xpose.msra.mxu0 %v2340
        %2355 = vmatpush.xpose.msra.mxu0 %v2337
        %2356 = vmatpush.xpose.msra.mxu0 %v2334
        %2357 = vmatpush.xpose.msra.mxu0 %v2331
        %2358 = vmatpush.xpose.msra.mxu0 %v2328
        %2359 = vmatpush.xpose.msra.mxu0 %v2325
        %2360 = vmatpush.xpose.msra.mxu0 %v2322
        %2361 = vmatmul.f32.gmra.mxu0 %v2298
        %v2362 = vpop.f32.mrf.mxu0
        %v2363 = vadd.f32 %v1896, %v2362
        %2364 = vmatmul.f32.gmra.mxu0 %v2301
        %v2365 = vpop.f32.mrf.mxu0
        %v2366 = vadd.f32 %v1897, %v2365
        %2367 = vmatmul.f32.gmra.mxu0 %v2304
        %v2368 = vpop.f32.mrf.mxu0
        %v2369 = vadd.f32 %v1898, %v2368
        %2370 = vmatmul.f32.gmra.mxu0 %v2307
        %v2371 = vpop.f32.mrf.mxu0
        %v2372 = vadd.f32 %v1899, %v2371
        %2373 = vmatmul.f32.gmra.mxu0 %v2310
        %v2374 = vpop.f32.mrf.mxu0
        %v2375 = vadd.f32 %v1900, %v2374
        %2376 = vmatmul.f32.gmra.mxu0 %v2313
        %v2377 = vpop.f32.mrf.mxu0
        %v2378 = vadd.f32 %v1901, %v2377
        %2379 = vmatmul.f32.gmra.mxu0 %v2316
        %v2380 = vpop.f32.mrf.mxu0
        %v2381 = vadd.f32 %v1902, %v2380
        %2382 = vmatmul.f32.gmra.mxu0 %v2319
        %v2383 = vpop.f32.mrf.mxu0
        %v2384 = vadd.f32 %v1903, %v2383
        %2385 = vdwg.mxu0
        %v2386 = vsel %vm958, %v2363, -inf
        %2387 = vmax.xlane.f32.xlu0 %v2386
        %v2388 = vpop.xlane.xlu0 %2387
        %v2389 = vsel %vm958, %v2366, -inf
        %2390 = vmax.xlane.f32.xlu0 %v2389
        %v2391 = vpop.xlane.xlu0 %2390
        %v2392 = vsel %vm958, %v2369, -inf
        %2393 = vmax.xlane.f32.xlu0 %v2392
        %v2394 = vpop.xlane.xlu0 %2393
        %v2395 = vsel %vm958, %v2372, -inf
        %2396 = vmax.xlane.f32.xlu0 %v2395
        %v2397 = vpop.xlane.xlu0 %2396
        %v2398 = vsel %vm958, %v2375, -inf
        %2399 = vmax.xlane.f32.xlu0 %v2398
        %v2400 = vpop.xlane.xlu0 %2399
        %v2401 = vsel %vm958, %v2378, -inf
        %2402 = vmax.xlane.f32.xlu0 %v2401
        %v2403 = vpop.xlane.xlu0 %2402
        %v2404 = vsel %vm958, %v2381, -inf
        %2405 = vmax.xlane.f32.xlu0 %v2404
        %v2406 = vpop.xlane.xlu0 %2405
        %v2407 = vsel %vm958, %v2384, -inf
        %2408 = vmax.xlane.f32.xlu0 %v2407
        %v2409 = vpop.xlane.xlu0 %2408
        %v2410 = vsub.f32 %v2363, %v2388
        %v2411 = vsub.f32 %v2366, %v2391
        %v2412 = vsub.f32 %v2369, %v2394
        %v2413 = vsub.f32 %v2372, %v2397
        %v2414 = vsub.f32 %v2375, %v2400
        %v2415 = vsub.f32 %v2378, %v2403
        %v2416 = vsub.f32 %v2381, %v2406
        %v2417 = vsub.f32 %v2384, %v2409
        %v2418 = vmul.f32 %v2410, 1.442695
        %v2419 = vpow.pop %v2418
        %v2420 = vmul.f32 %v2411, 1.442695
        %v2421 = vpow.pop %v2420
        %v2422 = vmul.f32 %v2412, 1.442695
        %v2423 = vpow.pop %v2422
        %v2424 = vmul.f32 %v2413, 1.442695
        %v2425 = vpow.pop %v2424
        %v2426 = vmul.f32 %v2414, 1.442695
        %v2427 = vpow.pop %v2426
        %v2428 = vmul.f32 %v2415, 1.442695
        %v2429 = vpow.pop %v2428
        %v2430 = vmul.f32 %v2416, 1.442695
        %v2431 = vpow.pop %v2430
        %v2432 = vmul.f32 %v2417, 1.442695
        %v2433 = vpow.pop %v2432
        %v2434 = vsel %vm958, %v2419, 0.0
        %2435 = vadd.xlane.f32.xlu0 %v2434
        %v2436 = vpop.xlane.xlu0 %2435
        %v2437 = vsel %vm958, %v2421, 0.0
        %2438 = vadd.xlane.f32.xlu0 %v2437
        %v2439 = vpop.xlane.xlu0 %2438
        %v2440 = vsel %vm958, %v2423, 0.0
        %2441 = vadd.xlane.f32.xlu0 %v2440
        %v2442 = vpop.xlane.xlu0 %2441
        %v2443 = vsel %vm958, %v2425, 0.0
        %2444 = vadd.xlane.f32.xlu0 %v2443
        %v2445 = vpop.xlane.xlu0 %2444
        %v2446 = vsel %vm958, %v2427, 0.0
        %2447 = vadd.xlane.f32.xlu0 %v2446
        %v2448 = vpop.xlane.xlu0 %2447
        %v2449 = vsel %vm958, %v2429, 0.0
        %2450 = vadd.xlane.f32.xlu0 %v2449
        %v2451 = vpop.xlane.xlu0 %2450
        %v2452 = vsel %vm958, %v2431, 0.0
        %2453 = vadd.xlane.f32.xlu0 %v2452
        %v2454 = vpop.xlane.xlu0 %2453
        %v2455 = vsel %vm958, %v2433, 0.0
        %2456 = vadd.xlane.f32.xlu0 %v2455
        %v2457 = vpop.xlane.xlu0 %2456
        %v2458 = vrcp.pop %v2436
        %v2459 = vmul.f32 %v2436, %v2458
        %v2460 = vsub.f32 1.0, %v2459
        %v2461 = vmul.f32 %v2458, %v2460
        %v2462 = vadd.f32 %v2458, %v2461
        %vm2463 = vweird.f32 %v2436
        %vm2464 = vweird.f32 %v2458
        %vm2465 = vmor %vm2463, %vm2464
        %v2466 = vsel %vm2465, %v2458, %v2462
        %v2467 = vand.u32 2147483647, %v2436
        %vm2468 = vcmp.eq.f32.partialorder %v2467, 8.507059e+37
        %v2469 = vand.u32 %v2436, 2147483648
        %v2470 = vor.u32 1.1754944e-38, %v2469
        %v2471 = vsel %vm2468, %v2470, %v2466
        %v2472 = vrcp.pop %v2439
        %v2473 = vmul.f32 %v2439, %v2472
        %v2474 = vsub.f32 1.0, %v2473
        %v2475 = vmul.f32 %v2472, %v2474
        %v2476 = vadd.f32 %v2472, %v2475
        %vm2477 = vweird.f32 %v2439
        %vm2478 = vweird.f32 %v2472
        %vm2479 = vmor %vm2477, %vm2478
        %v2480 = vsel %vm2479, %v2472, %v2476
        %v2481 = vand.u32 2147483647, %v2439
        %vm2482 = vcmp.eq.f32.partialorder %v2481, 8.507059e+37
        %v2483 = vand.u32 %v2439, 2147483648
        %v2484 = vor.u32 1.1754944e-38, %v2483
        %v2485 = vsel %vm2482, %v2484, %v2480
        %v2486 = vrcp.pop %v2442
        %v2487 = vmul.f32 %v2442, %v2486
        %v2488 = vsub.f32 1.0, %v2487
        %v2489 = vmul.f32 %v2486, %v2488
        %v2490 = vadd.f32 %v2486, %v2489
        %vm2491 = vweird.f32 %v2442
        %vm2492 = vweird.f32 %v2486
        %vm2493 = vmor %vm2491, %vm2492
        %v2494 = vsel %vm2493, %v2486, %v2490
        %v2495 = vand.u32 2147483647, %v2442
        %vm2496 = vcmp.eq.f32.partialorder %v2495, 8.507059e+37
        %v2497 = vand.u32 %v2442, 2147483648
        %v2498 = vor.u32 1.1754944e-38, %v2497
        %v2499 = vsel %vm2496, %v2498, %v2494
        %v2500 = vrcp.pop %v2445
        %v2501 = vmul.f32 %v2445, %v2500
        %v2502 = vsub.f32 1.0, %v2501
        %v2503 = vmul.f32 %v2500, %v2502
        %v2504 = vadd.f32 %v2500, %v2503
        %vm2505 = vweird.f32 %v2445
        %vm2506 = vweird.f32 %v2500
        %vm2507 = vmor %vm2505, %vm2506
        %v2508 = vsel %vm2507, %v2500, %v2504
        %v2509 = vand.u32 2147483647, %v2445
        %vm2510 = vcmp.eq.f32.partialorder %v2509, 8.507059e+37
        %v2511 = vand.u32 %v2445, 2147483648
        %v2512 = vor.u32 1.1754944e-38, %v2511
        %v2513 = vsel %vm2510, %v2512, %v2508
        %v2514 = vrcp.pop %v2448
        %v2515 = vmul.f32 %v2448, %v2514
        %v2516 = vsub.f32 1.0, %v2515
        %v2517 = vmul.f32 %v2514, %v2516
        %v2518 = vadd.f32 %v2514, %v2517
        %vm2519 = vweird.f32 %v2448
        %vm2520 = vweird.f32 %v2514
        %vm2521 = vmor %vm2519, %vm2520
        %v2522 = vsel %vm2521, %v2514, %v2518
        %v2523 = vand.u32 2147483647, %v2448
        %vm2524 = vcmp.eq.f32.partialorder %v2523, 8.507059e+37
        %v2525 = vand.u32 %v2448, 2147483648
        %v2526 = vor.u32 1.1754944e-38, %v2525
        %v2527 = vsel %vm2524, %v2526, %v2522
        %v2528 = vrcp.pop %v2451
        %v2529 = vmul.f32 %v2451, %v2528
        %v2530 = vsub.f32 1.0, %v2529
        %v2531 = vmul.f32 %v2528, %v2530
        %v2532 = vadd.f32 %v2528, %v2531
        %vm2533 = vweird.f32 %v2451
        %vm2534 = vweird.f32 %v2528
        %vm2535 = vmor %vm2533, %vm2534
        %v2536 = vsel %vm2535, %v2528, %v2532
        %v2537 = vand.u32 2147483647, %v2451
        %vm2538 = vcmp.eq.f32.partialorder %v2537, 8.507059e+37
        %v2539 = vand.u32 %v2451, 2147483648
        %v2540 = vor.u32 1.1754944e-38, %v2539
        %v2541 = vsel %vm2538, %v2540, %v2536
        %v2542 = vrcp.pop %v2454
        %v2543 = vmul.f32 %v2454, %v2542
        %v2544 = vsub.f32 1.0, %v2543
        %v2545 = vmul.f32 %v2542, %v2544
        %v2546 = vadd.f32 %v2542, %v2545
        %vm2547 = vweird.f32 %v2454
        %vm2548 = vweird.f32 %v2542
        %vm2549 = vmor %vm2547, %vm2548
        %v2550 = vsel %vm2549, %v2542, %v2546
        %v2551 = vand.u32 2147483647, %v2454
        %vm2552 = vcmp.eq.f32.partialorder %v2551, 8.507059e+37
        %v2553 = vand.u32 %v2454, 2147483648
        %v2554 = vor.u32 1.1754944e-38, %v2553
        %v2555 = vsel %vm2552, %v2554, %v2550
        %v2556 = vrcp.pop %v2457
        %v2557 = vmul.f32 %v2457, %v2556
        %v2558 = vsub.f32 1.0, %v2557
        %v2559 = vmul.f32 %v2556, %v2558
        %v2560 = vadd.f32 %v2556, %v2559
        %vm2561 = vweird.f32 %v2457
        %vm2562 = vweird.f32 %v2556
        %vm2563 = vmor %vm2561, %vm2562
        %v2564 = vsel %vm2563, %v2556, %v2560
        %v2565 = vand.u32 2147483647, %v2457
        %vm2566 = vcmp.eq.f32.partialorder %v2565, 8.507059e+37
        %v2567 = vand.u32 %v2457, 2147483648
        %v2568 = vor.u32 1.1754944e-38, %v2567
        %v2569 = vsel %vm2566, %v2568, %v2564
        %v2570 = vmul.f32 %v2419, %v2471
        %v2571 = vmul.f32 %v2421, %v2485
        %v2572 = vmul.f32 %v2423, %v2499
        %v2573 = vmul.f32 %v2425, %v2513
        %v2574 = vmul.f32 %v2427, %v2527
        %v2575 = vmul.f32 %v2429, %v2541
        %v2576 = vmul.f32 %v2431, %v2555
        %v2577 = vmul.f32 %v2433, %v2569
        %v2579 = vsel %vm958, %v2570, 0
        %v2582 = vsel %vm958, %v2571, 0
        %v2585 = vsel %vm958, %v2572, 0
        %v2588 = vsel %vm958, %v2573, 0
        %v2591 = vsel %vm958, %v2574, 0
        %v2594 = vsel %vm958, %v2575, 0
        %v2597 = vsel %vm958, %v2576, 0
        %v2600 = vsel %vm958, %v2577, 0
        %2602 = vmatpush.msra.mxu0 0.0
        %2603 = vmatpush.msra.mxu0 0.0
        %2604 = vmatpush.msra.mxu0 0.0
        %2605 = vmatpush.msra.mxu0 0.0
        %2606 = vmatpush.msra.mxu0 0.0
        %2607 = vmatpush.msra.mxu0 0.0
        %2608 = vmatpush.msra.mxu0 0.0
        %2609 = vmatpush.msra.mxu0 0.0
        %2610 = vmatpush.msra.mxu0 %v2295
        %2611 = vmatpush.msra.mxu0 %v2292
        %2612 = vmatpush.msra.mxu0 %v2263
        %2613 = vmatpush.msra.mxu0 %v2260
        %2614 = vmatpush.msra.mxu0 %v2231
        %2615 = vmatpush.msra.mxu0 %v2228
        %2616 = vmatpush.msra.mxu0 %v2199
        %2617 = vmatpush.msra.mxu0 %v2196
        %2618 = vmatmul.f32.gmra.mxu0 %v2579
        %v2619 = vpop.f32.mrf.mxu0
        %v2620 = vadd.f32 0.0, %v2619
        %2621 = vmatmul.f32.gmra.mxu0 %v2582
        %v2622 = vpop.f32.mrf.mxu0
        %v2623 = vadd.f32 0.0, %v2622
        %2624 = vmatmul.f32.gmra.mxu0 %v2585
        %v2625 = vpop.f32.mrf.mxu0
        %v2626 = vadd.f32 0.0, %v2625
        %2627 = vmatmul.f32.gmra.mxu0 %v2588
        %v2628 = vpop.f32.mrf.mxu0
        %v2629 = vadd.f32 0.0, %v2628
        %2630 = vmatmul.f32.gmra.mxu0 %v2591
        %v2631 = vpop.f32.mrf.mxu0
        %v2632 = vadd.f32 0.0, %v2631
        %2633 = vmatmul.f32.gmra.mxu0 %v2594
        %v2634 = vpop.f32.mrf.mxu0
        %v2635 = vadd.f32 0.0, %v2634
        %2636 = vmatmul.f32.gmra.mxu0 %v2597
        %v2637 = vpop.f32.mrf.mxu0
        %v2638 = vadd.f32 0.0, %v2637
        %2639 = vmatmul.f32.gmra.mxu0 %v2600
        %v2640 = vpop.f32.mrf.mxu0
        %v2641 = vadd.f32 0.0, %v2640
        %2642 = vdwg.mxu0
        %v2643 = vld [vmem:[%s816] sm:$0xff]
        %v2644 = vld [vmem:[%s816 + $0x8] sm:$0xff]
        %v2645 = vld [vmem:[%s816 + $0x10] sm:$0xff]
        %v2646 = vld [vmem:[%s816 + $0x18] sm:$0xff]
        %v2647 = vld [vmem:[%s816 + $0x20] sm:$0xff]
        %v2648 = vld [vmem:[%s816 + $0x28] sm:$0xff]
        %v2649 = vld [vmem:[%s816 + $0x30] sm:$0xff]
        %v2650 = vld [vmem:[%s816 + $0x38] sm:$0xff]
        %s2651 = scalar_lea.vmem %s816, 64 [#allocation18]
        %v2652 = vld [vmem:[%s2651] sm:$0xff]
        %v2653 = vld [vmem:[%s2651 + $0x8] sm:$0xff]
        %v2654 = vld [vmem:[%s2651 + $0x10] sm:$0xff]
        %v2655 = vld [vmem:[%s2651 + $0x18] sm:$0xff]
        %v2656 = vld [vmem:[%s2651 + $0x20] sm:$0xff]
        %v2657 = vld [vmem:[%s2651 + $0x28] sm:$0xff]
        %v2658 = vld [vmem:[%s2651 + $0x30] sm:$0xff]
        %v2659 = vld [vmem:[%s2651 + $0x38] sm:$0xff]
        %v2661 = vsel %vm958, %v2626, 0
        %v2664 = vsel %vm958, %v2629, 0
        %2666 = vmatpush.msra.mxu0 0.0
        %2667 = vmatpush.msra.mxu0 0.0
        %2668 = vmatpush.msra.mxu0 0.0
        %2669 = vmatpush.msra.mxu0 0.0
        %2670 = vmatpush.msra.mxu0 0.0
        %2671 = vmatpush.msra.mxu0 0.0
        %2672 = vmatpush.msra.mxu0 0.0
        %2673 = vmatpush.msra.mxu0 0.0
        %2674 = vmatpush.msra.mxu0 %v2659
        %2675 = vmatpush.msra.mxu0 %v2658
        %2676 = vmatpush.msra.mxu0 %v2657
        %2677 = vmatpush.msra.mxu0 %v2656
        %2678 = vmatpush.msra.mxu0 %v2655
        %2679 = vmatpush.msra.mxu0 %v2654
        %2680 = vmatpush.msra.mxu0 %v2653
        %2681 = vmatpush.msra.mxu0 %v2652
        %2682 = vmatmul.f32.gmra.mxu0 %v2661
        %v2683 = vpop.f32.mrf.mxu0
        %v2684 = vadd.f32 0.0, %v2683
        %2685 = vmatmul.f32.gmra.mxu0 %v2664
        %v2686 = vpop.f32.mrf.mxu0
        %v2687 = vadd.f32 0.0, %v2686
        %2688 = vdwg.mxu0
        %v2690 = vsel %vm958, %v2620, 0
        %v2693 = vsel %vm958, %v2623, 0
        %2695 = vmatpush.msra.mxu0 0.0
        %2696 = vmatpush.msra.mxu0 0.0
        %2697 = vmatpush.msra.mxu0 0.0
        %2698 = vmatpush.msra.mxu0 0.0
        %2699 = vmatpush.msra.mxu0 0.0
        %2700 = vmatpush.msra.mxu0 0.0
        %2701 = vmatpush.msra.mxu0 0.0
        %2702 = vmatpush.msra.mxu0 0.0
        %2703 = vmatpush.msra.mxu0 %v2650
        %2704 = vmatpush.msra.mxu0 %v2649
        %2705 = vmatpush.msra.mxu0 %v2648
        %2706 = vmatpush.msra.mxu0 %v2647
        %2707 = vmatpush.msra.mxu0 %v2646
        %2708 = vmatpush.msra.mxu0 %v2645
        %2709 = vmatpush.msra.mxu0 %v2644
        %2710 = vmatpush.msra.mxu0 %v2643
        %2711 = vmatmul.f32.gmra.mxu0 %v2690
        %v2712 = vpop.f32.mrf.mxu0
        %v2713 = vadd.f32 %v2684, %v2712
        %2714 = vmatmul.f32.gmra.mxu0 %v2693
        %v2715 = vpop.f32.mrf.mxu0
        %v2716 = vadd.f32 %v2687, %v2715
        %2717 = vdwg.mxu0
        %s2718 = scalar_lea.vmem %s816, 128 [#allocation18]
        %v2719 = vld [vmem:[%s2718] sm:$0xff]
        %v2720 = vld [vmem:[%s2718 + $0x8] sm:$0xff]
        %v2721 = vld [vmem:[%s2718 + $0x10] sm:$0xff]
        %v2722 = vld [vmem:[%s2718 + $0x18] sm:$0xff]
        %v2723 = vld [vmem:[%s2718 + $0x20] sm:$0xff]
        %v2724 = vld [vmem:[%s2718 + $0x28] sm:$0xff]
        %v2725 = vld [vmem:[%s2718 + $0x30] sm:$0xff]
        %v2726 = vld [vmem:[%s2718 + $0x38] sm:$0xff]
        %v2728 = vsel %vm958, %v2632, 0
        %v2731 = vsel %vm958, %v2635, 0
        %2733 = vmatpush.msra.mxu0 0.0
        %2734 = vmatpush.msra.mxu0 0.0
        %2735 = vmatpush.msra.mxu0 0.0
        %2736 = vmatpush.msra.mxu0 0.0
        %2737 = vmatpush.msra.mxu0 0.0
        %2738 = vmatpush.msra.mxu0 0.0
        %2739 = vmatpush.msra.mxu0 0.0
        %2740 = vmatpush.msra.mxu0 0.0
        %2741 = vmatpush.msra.mxu0 %v2726
        %2742 = vmatpush.msra.mxu0 %v2725
        %2743 = vmatpush.msra.mxu0 %v2724
        %2744 = vmatpush.msra.mxu0 %v2723
        %2745 = vmatpush.msra.mxu0 %v2722
        %2746 = vmatpush.msra.mxu0 %v2721
        %2747 = vmatpush.msra.mxu0 %v2720
        %2748 = vmatpush.msra.mxu0 %v2719
        %2749 = vmatmul.f32.gmra.mxu0 %v2728
        %v2750 = vpop.f32.mrf.mxu0
        %v2751 = vadd.f32 0.0, %v2750
        %2752 = vmatmul.f32.gmra.mxu0 %v2731
        %v2753 = vpop.f32.mrf.mxu0
        %v2754 = vadd.f32 0.0, %v2753
        %2755 = vdwg.mxu0
        %v2756 = vadd.f32 %v2713, %v2751
        %v2757 = vadd.f32 %v2716, %v2754
        %s2758 = scalar_lea.vmem %s816, 192 [#allocation18]
        %v2759 = vld [vmem:[%s2758] sm:$0xff]
        %v2760 = vld [vmem:[%s2758 + $0x8] sm:$0xff]
        %v2761 = vld [vmem:[%s2758 + $0x10] sm:$0xff]
        %v2762 = vld [vmem:[%s2758 + $0x18] sm:$0xff]
        %v2763 = vld [vmem:[%s2758 + $0x20] sm:$0xff]
        %v2764 = vld [vmem:[%s2758 + $0x28] sm:$0xff]
        %v2765 = vld [vmem:[%s2758 + $0x30] sm:$0xff]
        %v2766 = vld [vmem:[%s2758 + $0x38] sm:$0xff]
        %v2768 = vsel %vm958, %v2638, 0
        %v2771 = vsel %vm958, %v2641, 0
        %2773 = vmatpush.msra.mxu0 0.0
        %2774 = vmatpush.msra.mxu0 0.0
        %2775 = vmatpush.msra.mxu0 0.0
        %2776 = vmatpush.msra.mxu0 0.0
        %2777 = vmatpush.msra.mxu0 0.0
        %2778 = vmatpush.msra.mxu0 0.0
        %2779 = vmatpush.msra.mxu0 0.0
        %2780 = vmatpush.msra.mxu0 0.0
        %2781 = vmatpush.msra.mxu0 %v2766
        %2782 = vmatpush.msra.mxu0 %v2765
        %2783 = vmatpush.msra.mxu0 %v2764
        %2784 = vmatpush.msra.mxu0 %v2763
        %2785 = vmatpush.msra.mxu0 %v2762
        %2786 = vmatpush.msra.mxu0 %v2761
        %2787 = vmatpush.msra.mxu0 %v2760
        %2788 = vmatpush.msra.mxu0 %v2759
        %2789 = vmatmul.f32.gmra.mxu0 %v2768
        %v2790 = vpop.f32.mrf.mxu0
        %v2791 = vadd.f32 0.0, %v2790
        %2792 = vmatmul.f32.gmra.mxu0 %v2771
        %v2793 = vpop.f32.mrf.mxu0
        %v2794 = vadd.f32 0.0, %v2793
        %2795 = vdwg.mxu0
        %v2796 = vadd.f32 %v2756, %v2791
        %v2797 = vadd.f32 %v2757, %v2794
        %v2798 = vadd.f32 %v2796, %v1894
        %v2799 = vadd.f32 %v2797, %v1895
        %v2800 = vsel %vm958, %v2798, 0.0
        %2801 = vadd.xlane.f32.xlu0 %v2800
        %v2802 = vpop.xlane.xlu0 %2801
        %v2803 = vsel %vm958, %v2799, 0.0
        %2804 = vadd.xlane.f32.xlu0 %v2803
        %v2805 = vpop.xlane.xlu0 %2804
        %v2806 = vmul.f32 %v2802, %v1853
        %v2807 = vmul.f32 %v2805, %v1853
        %v2808 = vmul.f32 %v2798, %v2798
        %v2809 = vmul.f32 %v2799, %v2799
        %v2810 = vsel %vm958, %v2808, 0.0
        %2811 = vadd.xlane.f32.xlu0 %v2810
        %v2812 = vpop.xlane.xlu0 %2811
        %v2813 = vsel %vm958, %v2809, 0.0
        %2814 = vadd.xlane.f32.xlu0 %v2813
        %v2815 = vpop.xlane.xlu0 %2814
        %v2816 = vmul.f32 %v2812, %v1853
        %v2817 = vmul.f32 %v2815, %v1853
        %v2818 = vmul.f32 %v2806, %v2806
        %v2819 = vmul.f32 %v2807, %v2807
        %v2820 = vsub.f32 %v2816, %v2818
        %v2821 = vsub.f32 %v2817, %v2819
        %v2822 = vsub.f32 %v2798, %v2806
        %v2823 = vsub.f32 %v2799, %v2807
        %v2824 = vadd.f32 %v2820, 1e-05
        %v2825 = vadd.f32 %v2821, 1e-05
        %v2826 = vrsqrt.pop %v2824
        %v2827 = vmul.f32 %v2826, %v2824
        %v2828 = vmul.f32 %v2827, %v2826
        %v2829 = vmul.f32 0.5, %v2828
        %v2830 = vsub.f32 1.5, %v2829
        %v2831 = vmul.f32 %v2826, %v2830
        %vm2832 = vweird.f32 %v2824
        %vm2833 = vweird.f32 %v2826
        %vm2834 = vmor %vm2832, %vm2833
        %v2835 = vsel %vm2834, %v2826, %v2831
        %v2836 = vrsqrt.pop %v2825
        %v2837 = vmul.f32 %v2836, %v2825
        %v2838 = vmul.f32 %v2837, %v2836
        %v2839 = vmul.f32 0.5, %v2838
        %v2840 = vsub.f32 1.5, %v2839
        %v2841 = vmul.f32 %v2836, %v2840
        %vm2842 = vweird.f32 %v2825
        %vm2843 = vweird.f32 %v2836
        %vm2844 = vmor %vm2842, %vm2843
        %v2845 = vsel %vm2844, %v2836, %v2841
        %v2846 = vmul.f32 %v2822, %v2835
        %v2847 = vmul.f32 %v2823, %v2845
        %v2848 = vld [vmem:[%s826] sm:$0xff]
        %v2849 = vld [vmem:[%s826 + $0x8] sm:$0xff]
        %v2850 = vld [vmem:[%s826 + $0x10] sm:$0xff]
        %v2851 = vld [vmem:[%s826 + $0x18] sm:$0xff]
        %v2852 = vld [vmem:[%s826 + $0x20] sm:$0xff]
        %v2853 = vld [vmem:[%s826 + $0x28] sm:$0xff]
        %v2854 = vld [vmem:[%s826 + $0x30] sm:$0xff]
        %v2855 = vld [vmem:[%s826 + $0x38] sm:$0xff]
        %v2857 = vsel %vm958, %v2846, 0
        %v2860 = vsel %vm958, %v2847, 0
        %2862 = vmatpush.msra.mxu0 0.0
        %2863 = vmatpush.msra.mxu0 0.0
        %2864 = vmatpush.msra.mxu0 0.0
        %2865 = vmatpush.msra.mxu0 0.0
        %2866 = vmatpush.msra.mxu0 0.0
        %2867 = vmatpush.msra.mxu0 0.0
        %2868 = vmatpush.msra.mxu0 0.0
        %2869 = vmatpush.msra.mxu0 0.0
        %2870 = vmatpush.msra.mxu0 %v2855
        %2871 = vmatpush.msra.mxu0 %v2854
        %2872 = vmatpush.msra.mxu0 %v2853
        %2873 = vmatpush.msra.mxu0 %v2852
        %2874 = vmatpush.msra.mxu0 %v2851
        %2875 = vmatpush.msra.mxu0 %v2850
        %2876 = vmatpush.msra.mxu0 %v2849
        %2877 = vmatpush.msra.mxu0 %v2848
        %2878 = vmatmul.f32.gmra.mxu0 %v2857
        %v2879 = vpop.f32.mrf.mxu0
        %v2880 = vadd.f32 0.0, %v2879
        %2881 = vmatmul.f32.gmra.mxu0 %v2860
        %v2882 = vpop.f32.mrf.mxu0
        %v2883 = vadd.f32 0.0, %v2882
        %2884 = vdwg.mxu0
        %v2885 = vmax.f32 %v2880, 0.0
        %v2886 = vmax.f32 %v2883, 0.0
        %v2887 = vld [vmem:[%s836] sm:$0xff]
        %v2888 = vld [vmem:[%s836 + $0x8] sm:$0xff]
        %v2889 = vld [vmem:[%s836 + $0x10] sm:$0xff]
        %v2890 = vld [vmem:[%s836 + $0x18] sm:$0xff]
        %v2891 = vld [vmem:[%s836 + $0x20] sm:$0xff]
        %v2892 = vld [vmem:[%s836 + $0x28] sm:$0xff]
        %v2893 = vld [vmem:[%s836 + $0x30] sm:$0xff]
        %v2894 = vld [vmem:[%s836 + $0x38] sm:$0xff]
        %v2896 = vsel %vm958, %v2885, 0
        %v2899 = vsel %vm958, %v2886, 0
        %2901 = vmatpush.msra.mxu0 0.0
        %2902 = vmatpush.msra.mxu0 0.0
        %2903 = vmatpush.msra.mxu0 0.0
        %2904 = vmatpush.msra.mxu0 0.0
        %2905 = vmatpush.msra.mxu0 0.0
        %2906 = vmatpush.msra.mxu0 0.0
        %2907 = vmatpush.msra.mxu0 0.0
        %2908 = vmatpush.msra.mxu0 0.0
        %2909 = vmatpush.msra.mxu0 %v2894
        %2910 = vmatpush.msra.mxu0 %v2893
        %2911 = vmatpush.msra.mxu0 %v2892
        %2912 = vmatpush.msra.mxu0 %v2891
        %2913 = vmatpush.msra.mxu0 %v2890
        %2914 = vmatpush.msra.mxu0 %v2889
        %2915 = vmatpush.msra.mxu0 %v2888
        %2916 = vmatpush.msra.mxu0 %v2887
        %2917 = vmatmul.f32.gmra.mxu0 %v2896
        %v2918 = vpop.f32.mrf.mxu0
        %v2919 = vadd.f32 %v2846, %v2918
        %2920 = vmatmul.f32.gmra.mxu0 %v2899
        %v2921 = vpop.f32.mrf.mxu0
        %v2922 = vadd.f32 %v2847, %v2921
        %2923 = vdwg.mxu0
        %v2924 = vsel %vm958, %v2919, 0.0
        %2925 = vadd.xlane.f32.xlu0 %v2924
        %v2926 = vpop.xlane.xlu0 %2925
        %v2927 = vsel %vm958, %v2922, 0.0
        %2928 = vadd.xlane.f32.xlu0 %v2927
        %v2929 = vpop.xlane.xlu0 %2928
        %v2930 = vmul.f32 %v2926, %v1853
        %v2931 = vmul.f32 %v2929, %v1853
        %v2932 = vmul.f32 %v2919, %v2919
        %v2933 = vmul.f32 %v2922, %v2922
        %v2934 = vsel %vm958, %v2932, 0.0
        %2935 = vadd.xlane.f32.xlu0 %v2934
        %v2936 = vpop.xlane.xlu0 %2935
        %v2937 = vsel %vm958, %v2933, 0.0
        %2938 = vadd.xlane.f32.xlu0 %v2937
        %v2939 = vpop.xlane.xlu0 %2938
        %v2940 = vmul.f32 %v2936, %v1853
        %v2941 = vmul.f32 %v2939, %v1853
        %v2942 = vmul.f32 %v2930, %v2930
        %v2943 = vmul.f32 %v2931, %v2931
        %v2944 = vsub.f32 %v2940, %v2942
        %v2945 = vsub.f32 %v2941, %v2943
        %v2946 = vsub.f32 %v2919, %v2930
        %v2947 = vsub.f32 %v2922, %v2931
        %v2948 = vadd.f32 %v2944, 1e-05
        %v2949 = vadd.f32 %v2945, 1e-05
        %v2950 = vrsqrt.pop %v2948
        %v2951 = vmul.f32 %v2950, %v2948
        %v2952 = vmul.f32 %v2951, %v2950
        %v2953 = vmul.f32 0.5, %v2952
        %v2954 = vsub.f32 1.5, %v2953
        %v2955 = vmul.f32 %v2950, %v2954
        %vm2956 = vweird.f32 %v2948
        %vm2957 = vweird.f32 %v2950
        %vm2958 = vmor %vm2956, %vm2957
        %v2959 = vsel %vm2958, %v2950, %v2955
        %v2960 = vrsqrt.pop %v2949
        %v2961 = vmul.f32 %v2960, %v2949
        %v2962 = vmul.f32 %v2961, %v2960
        %v2963 = vmul.f32 0.5, %v2962
        %v2964 = vsub.f32 1.5, %v2963
        %v2965 = vmul.f32 %v2960, %v2964
        %vm2966 = vweird.f32 %v2949
        %vm2967 = vweird.f32 %v2960
        %vm2968 = vmor %vm2966, %vm2967
        %v2969 = vsel %vm2968, %v2960, %v2965
        %v2970 = vmul.f32 %v2946, %v2959
        %v2971 = vmul.f32 %v2947, %v2969
        %2972 = vst.msk [vmem:[#allocation2] sm:$0xff] %vm958, %v2970
        %2973 = vst.msk [vmem:[#allocation2 + $0x8] sm:$0xff] %vm958, %v2971
        %2974 = vst.msk [vmem:[%s928] sm:$0xff] %vm958, %v1611
        %2975 = vst.msk [vmem:[%s928 + $0x8] sm:$0xff] %vm958, %v1612
        %2976 = vst.msk [vmem:[%s928 + $0x10] sm:$0xff] %vm958, %v1613
        %2977 = vst.msk [vmem:[%s928 + $0x18] sm:$0xff] %vm958, %v1614
        %2978 = vst.msk [vmem:[%s928 + $0x20] sm:$0xff] %vm958, %v1615
        %2979 = vst.msk [vmem:[%s928 + $0x28] sm:$0xff] %vm958, %v1616
        %2980 = vst.msk [vmem:[%s928 + $0x30] sm:$0xff] %vm958, %v1617
        %2981 = vst.msk [vmem:[%s928 + $0x38] sm:$0xff] %vm958, %v1618
        %2982 = vrot.lane.b32.xlu0 %v2570, 64
        %v2983 = vpop.permute.xlu0 %2982
        %2984 = vrot.lane.b32.xlu0 %v2571, 64
        %v2985 = vpop.permute.xlu0 %2984
        %2986 = vrot.lane.b32.xlu0 %v2572, 64
        %v2987 = vpop.permute.xlu0 %2986
        %2988 = vrot.lane.b32.xlu0 %v2573, 64
        %v2989 = vpop.permute.xlu0 %2988
        %2990 = vrot.lane.b32.xlu0 %v2574, 64
        %v2991 = vpop.permute.xlu0 %2990
        %2992 = vrot.lane.b32.xlu0 %v2575, 64
        %v2993 = vpop.permute.xlu0 %2992
        %2994 = vrot.lane.b32.xlu0 %v2576, 64
        %v2995 = vpop.permute.xlu0 %2994
        %2996 = vrot.lane.b32.xlu0 %v2577, 64
        %v2997 = vpop.permute.xlu0 %2996
        %vm3006 = vcmask 1048064
        %3007 = vst.msk [vmem:[%s928] sm:$0xff] %vm3006, %v2983
        %3008 = vst.msk [vmem:[%s928 + $0x8] sm:$0xff] %vm3006, %v2985
        %3009 = vst.msk [vmem:[%s928 + $0x10] sm:$0xff] %vm3006, %v2987
        %3010 = vst.msk [vmem:[%s928 + $0x18] sm:$0xff] %vm3006, %v2989
        %3011 = vst.msk [vmem:[%s928 + $0x20] sm:$0xff] %vm3006, %v2991
        %3012 = vst.msk [vmem:[%s928 + $0x28] sm:$0xff] %vm3006, %v2993
        %3013 = vst.msk [vmem:[%s928 + $0x30] sm:$0xff] %vm3006, %v2995
        %3014 = vst.msk [vmem:[%s928 + $0x38] sm:$0xff] %vm3006, %v2997
        %p3015 = scmp.eq.s32.totalorder %s34, 1
        // Predicated region
        $region137: #{tpu_custom_call.1} parent=75 // pred_check
          %p3016 = pneg %p3015
        $region138: #{tpu_custom_call.1} parent=75 // pred_check_branch
          %3018 = sbr.rel (%p3016) target = $region140
        $region139: #{tpu_custom_call.1} parent=75 // pred_region
          %3019 = vst.msk [vmem:[#allocation21] sm:$0xff] %vm958, %v2970
          %3020 = vst.msk [vmem:[#allocation21 + $0x8] sm:$0xff] %vm958, %v2971
        $region140: #{tpu_custom_call.1} parent=75 // pred_fallthru
          _
        %s3021 = sand.u32 %s407, 1
        %s3022 = scalar_lea.sflag [#allocation23], %s3021
        %s3023 = sand.u32 %s407, 1
        %s3024 = smul.addr %s3023, 64
        %s3025 = scalar_lea.vmem [#allocation22], %s3024
        // Predicated region
        $region141: #{tpu_custom_call.1} parent=75 // pred_check
          %p3026 = pneg %p391
        $region142: #{tpu_custom_call.1} parent=75 // pred_check_branch
          %3028 = sbr.rel (%p3026) target = $region144
        $region143: #{tpu_custom_call.1} parent=75 // pred_region
          %3030 = vsyncadd [#allocation5], 0
          %s3031 = sshll.u32 [#allocation21], 4
          %s3032 = int_to_ptr.vmem [resolvable:$true] %s3031
          %s3033 = sshll.u32 %s14, 4
          %s3034 = int_to_ptr.hbm [resolvable:$true] %s3033
          %3039 = dma.vmem_to_hbm [thread:$0]  %s3032, 256, %s3034, [#allocation5], 128, 128, 8
        $region144: #{tpu_custom_call.1} parent=75 // pred_fallthru
          _
        // Predicated region
        $region145: #{tpu_custom_call.1} parent=75 // pred_check
          %p3040 = pneg %p417
        $region146: #{tpu_custom_call.1} parent=75 // pred_check_branch
          %3042 = sbr.rel (%p3040) target = $region148
        $region147: #{tpu_custom_call.1} parent=75 // pred_region
          %3044 = vsyncadd %s3022, 0
          %s3045 = smul.addr %s34, 8
          %s3046 = smul.addr %s3045, 8
          %s3047 = scalar_lea.hbm %s15, %s3046
          %s3048 = sshll.u32 %s3025, 4
          %s3049 = int_to_ptr.vmem [resolvable:$true] %s3048
          %s3050 = sshll.u32 %s3047, 4
          %s3051 = int_to_ptr.hbm [resolvable:$true] %s3050
          %3056 = dma.vmem_to_hbm [thread:$0]  %s3049, 1024, %s3051, %s3022, 128, 128, 8
        $region148: #{tpu_custom_call.1} parent=75 // pred_fallthru
          _
        // Predicated region
        $region149: #{tpu_custom_call.1} parent=75 // pred_check
          %p3057 = pneg %p391
        $region150: #{tpu_custom_call.1} parent=75 // pred_check_branch
          %3059 = sbr.rel (%p3057) target = $region152
        $region151: #{tpu_custom_call.1} parent=75 // pred_region
          %3061 = dma.done [#allocation5], 256
        $region152: #{tpu_custom_call.1} parent=75 // pred_fallthru
          _
      $region76: #{tpu_custom_call.1} parent=5 // pred_fallthru
        _
      %p3062 = scmp.le.s32.totalorder 2, %s29
      // Predicated region
      $region153: #{tpu_custom_call.1} parent=5 // pred_check
        %p3063 = pneg %p3062
      $region154: #{tpu_custom_call.1} parent=5 // pred_check_branch
        %3065 = sbr.rel (%p3063) target = $region156
      $region155: #{tpu_custom_call.1} parent=5 // pred_region
        %s3066 = ssub.s32 %s29, 2
        // Predicated region
        $region157: #{tpu_custom_call.1} parent=155 // pred_check
          %p3067 = pneg %p423
        $region158: #{tpu_custom_call.1} parent=155 // pred_check_branch
          %3069 = sbr.rel (%p3067) target = $region160
        $region159: #{tpu_custom_call.1} parent=155 // pred_region
          %s3070 = sand.u32 %s408, 1
          %s3071 = scalar_lea.sflag [#allocation23], %s3070
          %s3072 = sand.u32 %s408, 1
          %s3073 = smul.addr %s3072, 64
          %s3074 = scalar_lea.vmem [#allocation22], %s3073
          %3076 = dma.done %s3071, 1024
        $region160: #{tpu_custom_call.1} parent=155 // pred_fallthru
          _
      $region156: #{tpu_custom_call.1} parent=5 // pred_fallthru
        _
    $region6: #{tpu_custom_call.1} parent=1 // loop_footer
      %s33 = sadd.s32 1, %s29
    $region7: #{tpu_custom_call.1} parent=1 // loop_footer_branch
      %28 = sbr.rel target = $region3
    $region8: #{tpu_custom_call.1} parent=1 // loop_exit
      _
    %3077 = vsyncpa [#allocation4], 1
    %s3078 = scalar_lea.sflag [#allocation4], 1
    %3079 = vsyncpa %s3078, 1
    %3080 = vsyncpa [#allocation7], 1
    %3081 = vsyncpa [#allocation10], 1
    %3082 = vsyncpa [#allocation5], 1
    %s3083 = scalar_lea.sflag [#allocation5], 1
    %3084 = vsyncpa %s3083, 1
    %3085 = vsyncpa [#allocation23], 1
    %s3086 = scalar_lea.sflag [#allocation23], 1
    %3087 = vsyncpa %s3086, 1

</llo_original>
